<compile_context>
chip_gen: v5e
topology: v5e:2x2
jax: 0.10.0
libtpu: 0.0.40
codegen_flags: <defaults>
</compile_context>

<pallas_src>
import math

import numpy as np
import jax
import jax.numpy as jnp
from jax.experimental import pallas as pl
from jax.experimental.pallas import tpu as pltpu

_INV_SQRT2 = 0.7071067811865476
_LN_EPS = 1e-6        # LayerNorm2D eps (channel-wise LN per spatial position)
_FRONT_PAD = 8        # sublane-aligned junk pad rows in front of the upsample buffer
_BACK_PAD = 8         # junk pad rows after it (only masked taps ever read the pads)


def _erf(x, *, approx_recip=False):
    # Abramowitz & Stegun 7.1.26 rational approximation, |err| < 1.5e-7.
    # torch.nn.GELU() uses the exact-erf form; lax.erf does not lower inside Mosaic.
    a1, a2, a3, a4, a5 = 0.254829592, -0.284496736, 1.421413741, -1.453152027, 1.061405429
    p = 0.3275911
    s = jnp.where(x >= 0.0, 1.0, -1.0)
    ax = jnp.abs(x)
    den = 1.0 + p * ax
    t = pl.reciprocal(den, approx=True) if approx_recip else 1.0 / den
    poly = ((((a5 * t + a4) * t + a3) * t + a2) * t + a1) * t
    return s * (1.0 - poly * jnp.exp(-ax * ax))


def _fpn_kernel(ridx_ref,          # (NB, 2R+1) int32 SMEM (scalar prefetch): rel. H-tap indices + base coarse row
                rwgt_ref,          # (NB, 2R)   f32   SMEM input: H-tap weights (0 off-image -> free zero pad)
                rc_ref,            # (Wl, Wh)   f32   W-axis bilinear matrix
                high_ref,          # (Hh, Wh, C) f32  coarse feature (channels-last, reused across row blocks)
                low_ref,           # (S, C)     f32   fine-feature row block (flat, channels-last)
                w3_ref,            # (9C, C)    bf16  3x3 conv weight, im2col layout (tap*Cin, Cout)
                b3_ref,            # (1, C)     f32
                w1_ref,            # (C, C)     bf16  1x1 conv weight (Cin, Cout)
                b1_ref,            # (1, C)     f32
                g_ref, beta_ref,   # (1, C)     f32   LayerNorm2D affine
                out_ref,           # (S, C)     f32
                inter_ref,         # (U, Wl, C) f32   scratch: W-upsampled coarse rows (block-local)
                upx_ref,           # (S+2Wl+16, C) f32 scratch: upsampled rows + conv halo + junk pads
                col_ref):          # (S, 9C)    bf16  scratch: im2col slab
    f32, bf16 = jnp.float32, jnp.bfloat16
    Wl = rc_ref.shape[0]
    C = out_ref.shape[1]
    S = out_ref.shape[0]
    U = inter_ref.shape[0]
    R = (ridx_ref.shape[1] - 1) // 2
    b = pl.program_id(1)

    # ---- 1a) W-axis bilinear pass, restricted to the U coarse rows this block taps ----
    rc = rc_ref[...]
    u0 = ridx_ref[b, 2 * R]                      # base coarse row; host guarantees u0 + U <= Hh
    for u in range(U):
        inter_ref[u] = jnp.dot(rc, high_ref[u0 + u], preferred_element_type=f32)

    # ---- 1b) H-axis bilinear pass: 2-tap VPU blend with SMEM scalar weights ----
    # Rows outside the image carry zero weights, so the 3x3 conv's vertical zero
    # padding comes for free (halo rows above/below the block are written as 0).
    for r in range(R):
        lo = ridx_ref[b, 2 * r]
        hi = ridx_ref[b, 2 * r + 1]
        wlo = rwgt_ref[b, 2 * r]
        whi = rwgt_ref[b, 2 * r + 1]
        row = wlo * inter_ref[lo] + whi * inter_ref[hi]
        upx_ref[pl.ds(_FRONT_PAD + r * Wl, Wl), :] = row

    # ---- 2) 3x3 "scale" conv (padding=1) via im2col + ONE deep-K bf16 MXU matmul ----
    # Tap (ky,kx) of flat output index s lives at upx row  s + _FRONT_PAD + ky*Wl + kx - 1.
    # The only reads that land on a neighbouring upsampled row (w = -1 / w = Wl) or on
    # the uninitialised pad rows are at x == 0 (kx == 0) and x == Wl-1 (kx == 2); both
    # are zeroed by the left/right column masks, so no scratch zero-init is needed.
    x_col = jax.lax.broadcasted_iota(jnp.int32, (S, 1), 0) % Wl
    left = x_col == 0
    right = x_col == Wl - 1
    for k in range(9):
        ky, kx = k // 3, k % 3
        start = _FRONT_PAD + ky * Wl + kx - 1
        tap = upx_ref[pl.ds(start, S), :]
        if kx == 0:
            tap = jnp.where(left, 0.0, tap)      # w-1 < 0   -> horizontal zero pad
        elif kx == 2:
            tap = jnp.where(right, 0.0, tap)     # w+1 >= Wl -> horizontal zero pad
        col_ref[:, k * C:(k + 1) * C] = tap.astype(bf16)

    acc = low_ref[...] + b3_ref[...] + jnp.dot(col_ref[...], w3_ref[...],
                                               preferred_element_type=f32)

    # ---- 3) 1x1 conv + exact GELU + LayerNorm2D (channel-wise) ----
    y = jnp.dot(acc.astype(bf16), w1_ref[...], preferred_element_type=f32) + b1_ref[...]
    y = 0.5 * y * (1.0 + _erf(y * _INV_SQRT2, approx_recip=True))

    mu = jnp.mean(y, axis=-1, keepdims=True)
    d = y - mu                                   # two-pass variance: no E[x^2]-mu^2 cancellation
    var = jnp.mean(d * d, axis=-1, keepdims=True)
    out_ref[...] = (d * jax.lax.rsqrt(var + _LN_EPS) * g_ref[...] + beta_ref[...]).astype(out_ref.dtype)


def _bilinear_matrix(out_size, in_size):
    # 1-D matrix matching F.interpolate(mode='bilinear', align_corners=False).
    if out_size == in_size:
        return jnp.eye(out_size, dtype=jnp.float32)
    scale = in_size / out_size
    dst = jnp.arange(out_size, dtype=jnp.float32)
    src = jnp.clip((dst + 0.5) * scale - 0.5, 0.0, in_size - 1)
    lo = jnp.floor(src).astype(jnp.int32)
    hi = jnp.minimum(lo + 1, in_size - 1)
    frac = src - lo.astype(jnp.float32)
    rows = jnp.arange(out_size)
    m = jnp.zeros((out_size, in_size), jnp.float32)
    m = m.at[rows, lo].add(1.0 - frac)
    m = m.at[rows, hi].add(frac)
    return m


def _row_tap_tables(Hl, Hh, th):
    """Per-(row-block, local-row) 2-tap H-axis bilinear indices/weights, including a
    1-row conv halo on each side (zero weights off-image).  Indices are stored
    relative to a per-block base coarse row so the kernel only touches U rows."""
    nb = Hl // th
    R = th + 2
    scale = Hh / Hl
    lo_t = np.zeros((nb, R), np.int32)
    hi_t = np.zeros((nb, R), np.int32)
    w_t = np.zeros((nb, R, 2), np.float32)
    valid = np.zeros((nb, R), bool)
    for b in range(nb):
        for r in range(R):
            g = b * th - 1 + r                      # global upsampled row (with halo)
            if 0 <= g < Hl:
                src = min(max((g + 0.5) * scale - 0.5, 0.0), Hh - 1.0)
                lo = min(int(math.floor(src)), Hh - 1)
                hi = min(lo + 1, Hh - 1)
                f = src - lo
                lo_t[b, r], hi_t[b, r] = lo, hi
                w_t[b, r] = (1.0 - f, f)
                valid[b, r] = True
    spans = []
    for b in range(nb):
        v = valid[b]
        spans.append(int(hi_t[b][v].max()) - int(lo_t[b][v].min()) + 1)
    U = max(spans)                                  # max coarse-row span of any block (<= Hh)
    ridx = np.zeros((nb, 2 * R + 1), np.int32)
    rwgt = np.zeros((nb, 2 * R), np.float32)
    for b in range(nb):
        v = valid[b]
        u0 = min(int(lo_t[b][v].min()), Hh - U)     # keep u0 + U <= Hh (no in-kernel clipping)
        ridx[b, 2 * R] = u0
        for r in range(R):
            if valid[b, r]:
                ridx[b, 2 * r] = lo_t[b, r] - u0
                ridx[b, 2 * r + 1] = hi_t[b, r] - u0
                rwgt[b, 2 * r] = w_t[b, r, 0]
                rwgt[b, 2 * r + 1] = w_t[b, r, 1]
    return jnp.asarray(ridx), jnp.asarray(rwgt), U


def _vmem_capacity_bytes():
    try:
        return int(pltpu.get_tpu_info().vmem_capacity_bytes)
    except Exception:
        return 64 << 20        # conservative fallback: v7x has 64 MiB VMEM per TensorCore


def _pick_row_block(Hl, Wl, C, N, cap_bytes):
    budget = max(cap_bytes // 6, 2 << 20)
    divisors = sorted((d for d in range(1, Hl + 1) if Hl % d == 0), reverse=True)
    ok = [d for d in divisors if (d * Wl) % 8 == 0 or d == Hl]

    def footprint(d):
        S = d * Wl
        return (4 * S * C * 4                      # low in + out, double buffered
                + S * 9 * C * 2                    # im2col slab (bf16)
                + (S + 2 * Wl + 16) * C * 4        # upsample buffer
                + 8 * S * C * 4)                   # f32 vreg/spill temporaries

    fit = [d for d in ok if footprint(d) <= budget] or [min(ok)]
    multi = [d for d in fit if N * (Hl // d) >= 2]  # keep >= 2 parallel grid points (v7x megacore)
    return max(multi) if multi else max(fit)


def fpn_layer(high_feat, low_feat, params, *, row_block=None):
    """high_feat, low_feat: NCHW float32 (coarse / fine level). Returns NCHW float32."""
    N, C, Hh, Wh = high_feat.shape
    Nl, Cl, Hl, Wl = low_feat.shape
    assert N == Nl and C == Cl
    assert Wl >= 2, "horizontal edge masks assume at least 2 columns"

    cap = _vmem_capacity_bytes()
    if row_block is None:
        row_block = _pick_row_block(Hl, Wl, C, N, cap)
    th = row_block
    assert Hl % th == 0
    nb = Hl // th
    assert nb == 1 or (th * Wl) % 8 == 0, "row blocks must be sublane aligned"
    S = th * Wl

    # glue: NCHW -> channels-last (C on the lane axis)
    high = jnp.transpose(high_feat, (0, 2, 3, 1))                     # (N, Hh, Wh, C)
    low = jnp.transpose(low_feat, (0, 2, 3, 1)).reshape(N, Hl * Wl, C)

    rc = _bilinear_matrix(Wl, Wh)                                     # (Wl, Wh) f32
    ridx, rwgt, U = _row_tap_tables(Hl, Hh, th)

    # bf16 MXU operands; accumulation stays f32 inside the kernel.
    w3 = params["w3"].reshape(9 * C, C).astype(jnp.bfloat16)          # im2col layout (tap*Cin, Cout)
    w1 = params["w1"].astype(jnp.bfloat16)

    # explicit, generation-aware scoped-VMEM budget
    tile_bytes = (2 * (2 * S * C * 4 + Hh * Wh * C * 4)               # low/out + coarse image, double buffered
                  + (9 * C * C + C * C) * 2 + 6 * C * 4 + Wl * Wh * 4
                  + U * Wl * C * 4 + (S + 2 * Wl + 16) * C * 4        # inter + upsample scratch
                  + S * 9 * C * 2                                     # im2col slab
                  + 8 * S * C * 4)                                    # f32 temporaries
    vmem_limit = int(min(max(2 * tile_bytes, 16 << 20), (cap * 3) // 4))

    out_flat = pl.pallas_call(
        _fpn_kernel,
        out_shape=jax.ShapeDtypeStruct((N, Hl * Wl, C), jnp.float32),
        grid_spec=pltpu.PrefetchScalarGridSpec(
            num_scalar_prefetch=1,                                    # row-tap indices + base rows -> SMEM
            grid=(N, nb),
            in_specs=[
                pl.BlockSpec(memory_space=pltpu.MemorySpace.SMEM),              # rwgt (whole array in SMEM)
                pl.BlockSpec((Wl, Wh), lambda n, b, tbl: (0, 0)),               # rc
                pl.BlockSpec((None, Hh, Wh, C), lambda n, b, tbl: (n, 0, 0, 0)),  # high (constant over b -> reused)
                pl.BlockSpec((None, S, C), lambda n, b, tbl: (n, b, 0)),          # low row block
                pl.BlockSpec((9 * C, C), lambda n, b, tbl: (0, 0)),             # w3 (bf16, im2col)
                pl.BlockSpec((1, C), lambda n, b, tbl: (0, 0)),                 # b3
                pl.BlockSpec((C, C), lambda n, b, tbl: (0, 0)),                 # w1 (bf16)
                pl.BlockSpec((1, C), lambda n, b, tbl: (0, 0)),                 # b1
                pl.BlockSpec((1, C), lambda n, b, tbl: (0, 0)),                 # gamma
                pl.BlockSpec((1, C), lambda n, b, tbl: (0, 0)),                 # beta
            ],
            out_specs=pl.BlockSpec((None, S, C), lambda n, b, tbl: (n, b, 0)),
            scratch_shapes=[
                pltpu.VMEM((U, Wl, C), jnp.float32),                  # W-upsampled coarse rows (block-local)
                pltpu.VMEM((S + 2 * Wl + 16, C), jnp.float32),        # upsampled rows + halo + junk pads
                pltpu.VMEM((S, 9 * C), jnp.bfloat16),                 # im2col slab
            ],
        ),
        compiler_params=pltpu.CompilerParams(
            dimension_semantics=("parallel", "parallel"),
            vmem_limit_bytes=vmem_limit,
        ),
    )(ridx, rwgt, rc, high, low, w3, params["b3"], w1,
      params["b1"], params["gamma"], params["beta"])

    return jnp.transpose(out_flat.reshape(N, Hl, Wl, C), (0, 3, 1, 2))


def init_params(key, dim):
    # w3 layout: (ky*3+kx, C_in, C_out) == torch Conv2d weight (C_out, C_in, 3, 3)
    #            permuted to (ky, kx, C_in, C_out) and flattened over taps.
    # w1 layout: (C_in, C_out) == torch 1x1 Conv2d weight (C_out, C_in, 1, 1) transposed.
    k1, k2, k3, k4 = jax.random.split(key, 4)
    bound3 = 1.0 / math.sqrt(dim * 9)
    bound1 = 1.0 / math.sqrt(dim)
    return {
        "w3": jax.random.uniform(k1, (9, dim, dim), jnp.float32, -bound3, bound3),
        "b3": jax.random.uniform(k2, (1, dim), jnp.float32, -bound3, bound3),
        "w1": jax.random.uniform(k3, (dim, dim), jnp.float32, -bound1, bound1),
        "b1": jax.random.uniform(k4, (1, dim), jnp.float32, -bound1, bound1),
        "gamma": jnp.ones((1, dim), jnp.float32),   # LayerNorm weight init
        "beta": jnp.zeros((1, dim), jnp.float32),   # LayerNorm bias init
    }


def _reference(high_feat, low_feat, params):
    # Pure-JAX (XLA, f32) re-implementation of FPNLayer.forward for a numeric check.
    N, C, Hh, Wh = high_feat.shape
    _, _, Hl, Wl = low_feat.shape
    mr = _bilinear_matrix(Hl, Hh)
    mc = _bilinear_matrix(Wl, Wh)
    up = jnp.einsum('hu,wv,ncuv->nchw', mr, mc, high_feat)
    upp = jnp.pad(up, ((0, 0), (0, 0), (1, 1), (1, 1)))
    w3 = params["w3"].reshape(3, 3, C, C)
    acc = low_feat + params["b3"].reshape(1, C, 1, 1)
    for ky in range(3):
        for kx in range(3):
            win = upp[:, :, ky:ky + Hl, kx:kx + Wl]
            acc = acc + jnp.einsum('nchw,cd->ndhw', win, w3[ky, kx])
    y = jnp.einsum('nchw,cd->ndhw', acc, params["w1"]) + params["b1"].reshape(1, C, 1, 1)
    y = 0.5 * y * (1.0 + _erf(y * _INV_SQRT2))
    mu = y.mean(axis=1, keepdims=True)
    var = ((y - mu) ** 2).mean(axis=1, keepdims=True)
    yn = (y - mu) * jax.lax.rsqrt(var + _LN_EPS)
    return yn * params["gamma"].reshape(1, C, 1, 1) + params["beta"].reshape(1, C, 1, 1)


if __name__ == "__main__":
    key = jax.random.PRNGKey(0)
    kp, kh, kl = jax.random.split(key, 3)

    dim = 128   # lane-dense channel count (multiple of 128); module default is 256
    N = 2
    high_feat = jax.random.normal(kh, (N, dim, 8, 8), jnp.float32)    # coarse level, NCHW
    low_feat = jax.random.normal(kl, (N, dim, 16, 16), jnp.float32)   # fine level, NCHW

    params = init_params(kp, dim)

    # 2 row blocks x 2 images = 4 parallel grid points (exercises the halo path too)
    out = fpn_layer(high_feat, low_feat, params, row_block=8)
    out = jax.block_until_ready(out)
    assert out.shape == (N, dim, 16, 16)
    assert bool(jnp.all(jnp.isfinite(out)))

    # cross-check against a pure-JAX f32 reference (kernel uses bf16 MXU operands)
    ref = jax.block_until_ready(_reference(high_feat, low_feat, params))
    max_err = float(jnp.max(jnp.abs(out - ref)))
    assert max_err < 0.2, f"kernel/reference mismatch: max abs err = {max_err}"

    print("KERNEL_OK")
</pallas_src>

<mosaic_0001>
module attributes {stable_mosaic.version = 11 : i64} {
  func.func @_fpn_kernel(%arg0: i32, %arg1: i32, %arg2: memref<2x21xi32, #tpu.memory_space<smem>>, %arg3: memref<2x20xf32, #tpu.memory_space<smem>>, %arg4: memref<16x8xf32, #tpu.memory_space<vmem>>, %arg5: memref<1x8x8x128xf32, #tpu.memory_space<vmem>>, %arg6: memref<1x128x128xf32, #tpu.memory_space<vmem>>, %arg7: memref<1152x128xbf16, #tpu.memory_space<vmem>>, %arg8: memref<1x128xf32, #tpu.memory_space<vmem>>, %arg9: memref<128x128xbf16, #tpu.memory_space<vmem>>, %arg10: memref<1x128xf32, #tpu.memory_space<vmem>>, %arg11: memref<1x128xf32, #tpu.memory_space<vmem>>, %arg12: memref<1x128xf32, #tpu.memory_space<vmem>>, %arg13: memref<1x128x128xf32, #tpu.memory_space<vmem>>, %arg14: memref<5x16x128xf32, #tpu.memory_space<vmem>>, %arg15: memref<176x128xf32, #tpu.memory_space<vmem>>, %arg16: memref<128x1152xbf16, #tpu.memory_space<vmem>>) attributes {dimension_semantics = [#tpu.dimension_semantics<parallel>, #tpu.dimension_semantics<parallel>], iteration_bounds = array<i64: 2, 2>, scalar_prefetch = 1 : i64, scratch_operands = 3 : i64, tpu.core_type = #tpu.core_type<tc>, window_params = [{transform_indices = @transform_0, window_bounds = array<i64: 2, 20>}, {pipeline_mode = #tpu.pipeline_mode<synchronous>, transform_indices = @transform_1, window_bounds = array<i64: 16, 8>}, {transform_indices = @transform_2, window_bounds = array<i64: 1, 8, 8, 128>}, {transform_indices = @transform_3, window_bounds = array<i64: 1, 128, 128>}, {pipeline_mode = #tpu.pipeline_mode<synchronous>, transform_indices = @transform_4, window_bounds = array<i64: 1152, 128>}, {pipeline_mode = #tpu.pipeline_mode<synchronous>, transform_indices = @transform_5, window_bounds = array<i64: 1, 128>}, {pipeline_mode = #tpu.pipeline_mode<synchronous>, transform_indices = @transform_6, window_bounds = array<i64: 128, 128>}, {pipeline_mode = #tpu.pipeline_mode<synchronous>, transform_indices = @transform_7, window_bounds = array<i64: 1, 128>}, {pipeline_mode = #tpu.pipeline_mode<synchronous>, transform_indices = @transform_8, window_bounds = array<i64: 1, 128>}, {pipeline_mode = #tpu.pipeline_mode<synchronous>, transform_indices = @transform_9, window_bounds = array<i64: 1, 128>}, {transform_indices = @transform_10, window_bounds = array<i64: 1, 128, 128>}]} {
    %c0 = arith.constant 0 : index
    %c0_0 = arith.constant 0 : index
    %0 = vector.load %arg4[%c0, %c0_0] : memref<16x8xf32, #tpu.memory_space<vmem>>, vector<16x8xf32>
    %1 = arith.index_cast %arg1 : i32 to index
    %c20 = arith.constant 20 : index
    %2 = memref.load %arg2[%1, %c20] : memref<2x21xi32, #tpu.memory_space<smem>>
    %c0_i32 = arith.constant 0 : i32
    %3 = arith.addi %2, %c0_i32 : i32
    %c0_1 = arith.constant 0 : index
    %4 = arith.index_cast %3 : i32 to index
    %c0_2 = arith.constant 0 : index
    %c0_3 = arith.constant 0 : index
    %5 = vector.load %arg5[%c0_1, %4, %c0_2, %c0_3] : memref<1x8x8x128xf32, #tpu.memory_space<vmem>>, vector<1x1x8x128xf32>
    %6 = vector.shape_cast %5 : vector<1x1x8x128xf32> to vector<8x128xf32>
    %cst = arith.constant dense<0.000000e+00> : vector<16x128xf32>
    %7 = tpu.matmul %0, %6, %cst {dimension_numbers = #tpu.dot_dimension_numbers<[1], [0], [0], [1], [0, 0, 1, 1], [], []>} : vector<16x8xf32>, vector<8x128xf32>, vector<16x128xf32> -> vector<16x128xf32>
    %c0_4 = arith.constant 0 : index
    %c0_5 = arith.constant 0 : index
    %c0_6 = arith.constant 0 : index
    %8 = vector.load %arg14[%c0_4, %c0_5, %c0_6] : memref<5x16x128xf32, #tpu.memory_space<vmem>>, vector<1x16x128xf32>
    %9 = vector.shape_cast %8 : vector<1x16x128xf32> to vector<16x128xf32>
    %10 = vector.shape_cast %7 : vector<16x128xf32> to vector<1x16x128xf32>
    tpu.vector_store %arg14[%c0_4, %c0_5, %c0_6], %10 {strides = array<i32>} : memref<5x16x128xf32, #tpu.memory_space<vmem>>, vector<1x16x128xf32>,
    %c1_i32 = arith.constant 1 : i32
    %11 = arith.addi %2, %c1_i32 : i32
    %c0_7 = arith.constant 0 : index
    %12 = arith.index_cast %11 : i32 to index
    %c0_8 = arith.constant 0 : index
    %c0_9 = arith.constant 0 : index
    %13 = vector.load %arg5[%c0_7, %12, %c0_8, %c0_9] : memref<1x8x8x128xf32, #tpu.memory_space<vmem>>, vector<1x1x8x128xf32>
    %14 = vector.shape_cast %13 : vector<1x1x8x128xf32> to vector<8x128xf32>
    %cst_10 = arith.constant dense<0.000000e+00> : vector<16x128xf32>
    %15 = tpu.matmul %0, %14, %cst_10 {dimension_numbers = #tpu.dot_dimension_numbers<[1], [0], [0], [1], [0, 0, 1, 1], [], []>} : vector<16x8xf32>, vector<8x128xf32>, vector<16x128xf32> -> vector<16x128xf32>
    %c1 = arith.constant 1 : index
    %c0_11 = arith.constant 0 : index
    %c0_12 = arith.constant 0 : index
    %16 = vector.load %arg14[%c1, %c0_11, %c0_12] : memref<5x16x128xf32, #tpu.memory_space<vmem>>, vector<1x16x128xf32>
    %17 = vector.shape_cast %16 : vector<1x16x128xf32> to vector<16x128xf32>
    %18 = vector.shape_cast %15 : vector<16x128xf32> to vector<1x16x128xf32>
    tpu.vector_store %arg14[%c1, %c0_11, %c0_12], %18 {strides = array<i32>} : memref<5x16x128xf32, #tpu.memory_space<vmem>>, vector<1x16x128xf32>,
    %c2_i32 = arith.constant 2 : i32
    %19 = arith.addi %2, %c2_i32 : i32
    %c0_13 = arith.constant 0 : index
    %20 = arith.index_cast %19 : i32 to index
    %c0_14 = arith.constant 0 : index
    %c0_15 = arith.constant 0 : index
    %21 = vector.load %arg5[%c0_13, %20, %c0_14, %c0_15] : memref<1x8x8x128xf32, #tpu.memory_space<vmem>>, vector<1x1x8x128xf32>
    %22 = vector.shape_cast %21 : vector<1x1x8x128xf32> to vector<8x128xf32>
    %cst_16 = arith.constant dense<0.000000e+00> : vector<16x128xf32>
    %23 = tpu.matmul %0, %22, %cst_16 {dimension_numbers = #tpu.dot_dimension_numbers<[1], [0], [0], [1], [0, 0, 1, 1], [], []>} : vector<16x8xf32>, vector<8x128xf32>, vector<16x128xf32> -> vector<16x128xf32>
    %c2 = arith.constant 2 : index
    %c0_17 = arith.constant 0 : index
    %c0_18 = arith.constant 0 : index
    %24 = vector.load %arg14[%c2, %c0_17, %c0_18] : memref<5x16x128xf32, #tpu.memory_space<vmem>>, vector<1x16x128xf32>
    %25 = vector.shape_cast %24 : vector<1x16x128xf32> to vector<16x128xf32>
    %26 = vector.shape_cast %23 : vector<16x128xf32> to vector<1x16x128xf32>
    tpu.vector_store %arg14[%c2, %c0_17, %c0_18], %26 {strides = array<i32>} : memref<5x16x128xf32, #tpu.memory_space<vmem>>, vector<1x16x128xf32>,
    %c3_i32 = arith.constant 3 : i32
    %27 = arith.addi %2, %c3_i32 : i32
    %c0_19 = arith.constant 0 : index
    %28 = arith.index_cast %27 : i32 to index
    %c0_20 = arith.constant 0 : index
    %c0_21 = arith.constant 0 : index
    %29 = vector.load %arg5[%c0_19, %28, %c0_20, %c0_21] : memref<1x8x8x128xf32, #tpu.memory_space<vmem>>, vector<1x1x8x128xf32>
    %30 = vector.shape_cast %29 : vector<1x1x8x128xf32> to vector<8x128xf32>
    %cst_22 = arith.constant dense<0.000000e+00> : vector<16x128xf32>
    %31 = tpu.matmul %0, %30, %cst_22 {dimension_numbers = #tpu.dot_dimension_numbers<[1], [0], [0], [1], [0, 0, 1, 1], [], []>} : vector<16x8xf32>, vector<8x128xf32>, vector<16x128xf32> -> vector<16x128xf32>
    %c3 = arith.constant 3 : index
    %c0_23 = arith.constant 0 : index
    %c0_24 = arith.constant 0 : index
    %32 = vector.load %arg14[%c3, %c0_23, %c0_24] : memref<5x16x128xf32, #tpu.memory_space<vmem>>, vector<1x16x128xf32>
    %33 = vector.shape_cast %32 : vector<1x16x128xf32> to vector<16x128xf32>
    %34 = vector.shape_cast %31 : vector<16x128xf32> to vector<1x16x128xf32>
    tpu.vector_store %arg14[%c3, %c0_23, %c0_24], %34 {strides = array<i32>} : memref<5x16x128xf32, #tpu.memory_space<vmem>>, vector<1x16x128xf32>,
    %c4_i32 = arith.constant 4 : i32
    %35 = arith.addi %2, %c4_i32 : i32
    %c0_25 = arith.constant 0 : index
    %36 = arith.index_cast %35 : i32 to index
    %c0_26 = arith.constant 0 : index
    %c0_27 = arith.constant 0 : index
    %37 = vector.load %arg5[%c0_25, %36, %c0_26, %c0_27] : memref<1x8x8x128xf32, #tpu.memory_space<vmem>>, vector<1x1x8x128xf32>
    %38 = vector.shape_cast %37 : vector<1x1x8x128xf32> to vector<8x128xf32>
    %cst_28 = arith.constant dense<0.000000e+00> : vector<16x128xf32>
    %39 = tpu.matmul %0, %38, %cst_28 {dimension_numbers = #tpu.dot_dimension_numbers<[1], [0], [0], [1], [0, 0, 1, 1], [], []>} : vector<16x8xf32>, vector<8x128xf32>, vector<16x128xf32> -> vector<16x128xf32>
    %c4 = arith.constant 4 : index
    %c0_29 = arith.constant 0 : index
    %c0_30 = arith.constant 0 : index
    %40 = vector.load %arg14[%c4, %c0_29, %c0_30] : memref<5x16x128xf32, #tpu.memory_space<vmem>>, vector<1x16x128xf32>
    %41 = vector.shape_cast %40 : vector<1x16x128xf32> to vector<16x128xf32>
    %42 = vector.shape_cast %39 : vector<16x128xf32> to vector<1x16x128xf32>
    tpu.vector_store %arg14[%c4, %c0_29, %c0_30], %42 {strides = array<i32>} : memref<5x16x128xf32, #tpu.memory_space<vmem>>, vector<1x16x128xf32>,
    %43 = arith.index_cast %arg1 : i32 to index
    %c0_31 = arith.constant 0 : index
    %44 = memref.load %arg2[%43, %c0_31] : memref<2x21xi32, #tpu.memory_space<smem>>
    %45 = arith.index_cast %arg1 : i32 to index
    %c1_32 = arith.constant 1 : index
    %46 = memref.load %arg2[%45, %c1_32] : memref<2x21xi32, #tpu.memory_space<smem>>
    %47 = arith.index_cast %arg1 : i32 to index
    %c0_33 = arith.constant 0 : index
    %48 = memref.load %arg3[%47, %c0_33] : memref<2x20xf32, #tpu.memory_space<smem>>
    %49 = arith.index_cast %arg1 : i32 to index
    %c1_34 = arith.constant 1 : index
    %50 = memref.load %arg3[%49, %c1_34] : memref<2x20xf32, #tpu.memory_space<smem>>
    %51 = arith.index_cast %44 : i32 to index
    %c0_35 = arith.constant 0 : index
    %c0_36 = arith.constant 0 : index
    %52 = vector.load %arg14[%51, %c0_35, %c0_36] : memref<5x16x128xf32, #tpu.memory_space<vmem>>, vector<1x16x128xf32>
    %53 = vector.shape_cast %52 : vector<1x16x128xf32> to vector<16x128xf32>
    %54 = vector.broadcast %48 : f32 to vector<16x128xf32>
    %55 = arith.mulf %54, %53 : vector<16x128xf32>
    %56 = arith.index_cast %46 : i32 to index
    %c0_37 = arith.constant 0 : index
    %c0_38 = arith.constant 0 : index
    %57 = vector.load %arg14[%56, %c0_37, %c0_38] : memref<5x16x128xf32, #tpu.memory_space<vmem>>, vector<1x16x128xf32>
    %58 = vector.shape_cast %57 : vector<1x16x128xf32> to vector<16x128xf32>
    %59 = vector.broadcast %50 : f32 to vector<16x128xf32>
    %60 = arith.mulf %59, %58 : vector<16x128xf32>
    %61 = arith.addf %55, %60 : vector<16x128xf32>
    %c8 = arith.constant 8 : index
    %c0_39 = arith.constant 0 : index
    %62 = vector.load %arg15[%c8, %c0_39] : memref<176x128xf32, #tpu.memory_space<vmem>>, vector<16x128xf32>
    tpu.vector_store %arg15[%c8, %c0_39], %61 {strides = array<i32>} : memref<176x128xf32, #tpu.memory_space<vmem>>, vector<16x128xf32>,
    %63 = arith.index_cast %arg1 : i32 to index
    %c2_40 = arith.constant 2 : index
    %64 = memref.load %arg2[%63, %c2_40] : memref<2x21xi32, #tpu.memory_space<smem>>
    %65 = arith.index_cast %arg1 : i32 to index
    %c3_41 = arith.constant 3 : index
    %66 = memref.load %arg2[%65, %c3_41] : memref<2x21xi32, #tpu.memory_space<smem>>
    %67 = arith.index_cast %arg1 : i32 to index
    %c2_42 = arith.constant 2 : index
    %68 = memref.load %arg3[%67, %c2_42] : memref<2x20xf32, #tpu.memory_space<smem>>
    %69 = arith.index_cast %arg1 : i32 to index
    %c3_43 = arith.constant 3 : index
    %70 = memref.load %arg3[%69, %c3_43] : memref<2x20xf32, #tpu.memory_space<smem>>
    %71 = arith.index_cast %64 : i32 to index
    %c0_44 = arith.constant 0 : index
    %c0_45 = arith.constant 0 : index
    %72 = vector.load %arg14[%71, %c0_44, %c0_45] : memref<5x16x128xf32, #tpu.memory_space<vmem>>, vector<1x16x128xf32>
    %73 = vector.shape_cast %72 : vector<1x16x128xf32> to vector<16x128xf32>
    %74 = vector.broadcast %68 : f32 to vector<16x128xf32>
    %75 = arith.mulf %74, %73 : vector<16x128xf32>
    %76 = arith.index_cast %66 : i32 to index
    %c0_46 = arith.constant 0 : index
    %c0_47 = arith.constant 0 : index
    %77 = vector.load %arg14[%76, %c0_46, %c0_47] : memref<5x16x128xf32, #tpu.memory_space<vmem>>, vector<1x16x128xf32>
    %78 = vector.shape_cast %77 : vector<1x16x128xf32> to vector<16x128xf32>
    %79 = vector.broadcast %70 : f32 to vector<16x128xf32>
    %80 = arith.mulf %79, %78 : vector<16x128xf32>
    %81 = arith.addf %75, %80 : vector<16x128xf32>
    %c24 = arith.constant 24 : index
    %c0_48 = arith.constant 0 : index
    %82 = vector.load %arg15[%c24, %c0_48] : memref<176x128xf32, #tpu.memory_space<vmem>>, vector<16x128xf32>
    tpu.vector_store %arg15[%c24, %c0_48], %81 {strides = array<i32>} : memref<176x128xf32, #tpu.memory_space<vmem>>, vector<16x128xf32>,
    %83 = arith.index_cast %arg1 : i32 to index
    %c4_49 = arith.constant 4 : index
    %84 = memref.load %arg2[%83, %c4_49] : memref<2x21xi32, #tpu.memory_space<smem>>
    %85 = arith.index_cast %arg1 : i32 to index
    %c5 = arith.constant 5 : index
    %86 = memref.load %arg2[%85, %c5] : memref<2x21xi32, #tpu.memory_space<smem>>
    %87 = arith.index_cast %arg1 : i32 to index
    %c4_50 = arith.constant 4 : index
    %88 = memref.load %arg3[%87, %c4_50] : memref<2x20xf32, #tpu.memory_space<smem>>
    %89 = arith.index_cast %arg1 : i32 to index
    %c5_51 = arith.constant 5 : index
    %90 = memref.load %arg3[%89, %c5_51] : memref<2x20xf32, #tpu.memory_space<smem>>
    %91 = arith.index_cast %84 : i32 to index
    %c0_52 = arith.constant 0 : index
    %c0_53 = arith.constant 0 : index
    %92 = vector.load %arg14[%91, %c0_52, %c0_53] : memref<5x16x128xf32, #tpu.memory_space<vmem>>, vector<1x16x128xf32>
    %93 = vector.shape_cast %92 : vector<1x16x128xf32> to vector<16x128xf32>
    %94 = vector.broadcast %88 : f32 to vector<16x128xf32>
    %95 = arith.mulf %94, %93 : vector<16x128xf32>
    %96 = arith.index_cast %86 : i32 to index
    %c0_54 = arith.constant 0 : index
    %c0_55 = arith.constant 0 : index
    %97 = vector.load %arg14[%96, %c0_54, %c0_55] : memref<5x16x128xf32, #tpu.memory_space<vmem>>, vector<1x16x128xf32>
    %98 = vector.shape_cast %97 : vector<1x16x128xf32> to vector<16x128xf32>
    %99 = vector.broadcast %90 : f32 to vector<16x128xf32>
    %100 = arith.mulf %99, %98 : vector<16x128xf32>
    %101 = arith.addf %95, %100 : vector<16x128xf32>
    %c40 = arith.constant 40 : index
    %c0_56 = arith.constant 0 : index
    %102 = vector.load %arg15[%c40, %c0_56] : memref<176x128xf32, #tpu.memory_space<vmem>>, vector<16x128xf32>
    tpu.vector_store %arg15[%c40, %c0_56], %101 {strides = array<i32>} : memref<176x128xf32, #tpu.memory_space<vmem>>, vector<16x128xf32>,
    %103 = arith.index_cast %arg1 : i32 to index
    %c6 = arith.constant 6 : index
    %104 = memref.load %arg2[%103, %c6] : memref<2x21xi32, #tpu.memory_space<smem>>
    %105 = arith.index_cast %arg1 : i32 to index
    %c7 = arith.constant 7 : index
    %106 = memref.load %arg2[%105, %c7] : memref<2x21xi32, #tpu.memory_space<smem>>
    %107 = arith.index_cast %arg1 : i32 to index
    %c6_57 = arith.constant 6 : index
    %108 = memref.load %arg3[%107, %c6_57] : memref<2x20xf32, #tpu.memory_space<smem>>
    %109 = arith.index_cast %arg1 : i32 to index
    %c7_58 = arith.constant 7 : index
    %110 = memref.load %arg3[%109, %c7_58] : memref<2x20xf32, #tpu.memory_space<smem>>
    %111 = arith.index_cast %104 : i32 to index
    %c0_59 = arith.constant 0 : index
    %c0_60 = arith.constant 0 : index
    %112 = vector.load %arg14[%111, %c0_59, %c0_60] : memref<5x16x128xf32, #tpu.memory_space<vmem>>, vector<1x16x128xf32>
    %113 = vector.shape_cast %112 : vector<1x16x128xf32> to vector<16x128xf32>
    %114 = vector.broadcast %108 : f32 to vector<16x128xf32>
    %115 = arith.mulf %114, %113 : vector<16x128xf32>
    %116 = arith.index_cast %106 : i32 to index
    %c0_61 = arith.constant 0 : index
    %c0_62 = arith.constant 0 : index
    %117 = vector.load %arg14[%116, %c0_61, %c0_62] : memref<5x16x128xf32, #tpu.memory_space<vmem>>, vector<1x16x128xf32>
    %118 = vector.shape_cast %117 : vector<1x16x128xf32> to vector<16x128xf32>
    %119 = vector.broadcast %110 : f32 to vector<16x128xf32>
    %120 = arith.mulf %119, %118 : vector<16x128xf32>
    %121 = arith.addf %115, %120 : vector<16x128xf32>
    %c56 = arith.constant 56 : index
    %c0_63 = arith.constant 0 : index
    %122 = vector.load %arg15[%c56, %c0_63] : memref<176x128xf32, #tpu.memory_space<vmem>>, vector<16x128xf32>
    tpu.vector_store %arg15[%c56, %c0_63], %121 {strides = array<i32>} : memref<176x128xf32, #tpu.memory_space<vmem>>, vector<16x128xf32>,
    %123 = arith.index_cast %arg1 : i32 to index
    %c8_64 = arith.constant 8 : index
    %124 = memref.load %arg2[%123, %c8_64] : memref<2x21xi32, #tpu.memory_space<smem>>
    %125 = arith.index_cast %arg1 : i32 to index
    %c9 = arith.constant 9 : index
    %126 = memref.load %arg2[%125, %c9] : memref<2x21xi32, #tpu.memory_space<smem>>
    %127 = arith.index_cast %arg1 : i32 to index
    %c8_65 = arith.constant 8 : index
    %128 = memref.load %arg3[%127, %c8_65] : memref<2x20xf32, #tpu.memory_space<smem>>
    %129 = arith.index_cast %arg1 : i32 to index
    %c9_66 = arith.constant 9 : index
    %130 = memref.load %arg3[%129, %c9_66] : memref<2x20xf32, #tpu.memory_space<smem>>
    %131 = arith.index_cast %124 : i32 to index
    %c0_67 = arith.constant 0 : index
    %c0_68 = arith.constant 0 : index
    %132 = vector.load %arg14[%131, %c0_67, %c0_68] : memref<5x16x128xf32, #tpu.memory_space<vmem>>, vector<1x16x128xf32>
    %133 = vector.shape_cast %132 : vector<1x16x128xf32> to vector<16x128xf32>
    %134 = vector.broadcast %128 : f32 to vector<16x128xf32>
    %135 = arith.mulf %134, %133 : vector<16x128xf32>
    %136 = arith.index_cast %126 : i32 to index
    %c0_69 = arith.constant 0 : index
    %c0_70 = arith.constant 0 : index
    %137 = vector.load %arg14[%136, %c0_69, %c0_70] : memref<5x16x128xf32, #tpu.memory_space<vmem>>, vector<1x16x128xf32>
    %138 = vector.shape_cast %137 : vector<1x16x128xf32> to vector<16x128xf32>
    %139 = vector.broadcast %130 : f32 to vector<16x128xf32>
    %140 = arith.mulf %139, %138 : vector<16x128xf32>
    %141 = arith.addf %135, %140 : vector<16x128xf32>
    %c72 = arith.constant 72 : index
    %c0_71 = arith.constant 0 : index
    %142 = vector.load %arg15[%c72, %c0_71] : memref<176x128xf32, #tpu.memory_space<vmem>>, vector<16x128xf32>
    tpu.vector_store %arg15[%c72, %c0_71], %141 {strides = array<i32>} : memref<176x128xf32, #tpu.memory_space<vmem>>, vector<16x128xf32>,
    %143 = arith.index_cast %arg1 : i32 to index
    %c10 = arith.constant 10 : index
    %144 = memref.load %arg2[%143, %c10] : memref<2x21xi32, #tpu.memory_space<smem>>
    %145 = arith.index_cast %arg1 : i32 to index
    %c11 = arith.constant 11 : index
    %146 = memref.load %arg2[%145, %c11] : memref<2x21xi32, #tpu.memory_space<smem>>
    %147 = arith.index_cast %arg1 : i32 to index
    %c10_72 = arith.constant 10 : index
    %148 = memref.load %arg3[%147, %c10_72] : memref<2x20xf32, #tpu.memory_space<smem>>
    %149 = arith.index_cast %arg1 : i32 to index
    %c11_73 = arith.constant 11 : index
    %150 = memref.load %arg3[%149, %c11_73] : memref<2x20xf32, #tpu.memory_space<smem>>
    %151 = arith.index_cast %144 : i32 to index
    %c0_74 = arith.constant 0 : index
    %c0_75 = arith.constant 0 : index
    %152 = vector.load %arg14[%151, %c0_74, %c0_75] : memref<5x16x128xf32, #tpu.memory_space<vmem>>, vector<1x16x128xf32>
    %153 = vector.shape_cast %152 : vector<1x16x128xf32> to vector<16x128xf32>
    %154 = vector.broadcast %148 : f32 to vector<16x128xf32>
    %155 = arith.mulf %154, %153 : vector<16x128xf32>
    %156 = arith.index_cast %146 : i32 to index
    %c0_76 = arith.constant 0 : index
    %c0_77 = arith.constant 0 : index
    %157 = vector.load %arg14[%156, %c0_76, %c0_77] : memref<5x16x128xf32, #tpu.memory_space<vmem>>, vector<1x16x128xf32>
    %158 = vector.shape_cast %157 : vector<1x16x128xf32> to vector<16x128xf32>
    %159 = vector.broadcast %150 : f32 to vector<16x128xf32>
    %160 = arith.mulf %159, %158 : vector<16x128xf32>
    %161 = arith.addf %155, %160 : vector<16x128xf32>
    %c88 = arith.constant 88 : index
    %c0_78 = arith.constant 0 : index
    %162 = vector.load %arg15[%c88, %c0_78] : memref<176x128xf32, #tpu.memory_space<vmem>>, vector<16x128xf32>
    tpu.vector_store %arg15[%c88, %c0_78], %161 {strides = array<i32>} : memref<176x128xf32, #tpu.memory_space<vmem>>, vector<16x128xf32>,
    %163 = arith.index_cast %arg1 : i32 to index
    %c12 = arith.constant 12 : index
    %164 = memref.load %arg2[%163, %c12] : memref<2x21xi32, #tpu.memory_space<smem>>
    %165 = arith.index_cast %arg1 : i32 to index
    %c13 = arith.constant 13 : index
    %166 = memref.load %arg2[%165, %c13] : memref<2x21xi32, #tpu.memory_space<smem>>
    %167 = arith.index_cast %arg1 : i32 to index
    %c12_79 = arith.constant 12 : index
    %168 = memref.load %arg3[%167, %c12_79] : memref<2x20xf32, #tpu.memory_space<smem>>
    %169 = arith.index_cast %arg1 : i32 to index
    %c13_80 = arith.constant 13 : index
    %170 = memref.load %arg3[%169, %c13_80] : memref<2x20xf32, #tpu.memory_space<smem>>
    %171 = arith.index_cast %164 : i32 to index
    %c0_81 = arith.constant 0 : index
    %c0_82 = arith.constant 0 : index
    %172 = vector.load %arg14[%171, %c0_81, %c0_82] : memref<5x16x128xf32, #tpu.memory_space<vmem>>, vector<1x16x128xf32>
    %173 = vector.shape_cast %172 : vector<1x16x128xf32> to vector<16x128xf32>
    %174 = vector.broadcast %168 : f32 to vector<16x128xf32>
    %175 = arith.mulf %174, %173 : vector<16x128xf32>
    %176 = arith.index_cast %166 : i32 to index
    %c0_83 = arith.constant 0 : index
    %c0_84 = arith.constant 0 : index
    %177 = vector.load %arg14[%176, %c0_83, %c0_84] : memref<5x16x128xf32, #tpu.memory_space<vmem>>, vector<1x16x128xf32>
    %178 = vector.shape_cast %177 : vector<1x16x128xf32> to vector<16x128xf32>
    %179 = vector.broadcast %170 : f32 to vector<16x128xf32>
    %180 = arith.mulf %179, %178 : vector<16x128xf32>
    %181 = arith.addf %175, %180 : vector<16x128xf32>
    %c104 = arith.constant 104 : index
    %c0_85 = arith.constant 0 : index
    %182 = vector.load %arg15[%c104, %c0_85] : memref<176x128xf32, #tpu.memory_space<vmem>>, vector<16x128xf32>
    tpu.vector_store %arg15[%c104, %c0_85], %181 {strides = array<i32>} : memref<176x128xf32, #tpu.memory_space<vmem>>, vector<16x128xf32>,
    %183 = arith.index_cast %arg1 : i32 to index
    %c14 = arith.constant 14 : index
    %184 = memref.load %arg2[%183, %c14] : memref<2x21xi32, #tpu.memory_space<smem>>
    %185 = arith.index_cast %arg1 : i32 to index
    %c15 = arith.constant 15 : index
    %186 = memref.load %arg2[%185, %c15] : memref<2x21xi32, #tpu.memory_space<smem>>
    %187 = arith.index_cast %arg1 : i32 to index
    %c14_86 = arith.constant 14 : index
    %188 = memref.load %arg3[%187, %c14_86] : memref<2x20xf32, #tpu.memory_space<smem>>
    %189 = arith.index_cast %arg1 : i32 to index
    %c15_87 = arith.constant 15 : index
    %190 = memref.load %arg3[%189, %c15_87] : memref<2x20xf32, #tpu.memory_space<smem>>
    %191 = arith.index_cast %184 : i32 to index
    %c0_88 = arith.constant 0 : index
    %c0_89 = arith.constant 0 : index
    %192 = vector.load %arg14[%191, %c0_88, %c0_89] : memref<5x16x128xf32, #tpu.memory_space<vmem>>, vector<1x16x128xf32>
    %193 = vector.shape_cast %192 : vector<1x16x128xf32> to vector<16x128xf32>
    %194 = vector.broadcast %188 : f32 to vector<16x128xf32>
    %195 = arith.mulf %194, %193 : vector<16x128xf32>
    %196 = arith.index_cast %186 : i32 to index
    %c0_90 = arith.constant 0 : index
    %c0_91 = arith.constant 0 : index
    %197 = vector.load %arg14[%196, %c0_90, %c0_91] : memref<5x16x128xf32, #tpu.memory_space<vmem>>, vector<1x16x128xf32>
    %198 = vector.shape_cast %197 : vector<1x16x128xf32> to vector<16x128xf32>
    %199 = vector.broadcast %190 : f32 to vector<16x128xf32>
    %200 = arith.mulf %199, %198 : vector<16x128xf32>
    %201 = arith.addf %195, %200 : vector<16x128xf32>
    %c120 = arith.constant 120 : index
    %c0_92 = arith.constant 0 : index
    %202 = vector.load %arg15[%c120, %c0_92] : memref<176x128xf32, #tpu.memory_space<vmem>>, vector<16x128xf32>
    tpu.vector_store %arg15[%c120, %c0_92], %201 {strides = array<i32>} : memref<176x128xf32, #tpu.memory_space<vmem>>, vector<16x128xf32>,
    %203 = arith.index_cast %arg1 : i32 to index
    %c16 = arith.constant 16 : index
    %204 = memref.load %arg2[%203, %c16] : memref<2x21xi32, #tpu.memory_space<smem>>
    %205 = arith.index_cast %arg1 : i32 to index
    %c17 = arith.constant 17 : index
    %206 = memref.load %arg2[%205, %c17] : memref<2x21xi32, #tpu.memory_space<smem>>
    %207 = arith.index_cast %arg1 : i32 to index
    %c16_93 = arith.constant 16 : index
    %208 = memref.load %arg3[%207, %c16_93] : memref<2x20xf32, #tpu.memory_space<smem>>
    %209 = arith.index_cast %arg1 : i32 to index
    %c17_94 = arith.constant 17 : index
    %210 = memref.load %arg3[%209, %c17_94] : memref<2x20xf32, #tpu.memory_space<smem>>
    %211 = arith.index_cast %204 : i32 to index
    %c0_95 = arith.constant 0 : index
    %c0_96 = arith.constant 0 : index
    %212 = vector.load %arg14[%211, %c0_95, %c0_96] : memref<5x16x128xf32, #tpu.memory_space<vmem>>, vector<1x16x128xf32>
    %213 = vector.shape_cast %212 : vector<1x16x128xf32> to vector<16x128xf32>
    %214 = vector.broadcast %208 : f32 to vector<16x128xf32>
    %215 = arith.mulf %214, %213 : vector<16x128xf32>
    %216 = arith.index_cast %206 : i32 to index
    %c0_97 = arith.constant 0 : index
    %c0_98 = arith.constant 0 : index
    %217 = vector.load %arg14[%216, %c0_97, %c0_98] : memref<5x16x128xf32, #tpu.memory_space<vmem>>, vector<1x16x128xf32>
    %218 = vector.shape_cast %217 : vector<1x16x128xf32> to vector<16x128xf32>
    %219 = vector.broadcast %210 : f32 to vector<16x128xf32>
    %220 = arith.mulf %219, %218 : vector<16x128xf32>
    %221 = arith.addf %215, %220 : vector<16x128xf32>
    %c136 = arith.constant 136 : index
    %c0_99 = arith.constant 0 : index
    %222 = vector.load %arg15[%c136, %c0_99] : memref<176x128xf32, #tpu.memory_space<vmem>>, vector<16x128xf32>
    tpu.vector_store %arg15[%c136, %c0_99], %221 {strides = array<i32>} : memref<176x128xf32, #tpu.memory_space<vmem>>, vector<16x128xf32>,
    %223 = arith.index_cast %arg1 : i32 to index
    %c18 = arith.constant 18 : index
    %224 = memref.load %arg2[%223, %c18] : memref<2x21xi32, #tpu.memory_space<smem>>
    %225 = arith.index_cast %arg1 : i32 to index
    %c19 = arith.constant 19 : index
    %226 = memref.load %arg2[%225, %c19] : memref<2x21xi32, #tpu.memory_space<smem>>
    %227 = arith.index_cast %arg1 : i32 to index
    %c18_100 = arith.constant 18 : index
    %228 = memref.load %arg3[%227, %c18_100] : memref<2x20xf32, #tpu.memory_space<smem>>
    %229 = arith.index_cast %arg1 : i32 to index
    %c19_101 = arith.constant 19 : index
    %230 = memref.load %arg3[%229, %c19_101] : memref<2x20xf32, #tpu.memory_space<smem>>
    %231 = arith.index_cast %224 : i32 to index
    %c0_102 = arith.constant 0 : index
    %c0_103 = arith.constant 0 : index
    %232 = vector.load %arg14[%231, %c0_102, %c0_103] : memref<5x16x128xf32, #tpu.memory_space<vmem>>, vector<1x16x128xf32>
    %233 = vector.shape_cast %232 : vector<1x16x128xf32> to vector<16x128xf32>
    %234 = vector.broadcast %228 : f32 to vector<16x128xf32>
    %235 = arith.mulf %234, %233 : vector<16x128xf32>
    %236 = arith.index_cast %226 : i32 to index
    %c0_104 = arith.constant 0 : index
    %c0_105 = arith.constant 0 : index
    %237 = vector.load %arg14[%236, %c0_104, %c0_105] : memref<5x16x128xf32, #tpu.memory_space<vmem>>, vector<1x16x128xf32>
    %238 = vector.shape_cast %237 : vector<1x16x128xf32> to vector<16x128xf32>
    %239 = vector.broadcast %230 : f32 to vector<16x128xf32>
    %240 = arith.mulf %239, %238 : vector<16x128xf32>
    %241 = arith.addf %235, %240 : vector<16x128xf32>
    %c152 = arith.constant 152 : index
    %c0_106 = arith.constant 0 : index
    %242 = vector.load %arg15[%c152, %c0_106] : memref<176x128xf32, #tpu.memory_space<vmem>>, vector<16x128xf32>
    tpu.vector_store %arg15[%c152, %c0_106], %241 {strides = array<i32>} : memref<176x128xf32, #tpu.memory_space<vmem>>, vector<16x128xf32>,
    %243 = tpu.iota {dimensions = array<i32: 0>} : vector<128x1xi32>
    %c16_i32 = arith.constant 16 : i32
    %c0_i32_107 = arith.constant 0 : i32
    %244 = arith.cmpi eq, %c16_i32, %c0_i32_107 : i32
    %c1_i32_108 = arith.constant 1 : i32
    %245 = arith.select %244, %c1_i32_108, %c16_i32 : i32
    %246 = vector.broadcast %245 : i32 to vector<128x1xi32>
    %247 = arith.remsi %243, %246 : vector<128x1xi32>
    %c0_i32_109 = arith.constant 0 : i32
    %248 = vector.broadcast %c0_i32_109 : i32 to vector<128x1xi32>
    %249 = arith.cmpi ne, %247, %248 : vector<128x1xi32>
    %c0_i32_110 = arith.constant 0 : i32
    %250 = vector.broadcast %c0_i32_110 : i32 to vector<128x1xi32>
    %251 = arith.cmpi slt, %247, %250 : vector<128x1xi32>
    %c0_i32_111 = arith.constant 0 : i32
    %252 = arith.cmpi slt, %245, %c0_i32_111 : i32
    %253 = vector.broadcast %252 : i1 to vector<128x1xi1>
    %254 = vector.broadcast %253 : vector<128x1xi1> to vector<128x1xi1>
    %255 = arith.xori %251, %254 : vector<128x1xi1>
    %256 = arith.andi %255, %249 : vector<128x1xi1>
    %257 = vector.broadcast %245 : i32 to vector<128x1xi32>
    %258 = arith.addi %247, %257 : vector<128x1xi32>
    %259 = arith.select %256, %258, %247 : vector<128x1xi1>, vector<128x1xi32>
    %c0_i32_112 = arith.constant 0 : i32
    %260 = vector.broadcast %c0_i32_112 : i32 to vector<128x1xi32>
    %261 = arith.cmpi eq, %259, %260 : vector<128x1xi32>
    %c15_i32 = arith.constant 15 : i32
    %262 = vector.broadcast %c15_i32 : i32 to vector<128x1xi32>
    %263 = arith.cmpi eq, %259, %262 : vector<128x1xi32>
    %c7_113 = arith.constant 7 : index
    %c0_114 = arith.constant 0 : index
    %264 = vector.load %arg15[%c7_113, %c0_114] : memref<176x128xf32, #tpu.memory_space<vmem>>, vector<128x128xf32>
    %cst_115 = arith.constant 0.000000e+00 : f32
    %265 = vector.shape_cast %261 : vector<128x1xi1> to vector<128x1xi1>
    %266 = vector.broadcast %265 : vector<128x1xi1> to vector<128x128xi1>
    %267 = vector.broadcast %cst_115 : f32 to vector<128x128xf32>
    %268 = arith.select %266, %267, %264 : vector<128x128xi1>, vector<128x128xf32>
    %269 = arith.truncf %268 : vector<128x128xf32> to vector<128x128xbf16>
    %c0_116 = arith.constant 0 : index
    %c0_117 = arith.constant 0 : index
    %270 = vector.load %arg16[%c0_116, %c0_117] : memref<128x1152xbf16, #tpu.memory_space<vmem>>, vector<128x128xbf16>
    tpu.vector_store %arg16[%c0_116, %c0_117], %269 {strides = array<i32>} : memref<128x1152xbf16, #tpu.memory_space<vmem>>, vector<128x128xbf16>,
    %c8_118 = arith.constant 8 : index
    %c0_119 = arith.constant 0 : index
    %271 = vector.load %arg15[%c8_118, %c0_119] : memref<176x128xf32, #tpu.memory_space<vmem>>, vector<128x128xf32>
    %272 = arith.truncf %271 : vector<128x128xf32> to vector<128x128xbf16>
    %c0_120 = arith.constant 0 : index
    %c128 = arith.constant 128 : index
    %273 = vector.load %arg16[%c0_120, %c128] : memref<128x1152xbf16, #tpu.memory_space<vmem>>, vector<128x128xbf16>
    tpu.vector_store %arg16[%c0_120, %c128], %272 {strides = array<i32>} : memref<128x1152xbf16, #tpu.memory_space<vmem>>, vector<128x128xbf16>,
    %c9_121 = arith.constant 9 : index
    %c0_122 = arith.constant 0 : index
    %274 = vector.load %arg15[%c9_121, %c0_122] : memref<176x128xf32, #tpu.memory_space<vmem>>, vector<128x128xf32>
    %cst_123 = arith.constant 0.000000e+00 : f32
    %275 = vector.shape_cast %263 : vector<128x1xi1> to vector<128x1xi1>
    %276 = vector.broadcast %275 : vector<128x1xi1> to vector<128x128xi1>
    %277 = vector.broadcast %cst_123 : f32 to vector<128x128xf32>
    %278 = arith.select %276, %277, %274 : vector<128x128xi1>, vector<128x128xf32>
    %279 = arith.truncf %278 : vector<128x128xf32> to vector<128x128xbf16>
    %c0_124 = arith.constant 0 : index
    %c256 = arith.constant 256 : index
    %280 = vector.load %arg16[%c0_124, %c256] : memref<128x1152xbf16, #tpu.memory_space<vmem>>, vector<128x128xbf16>
    tpu.vector_store %arg16[%c0_124, %c256], %279 {strides = array<i32>} : memref<128x1152xbf16, #tpu.memory_space<vmem>>, vector<128x128xbf16>,
    %c23 = arith.constant 23 : index
    %c0_125 = arith.constant 0 : index
    %281 = vector.load %arg15[%c23, %c0_125] : memref<176x128xf32, #tpu.memory_space<vmem>>, vector<128x128xf32>
    %cst_126 = arith.constant 0.000000e+00 : f32
    %282 = vector.shape_cast %261 : vector<128x1xi1> to vector<128x1xi1>
    %283 = vector.broadcast %282 : vector<128x1xi1> to vector<128x128xi1>
    %284 = vector.broadcast %cst_126 : f32 to vector<128x128xf32>
    %285 = arith.select %283, %284, %281 : vector<128x128xi1>, vector<128x128xf32>
    %286 = arith.truncf %285 : vector<128x128xf32> to vector<128x128xbf16>
    %c0_127 = arith.constant 0 : index
    %c384 = arith.constant 384 : index
    %287 = vector.load %arg16[%c0_127, %c384] : memref<128x1152xbf16, #tpu.memory_space<vmem>>, vector<128x128xbf16>
    tpu.vector_store %arg16[%c0_127, %c384], %286 {strides = array<i32>} : memref<128x1152xbf16, #tpu.memory_space<vmem>>, vector<128x128xbf16>,
    %c24_128 = arith.constant 24 : index
    %c0_129 = arith.constant 0 : index
    %288 = vector.load %arg15[%c24_128, %c0_129] : memref<176x128xf32, #tpu.memory_space<vmem>>, vector<128x128xf32>
    %289 = arith.truncf %288 : vector<128x128xf32> to vector<128x128xbf16>
    %c0_130 = arith.constant 0 : index
    %c512 = arith.constant 512 : index
    %290 = vector.load %arg16[%c0_130, %c512] : memref<128x1152xbf16, #tpu.memory_space<vmem>>, vector<128x128xbf16>
    tpu.vector_store %arg16[%c0_130, %c512], %289 {strides = array<i32>} : memref<128x1152xbf16, #tpu.memory_space<vmem>>, vector<128x128xbf16>,
    %c25 = arith.constant 25 : index
    %c0_131 = arith.constant 0 : index
    %291 = vector.load %arg15[%c25, %c0_131] : memref<176x128xf32, #tpu.memory_space<vmem>>, vector<128x128xf32>
    %cst_132 = arith.constant 0.000000e+00 : f32
    %292 = vector.shape_cast %263 : vector<128x1xi1> to vector<128x1xi1>
    %293 = vector.broadcast %292 : vector<128x1xi1> to vector<128x128xi1>
    %294 = vector.broadcast %cst_132 : f32 to vector<128x128xf32>
    %295 = arith.select %293, %294, %291 : vector<128x128xi1>, vector<128x128xf32>
    %296 = arith.truncf %295 : vector<128x128xf32> to vector<128x128xbf16>
    %c0_133 = arith.constant 0 : index
    %c640 = arith.constant 640 : index
    %297 = vector.load %arg16[%c0_133, %c640] : memref<128x1152xbf16, #tpu.memory_space<vmem>>, vector<128x128xbf16>
    tpu.vector_store %arg16[%c0_133, %c640], %296 {strides = array<i32>} : memref<128x1152xbf16, #tpu.memory_space<vmem>>, vector<128x128xbf16>,
    %c39 = arith.constant 39 : index
    %c0_134 = arith.constant 0 : index
    %298 = vector.load %arg15[%c39, %c0_134] : memref<176x128xf32, #tpu.memory_space<vmem>>, vector<128x128xf32>
    %cst_135 = arith.constant 0.000000e+00 : f32
    %299 = vector.shape_cast %261 : vector<128x1xi1> to vector<128x1xi1>
    %300 = vector.broadcast %299 : vector<128x1xi1> to vector<128x128xi1>
    %301 = vector.broadcast %cst_135 : f32 to vector<128x128xf32>
    %302 = arith.select %300, %301, %298 : vector<128x128xi1>, vector<128x128xf32>
    %303 = arith.truncf %302 : vector<128x128xf32> to vector<128x128xbf16>
    %c0_136 = arith.constant 0 : index
    %c768 = arith.constant 768 : index
    %304 = vector.load %arg16[%c0_136, %c768] : memref<128x1152xbf16, #tpu.memory_space<vmem>>, vector<128x128xbf16>
    tpu.vector_store %arg16[%c0_136, %c768], %303 {strides = array<i32>} : memref<128x1152xbf16, #tpu.memory_space<vmem>>, vector<128x128xbf16>,
    %c40_137 = arith.constant 40 : index
    %c0_138 = arith.constant 0 : index
    %305 = vector.load %arg15[%c40_137, %c0_138] : memref<176x128xf32, #tpu.memory_space<vmem>>, vector<128x128xf32>
    %306 = arith.truncf %305 : vector<128x128xf32> to vector<128x128xbf16>
    %c0_139 = arith.constant 0 : index
    %c896 = arith.constant 896 : index
    %307 = vector.load %arg16[%c0_139, %c896] : memref<128x1152xbf16, #tpu.memory_space<vmem>>, vector<128x128xbf16>
    tpu.vector_store %arg16[%c0_139, %c896], %306 {strides = array<i32>} : memref<128x1152xbf16, #tpu.memory_space<vmem>>, vector<128x128xbf16>,
    %c41 = arith.constant 41 : index
    %c0_140 = arith.constant 0 : index
    %308 = vector.load %arg15[%c41, %c0_140] : memref<176x128xf32, #tpu.memory_space<vmem>>, vector<128x128xf32>
    %cst_141 = arith.constant 0.000000e+00 : f32
    %309 = vector.shape_cast %263 : vector<128x1xi1> to vector<128x1xi1>
    %310 = vector.broadcast %309 : vector<128x1xi1> to vector<128x128xi1>
    %311 = vector.broadcast %cst_141 : f32 to vector<128x128xf32>
    %312 = arith.select %310, %311, %308 : vector<128x128xi1>, vector<128x128xf32>
    %313 = arith.truncf %312 : vector<128x128xf32> to vector<128x128xbf16>
    %c0_142 = arith.constant 0 : index
    %c1024 = arith.constant 1024 : index
    %314 = vector.load %arg16[%c0_142, %c1024] : memref<128x1152xbf16, #tpu.memory_space<vmem>>, vector<128x128xbf16>
    tpu.vector_store %arg16[%c0_142, %c1024], %313 {strides = array<i32>} : memref<128x1152xbf16, #tpu.memory_space<vmem>>, vector<128x128xbf16>,
    %c0_143 = arith.constant 0 : index
    %c0_144 = arith.constant 0 : index
    %c0_145 = arith.constant 0 : index
    %315 = vector.load %arg6[%c0_143, %c0_144, %c0_145] : memref<1x128x128xf32, #tpu.memory_space<vmem>>, vector<1x128x128xf32>
    %316 = vector.shape_cast %315 : vector<1x128x128xf32> to vector<128x128xf32>
    %c0_146 = arith.constant 0 : index
    %c0_147 = arith.constant 0 : index
    %317 = vector.load %arg8[%c0_146, %c0_147] : memref<1x128xf32, #tpu.memory_space<vmem>>, vector<1x128xf32>
    %318 = vector.broadcast %317 : vector<1x128xf32> to vector<128x128xf32>
    %319 = arith.addf %316, %318 : vector<128x128xf32>
    %c0_148 = arith.constant 0 : index
    %c0_149 = arith.constant 0 : index
    %320 = vector.load %arg16[%c0_148, %c0_149] : memref<128x1152xbf16, #tpu.memory_space<vmem>>, vector<128x1152xbf16>
    %c0_150 = arith.constant 0 : index
    %c0_151 = arith.constant 0 : index
    %321 = vector.load %arg7[%c0_150, %c0_151] : memref<1152x128xbf16, #tpu.memory_space<vmem>>, vector<1152x128xbf16>
    %cst_152 = arith.constant dense<0.000000e+00> : vector<128x128xf32>
    %322 = tpu.matmul %320, %321, %cst_152 {dimension_numbers = #tpu.dot_dimension_numbers<[1], [0], [0], [1], [0, 0, 1, 1], [], []>} : vector<128x1152xbf16>, vector<1152x128xbf16>, vector<128x128xf32> -> vector<128x128xf32>
    %323 = arith.addf %319, %322 : vector<128x128xf32>
    %324 = arith.truncf %323 : vector<128x128xf32> to vector<128x128xbf16>
    %c0_153 = arith.constant 0 : index
    %c0_154 = arith.constant 0 : index
    %325 = vector.load %arg9[%c0_153, %c0_154] : memref<128x128xbf16, #tpu.memory_space<vmem>>, vector<128x128xbf16>
    %cst_155 = arith.constant dense<0.000000e+00> : vector<128x128xf32>
    %326 = tpu.matmul %324, %325, %cst_155 {dimension_numbers = #tpu.dot_dimension_numbers<[1], [0], [0], [1], [0, 0, 1, 1], [], []>} : vector<128x128xbf16>, vector<128x128xbf16>, vector<128x128xf32> -> vector<128x128xf32>
    %c0_156 = arith.constant 0 : index
    %c0_157 = arith.constant 0 : index
    %327 = vector.load %arg10[%c0_156, %c0_157] : memref<1x128xf32, #tpu.memory_space<vmem>>, vector<1x128xf32>
    %328 = vector.broadcast %327 : vector<1x128xf32> to vector<128x128xf32>
    %329 = arith.addf %326, %328 : vector<128x128xf32>
    %cst_158 = arith.constant 5.000000e-01 : f32
    %330 = vector.broadcast %cst_158 : f32 to vector<128x128xf32>
    %331 = arith.mulf %330, %329 : vector<128x128xf32>
    %cst_159 = arith.constant 0.707106769 : f32
    %332 = vector.broadcast %cst_159 : f32 to vector<128x128xf32>
    %333 = arith.mulf %329, %332 : vector<128x128xf32>
    %cst_160 = arith.constant 0.000000e+00 : f32
    %334 = vector.broadcast %cst_160 : f32 to vector<128x128xf32>
    %335 = arith.cmpf oge, %333, %334 : vector<128x128xf32>
    %cst_161 = arith.constant 1.000000e+00 : f32
    %cst_162 = arith.constant -1.000000e+00 : f32
    %336 = vector.broadcast %cst_161 : f32 to vector<128x128xf32>
    %337 = vector.broadcast %cst_162 : f32 to vector<128x128xf32>
    %338 = arith.select %335, %336, %337 : vector<128x128xi1>, vector<128x128xf32>
    %339 = math.absf %333 : vector<128x128xf32>
    %cst_163 = arith.constant 0.327591091 : f32
    %340 = vector.broadcast %cst_163 : f32 to vector<128x128xf32>
    %341 = arith.mulf %340, %339 : vector<128x128xf32>
    %cst_164 = arith.constant 1.000000e+00 : f32
    %342 = vector.broadcast %cst_164 : f32 to vector<128x128xf32>
    %343 = arith.addf %342, %341 : vector<128x128xf32>
    %344 = tpu.reciprocal %343 {approx = true} : vector<128x128xf32> -> vector<128x128xf32>
    %cst_165 = arith.constant 1.06140542 : f32
    %345 = vector.broadcast %cst_165 : f32 to vector<128x128xf32>
    %346 = arith.mulf %345, %344 : vector<128x128xf32>
    %cst_166 = arith.constant -1.45315206 : f32
    %347 = vector.broadcast %cst_166 : f32 to vector<128x128xf32>
    %348 = arith.addf %346, %347 : vector<128x128xf32>
    %349 = arith.mulf %348, %344 : vector<128x128xf32>
    %cst_167 = arith.constant 1.42141378 : f32
    %350 = vector.broadcast %cst_167 : f32 to vector<128x128xf32>
    %351 = arith.addf %349, %350 : vector<128x128xf32>
    %352 = arith.mulf %351, %344 : vector<128x128xf32>
    %cst_168 = arith.constant -0.284496725 : f32
    %353 = vector.broadcast %cst_168 : f32 to vector<128x128xf32>
    %354 = arith.addf %352, %353 : vector<128x128xf32>
    %355 = arith.mulf %354, %344 : vector<128x128xf32>
    %cst_169 = arith.constant 0.254829586 : f32
    %356 = vector.broadcast %cst_169 : f32 to vector<128x128xf32>
    %357 = arith.addf %355, %356 : vector<128x128xf32>
    %358 = arith.mulf %357, %344 : vector<128x128xf32>
    %cst_170 = arith.constant 0.000000e+00 : f32
    %359 = vector.broadcast %cst_170 : f32 to vector<128x128xf32>
    %360 = arith.subf %359, %339 : vector<128x128xf32>
    %361 = arith.mulf %360, %339 : vector<128x128xf32>
    %362 = math.exp %361 : vector<128x128xf32>
    %363 = arith.mulf %358, %362 : vector<128x128xf32>
    %cst_171 = arith.constant 1.000000e+00 : f32
    %364 = vector.broadcast %cst_171 : f32 to vector<128x128xf32>
    %365 = arith.subf %364, %363 : vector<128x128xf32>
    %366 = arith.mulf %338, %365 : vector<128x128xf32>
    %cst_172 = arith.constant 1.000000e+00 : f32
    %367 = vector.broadcast %cst_172 : f32 to vector<128x128xf32>
    %368 = arith.addf %367, %366 : vector<128x128xf32>
    %369 = arith.mulf %331, %368 : vector<128x128xf32>
    %cst_173 = arith.constant dense<0.000000e+00> : vector<128xf32>
    %370 = vector.multi_reduction <add>, %369, %cst_173 [1] : vector<128x128xf32> to vector<128xf32>
    %371 = vector.shape_cast %370 : vector<128xf32> to vector<128x1xf32>
    %cst_174 = arith.constant 1.280000e+02 : f32
    %372 = vector.broadcast %cst_174 : f32 to vector<128x1xf32>
    %373 = arith.divf %371, %372 : vector<128x1xf32>
    %374 = vector.broadcast %373 : vector<128x1xf32> to vector<128x128xf32>
    %375 = arith.subf %369, %374 : vector<128x128xf32>
    %376 = arith.mulf %375, %375 : vector<128x128xf32>
    %cst_175 = arith.constant dense<0.000000e+00> : vector<128xf32>
    %377 = vector.multi_reduction <add>, %376, %cst_175 [1] : vector<128x128xf32> to vector<128xf32>
    %378 = vector.shape_cast %377 : vector<128xf32> to vector<128x1xf32>
    %cst_176 = arith.constant 1.280000e+02 : f32
    %379 = vector.broadcast %cst_176 : f32 to vector<128x1xf32>
    %380 = arith.divf %378, %379 : vector<128x1xf32>
    %cst_177 = arith.constant 9.99999997E-7 : f32
    %381 = vector.broadcast %cst_177 : f32 to vector<128x1xf32>
    %382 = arith.addf %380, %381 : vector<128x1xf32>
    %383 = math.rsqrt %382 : vector<128x1xf32>
    %384 = vector.broadcast %383 : vector<128x1xf32> to vector<128x128xf32>
    %385 = arith.mulf %375, %384 : vector<128x128xf32>
    %c0_178 = arith.constant 0 : index
    %c0_179 = arith.constant 0 : index
    %386 = vector.load %arg11[%c0_178, %c0_179] : memref<1x128xf32, #tpu.memory_space<vmem>>, vector<1x128xf32>
    %387 = vector.broadcast %386 : vector<1x128xf32> to vector<128x128xf32>
    %388 = arith.mulf %385, %387 : vector<128x128xf32>
    %c0_180 = arith.constant 0 : index
    %c0_181 = arith.constant 0 : index
    %389 = vector.load %arg12[%c0_180, %c0_181] : memref<1x128xf32, #tpu.memory_space<vmem>>, vector<1x128xf32>
    %390 = vector.broadcast %389 : vector<1x128xf32> to vector<128x128xf32>
    %391 = arith.addf %388, %390 : vector<128x128xf32>
    %c0_182 = arith.constant 0 : index
    %c0_183 = arith.constant 0 : index
    %c0_184 = arith.constant 0 : index
    %392 = vector.load %arg13[%c0_182, %c0_183, %c0_184] : memref<1x128x128xf32, #tpu.memory_space<vmem>>, vector<1x128x128xf32>
    %393 = vector.shape_cast %392 : vector<1x128x128xf32> to vector<128x128xf32>
    %394 = vector.shape_cast %391 : vector<128x128xf32> to vector<1x128x128xf32>
    tpu.vector_store %arg13[%c0_182, %c0_183, %c0_184], %394 {strides = array<i32>} : memref<1x128x128xf32, #tpu.memory_space<vmem>>, vector<1x128x128xf32>,
    return
  }
  func.func @transform_0(%arg0: i32, %arg1: i32, %arg2: memref<2x21xi32, #tpu.memory_space<smem>>) -> (i32, i32) {
    %c0_i32 = arith.constant 0 : i32
    %c0_i32_0 = arith.constant 0 : i32
    %c0_i32_1 = arith.constant 0 : i32
    return %c0_i32, %c0_i32_0 : i32, i32
  }
  func.func @transform_1(%arg0: i32, %arg1: i32, %arg2: memref<2x21xi32, #tpu.memory_space<smem>>) -> (i32, i32) {
    %c0_i32 = arith.constant 0 : i32
    %c0_i32_0 = arith.constant 0 : i32
    %c0_i32_1 = arith.constant 0 : i32
    return %c0_i32, %c0_i32_0 : i32, i32
  }
  func.func @transform_2(%arg0: i32, %arg1: i32, %arg2: memref<2x21xi32, #tpu.memory_space<smem>>) -> (i32, i32, i32, i32) {
    %c0_i32 = arith.constant 0 : i32
    %c0_i32_0 = arith.constant 0 : i32
    %c0_i32_1 = arith.constant 0 : i32
    %c0_i32_2 = arith.constant 0 : i32
    return %arg0, %c0_i32, %c0_i32_0, %c0_i32_1 : i32, i32, i32, i32
  }
  func.func @transform_3(%arg0: i32, %arg1: i32, %arg2: memref<2x21xi32, #tpu.memory_space<smem>>) -> (i32, i32, i32) {
    %c0_i32 = arith.constant 0 : i32
    %c0_i32_0 = arith.constant 0 : i32
    return %arg0, %arg1, %c0_i32 : i32, i32, i32
  }
  func.func @transform_4(%arg0: i32, %arg1: i32, %arg2: memref<2x21xi32, #tpu.memory_space<smem>>) -> (i32, i32) {
    %c0_i32 = arith.constant 0 : i32
    %c0_i32_0 = arith.constant 0 : i32
    %c0_i32_1 = arith.constant 0 : i32
    return %c0_i32, %c0_i32_0 : i32, i32
  }
  func.func @transform_5(%arg0: i32, %arg1: i32, %arg2: memref<2x21xi32, #tpu.memory_space<smem>>) -> (i32, i32) {
    %c0_i32 = arith.constant 0 : i32
    %c0_i32_0 = arith.constant 0 : i32
    %c0_i32_1 = arith.constant 0 : i32
    return %c0_i32, %c0_i32_0 : i32, i32
  }
  func.func @transform_6(%arg0: i32, %arg1: i32, %arg2: memref<2x21xi32, #tpu.memory_space<smem>>) -> (i32, i32) {
    %c0_i32 = arith.constant 0 : i32
    %c0_i32_0 = arith.constant 0 : i32
    %c0_i32_1 = arith.constant 0 : i32
    return %c0_i32, %c0_i32_0 : i32, i32
  }
  func.func @transform_7(%arg0: i32, %arg1: i32, %arg2: memref<2x21xi32, #tpu.memory_space<smem>>) -> (i32, i32) {
    %c0_i32 = arith.constant 0 : i32
    %c0_i32_0 = arith.constant 0 : i32
    %c0_i32_1 = arith.constant 0 : i32
    return %c0_i32, %c0_i32_0 : i32, i32
  }
  func.func @transform_8(%arg0: i32, %arg1: i32, %arg2: memref<2x21xi32, #tpu.memory_space<smem>>) -> (i32, i32) {
    %c0_i32 = arith.constant 0 : i32
    %c0_i32_0 = arith.constant 0 : i32
    %c0_i32_1 = arith.constant 0 : i32
    return %c0_i32, %c0_i32_0 : i32, i32
  }
  func.func @transform_9(%arg0: i32, %arg1: i32, %arg2: memref<2x21xi32, #tpu.memory_space<smem>>) -> (i32, i32) {
    %c0_i32 = arith.constant 0 : i32
    %c0_i32_0 = arith.constant 0 : i32
    %c0_i32_1 = arith.constant 0 : i32
    return %c0_i32, %c0_i32_0 : i32, i32
  }
  func.func @transform_10(%arg0: i32, %arg1: i32, %arg2: memref<2x21xi32, #tpu.memory_space<smem>>) -> (i32, i32, i32) {
    %c0_i32 = arith.constant 0 : i32
    %c0_i32_0 = arith.constant 0 : i32
    return %arg0, %arg1, %c0_i32 : i32, i32, i32
  }
}

</mosaic_0001>

<llo_original>
// kernel: tpu_custom_call.1
$region0: #{tpu_custom_call.1}
  #allocation0 [shape = 'u32[]', space=smem, size = 0x4, offset = 0x4, fixed_abs, tag = 'smem constant byte address 0x4 - core index']
  #allocation1 [shape = 'u32[72,128]{1,0:T(1,128)}', space=vmem, size = 0x9000, scoped, tag = 'internal scratch']
  #allocation2 [shape = 'f32[5,16,128]{2,1,0:T(8,128)}', space=vmem, size = 0xa000, scoped, tag = 'scratch operand']
  #allocation3 [shape = 'f32[176,128]{1,0:T(8,128)}', space=vmem, size = 0x16000, scoped, tag = 'scratch operand']
  #allocation4 [shape = 'bf16[128,1152]{1,0:T(8,128)(2,1)}', space=vmem, size = 0x48000, scoped, tag = 'scratch operand']
  #allocation5 [shape = 's32[1]{0}', space=sflag, size = 0x4, scoped, tag = 'scoped memory for tpu_custom_call.1']
  #allocation6 [shape = 'u8[1024]{0}', space=smem, size = 0x400, scoped, tag = 'prefetched SMEM operand 0']
  %s0 = inlined_call_operand.vmem [shape: s32[2,21], index: 0, kind: input, shape index: {}]
  %s1 = inlined_call_operand.vmem [shape: f32[2,20], index: 1, kind: input, shape index: {}]
  %s2 = inlined_call_operand.vmem [shape: f32[16,8], index: 2, kind: input, shape index: {}]
  %s3 = inlined_call_operand.hbm [shape: f32[2,8,8,128], index: 3, kind: input, shape index: {}]
  %s4 = inlined_call_operand.hbm [shape: f32[2,256,128], index: 4, kind: input, shape index: {}]
  %s5 = inlined_call_operand.hbm [shape: bf16[1152,128], index: 5, kind: input, shape index: {}]
  %s6 = inlined_call_operand.vmem [shape: f32[1,128], index: 6, kind: input, shape index: {}]
  %s7 = inlined_call_operand.hbm [shape: bf16[128,128], index: 7, kind: input, shape index: {}]
  %s8 = inlined_call_operand.vmem [shape: f32[1,128], index: 8, kind: input, shape index: {}]
  %s9 = inlined_call_operand.vmem [shape: f32[1,128], index: 9, kind: input, shape index: {}]
  %s10 = inlined_call_operand.vmem [shape: f32[1,128], index: 10, kind: input, shape index: {}]
  %s11 = inlined_call_operand.hbm [shape: f32[2,256,128], index: 11, kind: output, shape index: {}]
  %s12 = sld [smem:[#allocation0]]
  $region93: #{tpu_custom_call.1} parent=0
    _
  %s14 = ssub.s32 1, %s12
  %s15 = scalar_select 0, %s14, %s12
  %s17 = sshll.u32 %s0, 4
  %s18 = int_to_ptr.vmem [resolvable:$true] %s17
  %20 = dma.vmem_to_smem %s18, 32, [#allocation6], [#allocation5]
  %22 = dma.done [#allocation5], 32
  %23 = sfence
  $region1: #{tpu_custom_call.1} parent=0
    #allocation7 [shape = 'u8[1024]{0}', space=smem, size = 0x400, scoped, tag = 'input window, operand 1, single buffered']
    #allocation8 [shape = 's32[2]{0}', space=sflag, size = 0x8, scoped, tag = 'scoped memory for tpu_custom_call.1']
    #allocation9 [shape = 's32[2]{0}', space=sflag, size = 0x8, scoped, tag = 'scoped memory for tpu_custom_call.1']
    #allocation10 [shape = 's32[2]{0}', space=sflag, size = 0x8, scoped, tag = 'scoped memory for tpu_custom_call.1']
    #allocation11 [shape = 'u8[65536]{0}', space=vmem, size = 0x10000, scoped, tag = 'input window, operand 3']
    #allocation12 [shape = 'u8[131072]{0}', space=vmem, size = 0x20000, scoped, tag = 'input window, operand 4']
    #allocation13 [shape = 's32[2]{0}', space=sflag, size = 0x8, scoped, tag = 'scoped memory for tpu_custom_call.1']
    #allocation14 [shape = 'u8[294912]{0}', space=vmem, size = 0x48000, scoped, tag = 'input window, operand 5, single buffered']
    #allocation15 [shape = 'u8[32768]{0}', space=vmem, size = 0x8000, scoped, tag = 'input window, operand 7, single buffered']
    #allocation16 [shape = 's32[1]{0}', space=sflag, size = 0x4, scoped, tag = 'scoped memory for tpu_custom_call.1']
    #allocation17 [shape = 'u8[131072]{0}', space=vmem, size = 0x20000, scoped, tag = 'output window, operand 0']
    %24 = vsyncpa [#allocation10], 0
    %25 = vsyncpa [#allocation8], 0
    %s26 = scalar_lea.sflag [#allocation8], 1
    %27 = vsyncpa %s26, 0
    %28 = vsyncpa [#allocation13], 0
    %s29 = scalar_lea.sflag [#allocation13], 1
    %30 = vsyncpa %s29, 0
    %31 = vsyncpa [#allocation16], 0
    %32 = vsyncpa [#allocation9], 0
    %s33 = scalar_lea.sflag [#allocation9], 1
    %34 = vsyncpa %s33, 0
    loop: start=0, step=1, limit=6
    $region2: #{tpu_custom_call.1} parent=1 // loop_pre_header
      _
    $region3: #{tpu_custom_call.1} parent=1 // loop_header
      %s36 = sphi 0, %s40
      %p37 = scmp.ge.s32.totalorder %s36, 6
      %s43 = sphi 0, %s55
      %s44 = sphi 0, %s51
      %s45 = sphi 0, %s43
      %s46 = sphi 0, %s44
      %s47 = sphi 0, %s45
      %s48 = sphi 0, %s46
      %s56 = sphi 0, %s56
      %s58 = sphi 0, %s56
      %s59 = sphi 0, %s58
      %s73 = sphi 0, %s59
      %s77 = sphi 0, %s77
      %s79 = sphi 0, %s77
      %s80 = sphi 0, %s79
      %s94 = sphi 0, %s80
      %s100 = sphi 0, %s102
      %s103 = sphi 0, %s100
      %s104 = sphi 0, %s103
      %s120 = sphi 0, %s104
      %s128 = sphi 0, %s130
      %s131 = sphi 0, %s128
      %s132 = sphi 0, %s131
      %s148 = sphi 0, %s132
      %s152 = sphi 0, %s152
      %s154 = sphi 0, %s152
      %s155 = sphi 0, %s154
      %s169 = sphi 0, %s155
      %s173 = sphi 0, %s173
      %s175 = sphi 0, %s173
      %s176 = sphi 0, %s175
      %s190 = sphi 0, %s176
      %s194 = sphi 0, %s194
      %s196 = sphi 0, %s194
      %s197 = sphi 0, %s196
      %s211 = sphi 0, %s197
      %s215 = sphi 0, %s215
      %s217 = sphi 0, %s215
      %s218 = sphi 0, %s217
      %s232 = sphi 0, %s218
      %s236 = sphi 0, %s236
      %s238 = sphi 0, %s236
      %s239 = sphi 0, %s238
      %s253 = sphi 0, %s239
      %s257 = sphi 0, %s257
      %s259 = sphi 0, %s257
      %s260 = sphi 0, %s259
      %s274 = sphi 0, %s260
      %s282 = sphi 0, %s284
      %s285 = sphi 0, %s282
      %s286 = sphi 0, %s285
      %s302 = sphi 0, %s286
    $region4: #{tpu_custom_call.1} parent=1 // loop_header_branch
      %39 = sbr.rel (%p37) target = $region8
    $region5: #{tpu_custom_call.1} parent=1 // loop_body
      %s41 = ssub.s32 %s36, 1
      %s42 = ssub.s32 %s36, 2
      %s49 = sadd.s32 1, %s44
      %p50 = scmp.ge.s32.totalorder %s49, 2
      %s51 = scalar_select %p50, 0, %s49
      %s52 = sadd.s32 1, %s43
      %s53 = scalar_select %p50, %s52, %s43
      %p54 = scmp.ge.s32.totalorder %s53, 2
      %s55 = scalar_select %p54, 0, %s53
      %s57 = sadd.s32 %s56, 1
      %p60 = scmp.eq.s32.totalorder %s36, 3
      %p61 = scmp.ne.s32.totalorder %s56, %s58
      %p62 = scmp.eq.s32.totalorder %s36, 0
      %p63 = por %p61, %p62
      %p64 = scmp.ne.s32.totalorder %s56, %s58
      %p65 = scmp.eq.s32.totalorder %s41, 3
      %p66 = por %p64, %p65
      %p67 = scmp.ne.s32.totalorder %s58, %s59
      %p68 = scmp.eq.s32.totalorder %s41, 0
      %p69 = por %p67, %p68
      %p70 = scmp.ne.s32.totalorder %s58, %s59
      %p71 = scmp.eq.s32.totalorder %s42, 3
      %p72 = por %p70, %p71
      %p74 = scmp.ne.s32.totalorder %s59, %s73
      %p75 = scmp.eq.s32.totalorder %s42, 0
      %p76 = por %p74, %p75
      %s78 = sadd.s32 %s77, 1
      %p81 = scmp.eq.s32.totalorder %s36, 3
      %p82 = scmp.ne.s32.totalorder %s77, %s79
      %p83 = scmp.eq.s32.totalorder %s36, 0
      %p84 = por %p82, %p83
      %p85 = scmp.ne.s32.totalorder %s77, %s79
      %p86 = scmp.eq.s32.totalorder %s41, 3
      %p87 = por %p85, %p86
      %p88 = scmp.ne.s32.totalorder %s79, %s80
      %p89 = scmp.eq.s32.totalorder %s41, 0
      %p90 = por %p88, %p89
      %p91 = scmp.ne.s32.totalorder %s79, %s80
      %p92 = scmp.eq.s32.totalorder %s42, 3
      %p93 = por %p91, %p92
      %p95 = scmp.ne.s32.totalorder %s80, %s94
      %p96 = scmp.eq.s32.totalorder %s42, 0
      %p97 = por %p95, %p96
      %s98 = ssub.s32 %s43, %s55
      %p99 = scmp.eq.s32.totalorder %s98, 0
      %s101 = sadd.s32 %s100, 1
      %s102 = scalar_select %p99, %s100, %s101
      %p105 = pneg %p99
      %p106 = scmp.eq.s32.totalorder %s36, 3
      %p107 = por %p105, %p106
      %p108 = scmp.ne.s32.totalorder %s100, %s103
      %p109 = scmp.eq.s32.totalorder %s36, 0
      %p110 = por %p108, %p109
      %p111 = scmp.ne.s32.totalorder %s100, %s103
      %p112 = scmp.eq.s32.totalorder %s41, 3
      %p113 = por %p111, %p112
      %p114 = scmp.ne.s32.totalorder %s103, %s104
      %p115 = scmp.eq.s32.totalorder %s41, 0
      %p116 = por %p114, %p115
      %p117 = scmp.ne.s32.totalorder %s103, %s104
      %p118 = scmp.eq.s32.totalorder %s42, 3
      %p119 = por %p117, %p118
      %p121 = scmp.ne.s32.totalorder %s104, %s120
      %p122 = scmp.eq.s32.totalorder %s42, 0
      %p123 = por %p121, %p122
      %s124 = ssub.s32 %s43, %s55
      %s125 = ssub.s32 %s44, %s51
      %s126 = sor.u32 %s124, %s125
      %p127 = scmp.eq.s32.totalorder %s126, 0
      %s129 = sadd.s32 %s128, 1
      %s130 = scalar_select %p127, %s128, %s129
      %p133 = pneg %p127
      %p134 = scmp.eq.s32.totalorder %s36, 3
      %p135 = por %p133, %p134
      %p136 = scmp.ne.s32.totalorder %s128, %s131
      %p137 = scmp.eq.s32.totalorder %s36, 0
      %p138 = por %p136, %p137
      %p139 = scmp.ne.s32.totalorder %s128, %s131
      %p140 = scmp.eq.s32.totalorder %s41, 3
      %p141 = por %p139, %p140
      %p142 = scmp.ne.s32.totalorder %s131, %s132
      %p143 = scmp.eq.s32.totalorder %s41, 0
      %p144 = por %p142, %p143
      %p145 = scmp.ne.s32.totalorder %s131, %s132
      %p146 = scmp.eq.s32.totalorder %s42, 3
      %p147 = por %p145, %p146
      %p149 = scmp.ne.s32.totalorder %s132, %s148
      %p150 = scmp.eq.s32.totalorder %s42, 0
      %p151 = por %p149, %p150
      %s153 = sadd.s32 %s152, 1
      %p156 = scmp.eq.s32.totalorder %s36, 3
      %p157 = scmp.ne.s32.totalorder %s152, %s154
      %p158 = scmp.eq.s32.totalorder %s36, 0
      %p159 = por %p157, %p158
      %p160 = scmp.ne.s32.totalorder %s152, %s154
      %p161 = scmp.eq.s32.totalorder %s41, 3
      %p162 = por %p160, %p161
      %p163 = scmp.ne.s32.totalorder %s154, %s155
      %p164 = scmp.eq.s32.totalorder %s41, 0
      %p165 = por %p163, %p164
      %p166 = scmp.ne.s32.totalorder %s154, %s155
      %p167 = scmp.eq.s32.totalorder %s42, 3
      %p168 = por %p166, %p167
      %p170 = scmp.ne.s32.totalorder %s155, %s169
      %p171 = scmp.eq.s32.totalorder %s42, 0
      %p172 = por %p170, %p171
      %s174 = sadd.s32 %s173, 1
      %p177 = scmp.eq.s32.totalorder %s36, 3
      %p178 = scmp.ne.s32.totalorder %s173, %s175
      %p179 = scmp.eq.s32.totalorder %s36, 0
      %p180 = por %p178, %p179
      %p181 = scmp.ne.s32.totalorder %s173, %s175
      %p182 = scmp.eq.s32.totalorder %s41, 3
      %p183 = por %p181, %p182
      %p184 = scmp.ne.s32.totalorder %s175, %s176
      %p185 = scmp.eq.s32.totalorder %s41, 0
      %p186 = por %p184, %p185
      %p187 = scmp.ne.s32.totalorder %s175, %s176
      %p188 = scmp.eq.s32.totalorder %s42, 3
      %p189 = por %p187, %p188
      %p191 = scmp.ne.s32.totalorder %s176, %s190
      %p192 = scmp.eq.s32.totalorder %s42, 0
      %p193 = por %p191, %p192
      %s195 = sadd.s32 %s194, 1
      %p198 = scmp.eq.s32.totalorder %s36, 3
      %p199 = scmp.ne.s32.totalorder %s194, %s196
      %p200 = scmp.eq.s32.totalorder %s36, 0
      %p201 = por %p199, %p200
      %p202 = scmp.ne.s32.totalorder %s194, %s196
      %p203 = scmp.eq.s32.totalorder %s41, 3
      %p204 = por %p202, %p203
      %p205 = scmp.ne.s32.totalorder %s196, %s197
      %p206 = scmp.eq.s32.totalorder %s41, 0
      %p207 = por %p205, %p206
      %p208 = scmp.ne.s32.totalorder %s196, %s197
      %p209 = scmp.eq.s32.totalorder %s42, 3
      %p210 = por %p208, %p209
      %p212 = scmp.ne.s32.totalorder %s197, %s211
      %p213 = scmp.eq.s32.totalorder %s42, 0
      %p214 = por %p212, %p213
      %s216 = sadd.s32 %s215, 1
      %p219 = scmp.eq.s32.totalorder %s36, 3
      %p220 = scmp.ne.s32.totalorder %s215, %s217
      %p221 = scmp.eq.s32.totalorder %s36, 0
      %p222 = por %p220, %p221
      %p223 = scmp.ne.s32.totalorder %s215, %s217
      %p224 = scmp.eq.s32.totalorder %s41, 3
      %p225 = por %p223, %p224
      %p226 = scmp.ne.s32.totalorder %s217, %s218
      %p227 = scmp.eq.s32.totalorder %s41, 0
      %p228 = por %p226, %p227
      %p229 = scmp.ne.s32.totalorder %s217, %s218
      %p230 = scmp.eq.s32.totalorder %s42, 3
      %p231 = por %p229, %p230
      %p233 = scmp.ne.s32.totalorder %s218, %s232
      %p234 = scmp.eq.s32.totalorder %s42, 0
      %p235 = por %p233, %p234
      %s237 = sadd.s32 %s236, 1
      %p240 = scmp.eq.s32.totalorder %s36, 3
      %p241 = scmp.ne.s32.totalorder %s236, %s238
      %p242 = scmp.eq.s32.totalorder %s36, 0
      %p243 = por %p241, %p242
      %p244 = scmp.ne.s32.totalorder %s236, %s238
      %p245 = scmp.eq.s32.totalorder %s41, 3
      %p246 = por %p244, %p245
      %p247 = scmp.ne.s32.totalorder %s238, %s239
      %p248 = scmp.eq.s32.totalorder %s41, 0
      %p249 = por %p247, %p248
      %p250 = scmp.ne.s32.totalorder %s238, %s239
      %p251 = scmp.eq.s32.totalorder %s42, 3
      %p252 = por %p250, %p251
      %p254 = scmp.ne.s32.totalorder %s239, %s253
      %p255 = scmp.eq.s32.totalorder %s42, 0
      %p256 = por %p254, %p255
      %s258 = sadd.s32 %s257, 1
      %p261 = scmp.eq.s32.totalorder %s36, 3
      %p262 = scmp.ne.s32.totalorder %s257, %s259
      %p263 = scmp.eq.s32.totalorder %s36, 0
      %p264 = por %p262, %p263
      %p265 = scmp.ne.s32.totalorder %s257, %s259
      %p266 = scmp.eq.s32.totalorder %s41, 3
      %p267 = por %p265, %p266
      %p268 = scmp.ne.s32.totalorder %s259, %s260
      %p269 = scmp.eq.s32.totalorder %s41, 0
      %p270 = por %p268, %p269
      %p271 = scmp.ne.s32.totalorder %s259, %s260
      %p272 = scmp.eq.s32.totalorder %s42, 3
      %p273 = por %p271, %p272
      %p275 = scmp.ne.s32.totalorder %s260, %s274
      %p276 = scmp.eq.s32.totalorder %s42, 0
      %p277 = por %p275, %p276
      %s278 = ssub.s32 %s43, %s55
      %s279 = ssub.s32 %s44, %s51
      %s280 = sor.u32 %s278, %s279
      %p281 = scmp.eq.s32.totalorder %s280, 0
      %s283 = sadd.s32 %s282, 1
      %s284 = scalar_select %p281, %s282, %s283
      %p287 = pneg %p281
      %p288 = scmp.eq.s32.totalorder %s36, 3
      %p289 = por %p287, %p288
      %p290 = scmp.ne.s32.totalorder %s282, %s285
      %p291 = scmp.eq.s32.totalorder %s36, 0
      %p292 = por %p290, %p291
      %p293 = scmp.ne.s32.totalorder %s282, %s285
      %p294 = scmp.eq.s32.totalorder %s41, 3
      %p295 = por %p293, %p294
      %p296 = scmp.ne.s32.totalorder %s285, %s286
      %p297 = scmp.eq.s32.totalorder %s41, 0
      %p298 = por %p296, %p297
      %p299 = scmp.ne.s32.totalorder %s285, %s286
      %p300 = scmp.eq.s32.totalorder %s42, 3
      %p301 = por %p299, %p300
      %p303 = scmp.ne.s32.totalorder %s286, %s302
      %p304 = scmp.eq.s32.totalorder %s42, 0
      %p305 = por %p303, %p304
      %p306 = scmp.le.s32.totalorder 1, %s36
      %p307 = scmp.lt.s32.totalorder %s36, 5
      %p308 = pnand %p306, %p307
      %p309 = pneg %p308
      // Predicated region
      $region9: #{tpu_custom_call.1} parent=5 // pred_check
        _
      $region10: #{tpu_custom_call.1} parent=5 // pred_check_branch
        %311 = sbr.rel (%p308) target = $region12
      $region11: #{tpu_custom_call.1} parent=5 // pred_region
        %s312 = ssub.s32 %s36, 1
        // Predicated region
        $region13: #{tpu_custom_call.1} parent=11 // pred_check
          %p313 = pneg %p69
        $region14: #{tpu_custom_call.1} parent=11 // pred_check_branch
          %315 = sbr.rel (%p313) target = $region16
        $region15: #{tpu_custom_call.1} parent=11 // pred_region
          %317 = vsyncadd [#allocation10], 0
          %s319 = sshll.u32 %s1, 4
          %s320 = int_to_ptr.vmem [resolvable:$true] %s319
          %322 = dma.vmem_to_smem %s320, 32, [#allocation7], [#allocation10]
        $region16: #{tpu_custom_call.1} parent=11 // pred_fallthru
          _
        // Predicated region
        $region17: #{tpu_custom_call.1} parent=11 // pred_check
          %p323 = pneg %p90
        $region18: #{tpu_custom_call.1} parent=11 // pred_check_branch
          %325 = sbr.rel (%p323) target = $region20
        $region19: #{tpu_custom_call.1} parent=11 // pred_region
          _
        $region20: #{tpu_custom_call.1} parent=11 // pred_fallthru
          _
        // Predicated region
        $region21: #{tpu_custom_call.1} parent=11 // pred_check
          %p326 = pneg %p165
        $region22: #{tpu_custom_call.1} parent=11 // pred_check_branch
          %328 = sbr.rel (%p326) target = $region24
        $region23: #{tpu_custom_call.1} parent=11 // pred_region
          %330 = vsyncadd [#allocation13], 0
          %s331 = sshll.u32 %s5, 4
          %s332 = int_to_ptr.hbm [resolvable:$true] %s331
          %s333 = sshll.u32 [#allocation14], 4
          %s334 = int_to_ptr.vmem [resolvable:$true] %s333
          %339 = dma.hbm_to_vmem [thread:$0]  %s332, 9216, %s334, [#allocation13], 64, 64, 4
        $region24: #{tpu_custom_call.1} parent=11 // pred_fallthru
          _
        // Predicated region
        $region25: #{tpu_custom_call.1} parent=11 // pred_check
          %p340 = pneg %p186
        $region26: #{tpu_custom_call.1} parent=11 // pred_check_branch
          %342 = sbr.rel (%p340) target = $region28
        $region27: #{tpu_custom_call.1} parent=11 // pred_region
          _
        $region28: #{tpu_custom_call.1} parent=11 // pred_fallthru
          _
        // Predicated region
        $region29: #{tpu_custom_call.1} parent=11 // pred_check
          %p343 = pneg %p207
        $region30: #{tpu_custom_call.1} parent=11 // pred_check_branch
          %345 = sbr.rel (%p343) target = $region32
        $region31: #{tpu_custom_call.1} parent=11 // pred_region
          %347 = vsyncadd [#allocation16], 0
          %s348 = sshll.u32 %s7, 4
          %s349 = int_to_ptr.hbm [resolvable:$true] %s348
          %s350 = sshll.u32 [#allocation15], 4
          %s351 = int_to_ptr.vmem [resolvable:$true] %s350
          %356 = dma.hbm_to_vmem [thread:$0]  %s349, 1024, %s351, [#allocation16], 64, 64, 4
        $region32: #{tpu_custom_call.1} parent=11 // pred_fallthru
          _
        // Predicated region
        $region33: #{tpu_custom_call.1} parent=11 // pred_check
          %p357 = pneg %p228
        $region34: #{tpu_custom_call.1} parent=11 // pred_check_branch
          %359 = sbr.rel (%p357) target = $region36
        $region35: #{tpu_custom_call.1} parent=11 // pred_region
          _
        $region36: #{tpu_custom_call.1} parent=11 // pred_fallthru
          _
        // Predicated region
        $region37: #{tpu_custom_call.1} parent=11 // pred_check
          %p360 = pneg %p249
        $region38: #{tpu_custom_call.1} parent=11 // pred_check_branch
          %362 = sbr.rel (%p360) target = $region40
        $region39: #{tpu_custom_call.1} parent=11 // pred_region
          _
        $region40: #{tpu_custom_call.1} parent=11 // pred_fallthru
          _
        // Predicated region
        $region41: #{tpu_custom_call.1} parent=11 // pred_check
          %p363 = pneg %p270
        $region42: #{tpu_custom_call.1} parent=11 // pred_check_branch
          %365 = sbr.rel (%p363) target = $region44
        $region43: #{tpu_custom_call.1} parent=11 // pred_region
          _
        $region44: #{tpu_custom_call.1} parent=11 // pred_fallthru
          _
      $region12: #{tpu_custom_call.1} parent=5 // pred_fallthru
        _
      %p366 = scmp.lt.s32.totalorder %s36, 4
      // Predicated region
      $region45: #{tpu_custom_call.1} parent=5 // pred_check
        %p367 = pneg %p366
      $region46: #{tpu_custom_call.1} parent=5 // pred_check_branch
        %369 = sbr.rel (%p367) target = $region48
      $region47: #{tpu_custom_call.1} parent=5 // pred_region
        // Predicated region
        $region49: #{tpu_custom_call.1} parent=47 // pred_check
          %p370 = pneg %p110
        $region50: #{tpu_custom_call.1} parent=47 // pred_check_branch
          %372 = sbr.rel (%p370) target = $region52
        $region51: #{tpu_custom_call.1} parent=47 // pred_region
          %s373 = sand.u32 %s100, 1
          %s374 = scalar_lea.sflag [#allocation8], %s373
          %s375 = sand.u32 %s100, 1
          %s376 = smul.addr %s375, 64
          %s377 = scalar_lea.vmem [#allocation11], %s376
          %379 = vsyncadd %s374, 0
          %s380 = smul.addr %s43, 8
          %s381 = smul.addr %s380, 8
          %s382 = scalar_lea.hbm %s3, %s381
          %s383 = sshll.u32 %s382, 4
          %s384 = int_to_ptr.hbm [resolvable:$true] %s383
          %s385 = sshll.u32 %s377, 4
          %s386 = int_to_ptr.vmem [resolvable:$true] %s385
          %391 = dma.hbm_to_vmem [thread:$0]  %s384, 1024, %s386, %s374, 128, 128, 8
        $region52: #{tpu_custom_call.1} parent=47 // pred_fallthru
          _
        // Predicated region
        $region53: #{tpu_custom_call.1} parent=47 // pred_check
          %p392 = pneg %p138
        $region54: #{tpu_custom_call.1} parent=47 // pred_check_branch
          %394 = sbr.rel (%p392) target = $region56
        $region55: #{tpu_custom_call.1} parent=47 // pred_region
          %s395 = sand.u32 %s36, 1
          %s396 = scalar_lea.sflag [#allocation13], %s395
          %s397 = sand.u32 %s128, 1
          %s398 = smul.addr %s397, 128
          %s399 = scalar_lea.vmem [#allocation12], %s398
          %s400 = smul.u32 16, %s44
          %402 = vsyncadd %s396, 0
          %s403 = smul.addr %s43, 32
          %s404 = sadd.s32 %s400, %s403
          %s405 = smul.addr %s404, 8
          %s406 = scalar_lea.hbm %s4, %s405
          %s407 = sshll.u32 %s406, 4
          %s408 = int_to_ptr.hbm [resolvable:$true] %s407
          %s409 = sshll.u32 %s399, 4
          %s410 = int_to_ptr.vmem [resolvable:$true] %s409
          %415 = dma.hbm_to_vmem [thread:$0]  %s408, 2048, %s410, %s396, 128, 128, 8
        $region56: #{tpu_custom_call.1} parent=47 // pred_fallthru
          _
      $region48: #{tpu_custom_call.1} parent=5 // pred_fallthru
        _
      %p416 = scmp.le.s32.totalorder 1, %s36
      %p417 = scmp.lt.s32.totalorder %s36, 5
      %p418 = pnand %p416, %p417
      %p419 = pneg %p418
      // Predicated region
      $region57: #{tpu_custom_call.1} parent=5 // pred_check
        _
      $region58: #{tpu_custom_call.1} parent=5 // pred_check_branch
        %421 = sbr.rel (%p418) target = $region60
      $region59: #{tpu_custom_call.1} parent=5 // pred_region
        %s422 = ssub.s32 %s36, 1
        // Predicated region
        $region61: #{tpu_custom_call.1} parent=59 // pred_check
          %p423 = pneg %p69
        $region62: #{tpu_custom_call.1} parent=59 // pred_check_branch
          %425 = sbr.rel (%p423) target = $region64
        $region63: #{tpu_custom_call.1} parent=59 // pred_region
          %427 = dma.done [#allocation10], 32
        $region64: #{tpu_custom_call.1} parent=59 // pred_fallthru
          _
        %s428 = sand.u32 %s103, 1
        %s429 = scalar_lea.sflag [#allocation8], %s428
        %s430 = sand.u32 %s103, 1
        %s431 = smul.addr %s430, 64
        %s432 = scalar_lea.vmem [#allocation11], %s431
        // Predicated region
        $region65: #{tpu_custom_call.1} parent=59 // pred_check
          %p433 = pneg %p116
        $region66: #{tpu_custom_call.1} parent=59 // pred_check_branch
          %435 = sbr.rel (%p433) target = $region68
        $region67: #{tpu_custom_call.1} parent=59 // pred_region
          %437 = dma.done %s429, 1024
        $region68: #{tpu_custom_call.1} parent=59 // pred_fallthru
          _
        %s438 = sand.u32 %s41, 1
        %s439 = scalar_lea.sflag [#allocation13], %s438
        %s440 = sand.u32 %s131, 1
        %s441 = smul.addr %s440, 128
        %s442 = scalar_lea.vmem [#allocation12], %s441
        // Predicated region
        $region69: #{tpu_custom_call.1} parent=59 // pred_check
          %p443 = pneg %p144
        $region70: #{tpu_custom_call.1} parent=59 // pred_check_branch
          %445 = sbr.rel (%p443) target = $region72
        $region71: #{tpu_custom_call.1} parent=59 // pred_region
          %447 = dma.done %s439, 2048
        $region72: #{tpu_custom_call.1} parent=59 // pred_fallthru
          _
        // Predicated region
        $region73: #{tpu_custom_call.1} parent=59 // pred_check
          %p448 = pneg %p165
        $region74: #{tpu_custom_call.1} parent=59 // pred_check_branch
          %450 = sbr.rel (%p448) target = $region76
        $region75: #{tpu_custom_call.1} parent=59 // pred_region
          %452 = dma.done [#allocation13], 9216
        $region76: #{tpu_custom_call.1} parent=59 // pred_fallthru
          _
        // Predicated region
        $region77: #{tpu_custom_call.1} parent=59 // pred_check
          %p453 = pneg %p207
        $region78: #{tpu_custom_call.1} parent=59 // pred_check_branch
          %455 = sbr.rel (%p453) target = $region80
        $region79: #{tpu_custom_call.1} parent=59 // pred_region
          %457 = dma.done [#allocation16], 1024
        $region80: #{tpu_custom_call.1} parent=59 // pred_fallthru
          _
        %458 = sfence
        %p459 = pneg %p69
        %p460 = pneg %p66
        %p461 = pneg %p90
        %p462 = pneg %p87
        %s463 = sand.u32 %s103, 1
        %s464 = scalar_lea.sflag [#allocation8], %s463
        %s465 = sand.u32 %s103, 1
        %s466 = smul.addr %s465, 64
        %s467 = scalar_lea.vmem [#allocation11], %s466
        %p468 = pneg %p116
        %p469 = pneg %p113
        %s470 = sand.u32 %s41, 1
        %s471 = scalar_lea.sflag [#allocation13], %s470
        %s472 = sand.u32 %s131, 1
        %s473 = smul.addr %s472, 128
        %s474 = scalar_lea.vmem [#allocation12], %s473
        %p475 = pneg %p144
        %p476 = pneg %p141
        %p477 = pneg %p165
        %p478 = pneg %p162
        %p479 = pneg %p186
        %p480 = pneg %p183
        %p481 = pneg %p207
        %p482 = pneg %p204
        %p483 = pneg %p228
        %p484 = pneg %p225
        %p485 = pneg %p249
        %p486 = pneg %p246
        %p487 = pneg %p270
        %p488 = pneg %p267
        %p489 = pneg %p298
        %p490 = pneg %p295
        %s491 = sand.u32 %s285, 1
        %s492 = scalar_lea.sflag [#allocation9], %s491
        %s493 = sand.u32 %s285, 1
        %s494 = smul.addr %s493, 128
        %s495 = scalar_lea.vmem [#allocation17], %s494
        %s496 = smul.u32 16, %s46
        %s497 = smul.u32 16, %s46
        %v498 = vld [vmem:[%s2] sm:$0xff]
        %v499 = vld [vmem:[%s2 + $0x8] sm:$0xff]
        %s500 = smul.u32 %s46, 128
        %s501 = sadd.s32 %s500, 20
        %s502 = sld [smem:[#allocation6 + %s501]]
        %s503 = smul.u32 %s502, 8
        %s504 = scalar_lea.vmem %s432, %s503 [#allocation11]
        %v505 = vld [vmem:[%s504] sm:$0xff]
        %vm506 = vcmask 64512
        %v508 = vsel %vm506, %v498, 0
        %v511 = vsel %vm506, %v499, 0
        %513 = vmatpush.msra.mxu0 0.0
        %514 = vmatpush.msra.mxu0 0.0
        %515 = vmatpush.msra.mxu0 0.0
        %516 = vmatpush.msra.mxu0 0.0
        %517 = vmatpush.msra.mxu0 0.0
        %518 = vmatpush.msra.mxu0 0.0
        %519 = vmatpush.msra.mxu0 0.0
        %520 = vmatpush.msra.mxu0 0.0
        %521 = vmatpush.msra.mxu0 0.0
        %522 = vmatpush.msra.mxu0 0.0
        %523 = vmatpush.msra.mxu0 0.0
        %524 = vmatpush.msra.mxu0 0.0
        %525 = vmatpush.msra.mxu0 0.0
        %526 = vmatpush.msra.mxu0 0.0
        %527 = vmatpush.msra.mxu0 0.0
        %528 = vmatpush.msra.mxu0 %v505
        %529 = vmatmul.f32.gmra.mxu0 %v508
        %v530 = vpop.f32.mrf.mxu0
        %v531 = vadd.f32 0.0, %v530
        %532 = vmatmul.f32.gmra.mxu0 %v511
        %v533 = vpop.f32.mrf.mxu0
        %v534 = vadd.f32 0.0, %v533
        %535 = vdwg.mxu0
        %536 = vst [vmem:[#allocation2] sm:$0xff] %v531
        %537 = vst [vmem:[#allocation2 + $0x8] sm:$0xff] %v534
        %s538 = sadd.s32 %s502, 1
        %s539 = smul.u32 %s538, 8
        %s540 = scalar_lea.vmem %s432, %s539 [#allocation11]
        %v541 = vld [vmem:[%s540] sm:$0xff]
        %542 = vmatpush.msra.mxu0 0.0
        %543 = vmatpush.msra.mxu0 0.0
        %544 = vmatpush.msra.mxu0 0.0
        %545 = vmatpush.msra.mxu0 0.0
        %546 = vmatpush.msra.mxu0 0.0
        %547 = vmatpush.msra.mxu0 0.0
        %548 = vmatpush.msra.mxu0 0.0
        %549 = vmatpush.msra.mxu0 0.0
        %550 = vmatpush.msra.mxu0 0.0
        %551 = vmatpush.msra.mxu0 0.0
        %552 = vmatpush.msra.mxu0 0.0
        %553 = vmatpush.msra.mxu0 0.0
        %554 = vmatpush.msra.mxu0 0.0
        %555 = vmatpush.msra.mxu0 0.0
        %556 = vmatpush.msra.mxu0 0.0
        %557 = vmatpush.msra.mxu0 %v541
        %558 = vmatmul.f32.gmra.mxu0 %v508
        %v559 = vpop.f32.mrf.mxu0
        %v560 = vadd.f32 0.0, %v559
        %561 = vmatmul.f32.gmra.mxu0 %v511
        %v562 = vpop.f32.mrf.mxu0
        %v563 = vadd.f32 0.0, %v562
        %564 = vdwg.mxu0
        %s565 = scalar_lea.vmem [#allocation2], 16
        %566 = vst [vmem:[%s565] sm:$0xff] %v560
        %567 = vst [vmem:[%s565 + $0x8] sm:$0xff] %v563
        %s568 = sadd.s32 %s502, 2
        %s569 = smul.u32 %s568, 8
        %s570 = scalar_lea.vmem %s432, %s569 [#allocation11]
        %v571 = vld [vmem:[%s570] sm:$0xff]
        %572 = vmatpush.msra.mxu0 0.0
        %573 = vmatpush.msra.mxu0 0.0
        %574 = vmatpush.msra.mxu0 0.0
        %575 = vmatpush.msra.mxu0 0.0
        %576 = vmatpush.msra.mxu0 0.0
        %577 = vmatpush.msra.mxu0 0.0
        %578 = vmatpush.msra.mxu0 0.0
        %579 = vmatpush.msra.mxu0 0.0
        %580 = vmatpush.msra.mxu0 0.0
        %581 = vmatpush.msra.mxu0 0.0
        %582 = vmatpush.msra.mxu0 0.0
        %583 = vmatpush.msra.mxu0 0.0
        %584 = vmatpush.msra.mxu0 0.0
        %585 = vmatpush.msra.mxu0 0.0
        %586 = vmatpush.msra.mxu0 0.0
        %587 = vmatpush.msra.mxu0 %v571
        %588 = vmatmul.f32.gmra.mxu0 %v508
        %v589 = vpop.f32.mrf.mxu0
        %v590 = vadd.f32 0.0, %v589
        %591 = vmatmul.f32.gmra.mxu0 %v511
        %v592 = vpop.f32.mrf.mxu0
        %v593 = vadd.f32 0.0, %v592
        %594 = vdwg.mxu0
        %s595 = scalar_lea.vmem [#allocation2], 32
        %596 = vst [vmem:[%s595] sm:$0xff] %v590
        %597 = vst [vmem:[%s595 + $0x8] sm:$0xff] %v593
        %s598 = sadd.s32 %s502, 3
        %s599 = smul.u32 %s598, 8
        %s600 = scalar_lea.vmem %s432, %s599 [#allocation11]
        %v601 = vld [vmem:[%s600] sm:$0xff]
        %602 = vmatpush.msra.mxu0 0.0
        %603 = vmatpush.msra.mxu0 0.0
        %604 = vmatpush.msra.mxu0 0.0
        %605 = vmatpush.msra.mxu0 0.0
        %606 = vmatpush.msra.mxu0 0.0
        %607 = vmatpush.msra.mxu0 0.0
        %608 = vmatpush.msra.mxu0 0.0
        %609 = vmatpush.msra.mxu0 0.0
        %610 = vmatpush.msra.mxu0 0.0
        %611 = vmatpush.msra.mxu0 0.0
        %612 = vmatpush.msra.mxu0 0.0
        %613 = vmatpush.msra.mxu0 0.0
        %614 = vmatpush.msra.mxu0 0.0
        %615 = vmatpush.msra.mxu0 0.0
        %616 = vmatpush.msra.mxu0 0.0
        %617 = vmatpush.msra.mxu0 %v601
        %618 = vmatmul.f32.gmra.mxu0 %v508
        %v619 = vpop.f32.mrf.mxu0
        %v620 = vadd.f32 0.0, %v619
        %621 = vmatmul.f32.gmra.mxu0 %v511
        %v622 = vpop.f32.mrf.mxu0
        %v623 = vadd.f32 0.0, %v622
        %624 = vdwg.mxu0
        %s625 = scalar_lea.vmem [#allocation2], 48
        %626 = vst [vmem:[%s625] sm:$0xff] %v620
        %627 = vst [vmem:[%s625 + $0x8] sm:$0xff] %v623
        %s628 = sadd.s32 %s502, 4
        %s629 = smul.u32 %s628, 8
        %s630 = scalar_lea.vmem %s432, %s629 [#allocation11]
        %v631 = vld [vmem:[%s630] sm:$0xff]
        %632 = vmatpush.msra.mxu0 0.0
        %633 = vmatpush.msra.mxu0 0.0
        %634 = vmatpush.msra.mxu0 0.0
        %635 = vmatpush.msra.mxu0 0.0
        %636 = vmatpush.msra.mxu0 0.0
        %637 = vmatpush.msra.mxu0 0.0
        %638 = vmatpush.msra.mxu0 0.0
        %639 = vmatpush.msra.mxu0 0.0
        %640 = vmatpush.msra.mxu0 0.0
        %641 = vmatpush.msra.mxu0 0.0
        %642 = vmatpush.msra.mxu0 0.0
        %643 = vmatpush.msra.mxu0 0.0
        %644 = vmatpush.msra.mxu0 0.0
        %645 = vmatpush.msra.mxu0 0.0
        %646 = vmatpush.msra.mxu0 0.0
        %647 = vmatpush.msra.mxu0 %v631
        %648 = vmatmul.f32.gmra.mxu0 %v508
        %v649 = vpop.f32.mrf.mxu0
        %v650 = vadd.f32 0.0, %v649
        %651 = vmatmul.f32.gmra.mxu0 %v511
        %v652 = vpop.f32.mrf.mxu0
        %v653 = vadd.f32 0.0, %v652
        %654 = vdwg.mxu0
        %s655 = scalar_lea.vmem [#allocation2], 64
        %656 = vst [vmem:[%s655] sm:$0xff] %v650
        %657 = vst [vmem:[%s655 + $0x8] sm:$0xff] %v653
        %s658 = sld [smem:[#allocation6 + %s500]]
        %s659 = sadd.s32 %s500, 1
        %s660 = sld [smem:[#allocation6 + %s659]]
        %s661 = sld [smem:[#allocation7 + %s500]]
        %s662 = sld [smem:[#allocation7 + %s659]]
        %s663 = smul.u32 %s658, 16
        %s664 = scalar_lea.vmem [#allocation2], %s663
        %v665 = vld [vmem:[%s664] sm:$0xff]
        %v666 = vld [vmem:[%s664 + $0x8] sm:$0xff]
        %v667 = vstv %s661
        %v668 = vmul.f32 %v667, %v665
        %v669 = vmul.f32 %v667, %v666
        %s670 = smul.u32 %s660, 16
        %s671 = scalar_lea.vmem [#allocation2], %s670
        %v672 = vld [vmem:[%s671] sm:$0xff]
        %v673 = vld [vmem:[%s671 + $0x8] sm:$0xff]
        %v674 = vstv %s662
        %v675 = vmul.f32 %v674, %v672
        %v676 = vmul.f32 %v674, %v673
        %v677 = vadd.f32 %v668, %v675
        %v678 = vadd.f32 %v669, %v676
        %679 = vst [vmem:[#allocation3 + $0x8] sm:$0xff] %v677
        %680 = vst [vmem:[#allocation3 + $0x10] sm:$0xff] %v678
        %s681 = sadd.s32 %s500, 2
        %s682 = sld [smem:[#allocation6 + %s681]]
        %s683 = sadd.s32 %s500, 3
        %s684 = sld [smem:[#allocation6 + %s683]]
        %s685 = sld [smem:[#allocation7 + %s681]]
        %s686 = sld [smem:[#allocation7 + %s683]]
        %s687 = smul.u32 %s682, 16
        %s688 = scalar_lea.vmem [#allocation2], %s687
        %v689 = vld [vmem:[%s688] sm:$0xff]
        %v690 = vld [vmem:[%s688 + $0x8] sm:$0xff]
        %v691 = vstv %s685
        %v692 = vmul.f32 %v691, %v689
        %v693 = vmul.f32 %v691, %v690
        %s694 = smul.u32 %s684, 16
        %s695 = scalar_lea.vmem [#allocation2], %s694
        %v696 = vld [vmem:[%s695] sm:$0xff]
        %v697 = vld [vmem:[%s695 + $0x8] sm:$0xff]
        %v698 = vstv %s686
        %v699 = vmul.f32 %v698, %v696
        %v700 = vmul.f32 %v698, %v697
        %v701 = vadd.f32 %v692, %v699
        %v702 = vadd.f32 %v693, %v700
        %703 = vst [vmem:[#allocation3 + $0x18] sm:$0xff] %v701
        %704 = vst [vmem:[#allocation3 + $0x20] sm:$0xff] %v702
        %s705 = sadd.s32 %s500, 4
        %s706 = sld [smem:[#allocation6 + %s705]]
        %s707 = sadd.s32 %s500, 5
        %s708 = sld [smem:[#allocation6 + %s707]]
        %s709 = sld [smem:[#allocation7 + %s705]]
        %s710 = sld [smem:[#allocation7 + %s707]]
        %s711 = smul.u32 %s706, 16
        %s712 = scalar_lea.vmem [#allocation2], %s711
        %v713 = vld [vmem:[%s712] sm:$0xff]
        %v714 = vld [vmem:[%s712 + $0x8] sm:$0xff]
        %v715 = vstv %s709
        %v716 = vmul.f32 %v715, %v713
        %v717 = vmul.f32 %v715, %v714
        %s718 = smul.u32 %s708, 16
        %s719 = scalar_lea.vmem [#allocation2], %s718
        %v720 = vld [vmem:[%s719] sm:$0xff]
        %v721 = vld [vmem:[%s719 + $0x8] sm:$0xff]
        %v722 = vstv %s710
        %v723 = vmul.f32 %v722, %v720
        %v724 = vmul.f32 %v722, %v721
        %v725 = vadd.f32 %v716, %v723
        %v726 = vadd.f32 %v717, %v724
        %727 = vst [vmem:[#allocation3 + $0x28] sm:$0xff] %v725
        %728 = vst [vmem:[#allocation3 + $0x30] sm:$0xff] %v726
        %s729 = sadd.s32 %s500, 6
        %s730 = sld [smem:[#allocation6 + %s729]]
        %s731 = sadd.s32 %s500, 7
        %s732 = sld [smem:[#allocation6 + %s731]]
        %s733 = sld [smem:[#allocation7 + %s729]]
        %s734 = sld [smem:[#allocation7 + %s731]]
        %s735 = smul.u32 %s730, 16
        %s736 = scalar_lea.vmem [#allocation2], %s735
        %v737 = vld [vmem:[%s736] sm:$0xff]
        %v738 = vld [vmem:[%s736 + $0x8] sm:$0xff]
        %v739 = vstv %s733
        %v740 = vmul.f32 %v739, %v737
        %v741 = vmul.f32 %v739, %v738
        %s742 = smul.u32 %s732, 16
        %s743 = scalar_lea.vmem [#allocation2], %s742
        %v744 = vld [vmem:[%s743] sm:$0xff]
        %v745 = vld [vmem:[%s743 + $0x8] sm:$0xff]
        %v746 = vstv %s734
        %v747 = vmul.f32 %v746, %v744
        %v748 = vmul.f32 %v746, %v745
        %v749 = vadd.f32 %v740, %v747
        %v750 = vadd.f32 %v741, %v748
        %751 = vst [vmem:[#allocation3 + $0x38] sm:$0xff] %v749
        %752 = vst [vmem:[#allocation3 + $0x40] sm:$0xff] %v750
        %s753 = sadd.s32 %s500, 8
        %s754 = sld [smem:[#allocation6 + %s753]]
        %s755 = sadd.s32 %s500, 9
        %s756 = sld [smem:[#allocation6 + %s755]]
        %s757 = sld [smem:[#allocation7 + %s753]]
        %s758 = sld [smem:[#allocation7 + %s755]]
        %s759 = smul.u32 %s754, 16
        %s760 = scalar_lea.vmem [#allocation2], %s759
        %v761 = vld [vmem:[%s760] sm:$0xff]
        %v762 = vld [vmem:[%s760 + $0x8] sm:$0xff]
        %v763 = vstv %s757
        %v764 = vmul.f32 %v763, %v761
        %v765 = vmul.f32 %v763, %v762
        %s766 = smul.u32 %s756, 16
        %s767 = scalar_lea.vmem [#allocation2], %s766
        %v768 = vld [vmem:[%s767] sm:$0xff]
        %v769 = vld [vmem:[%s767 + $0x8] sm:$0xff]
        %v770 = vstv %s758
        %v771 = vmul.f32 %v770, %v768
        %v772 = vmul.f32 %v770, %v769
        %v773 = vadd.f32 %v764, %v771
        %v774 = vadd.f32 %v765, %v772
        %775 = vst [vmem:[#allocation3 + $0x48] sm:$0xff] %v773
        %776 = vst [vmem:[#allocation3 + $0x50] sm:$0xff] %v774
        %s777 = sadd.s32 %s500, 10
        %s778 = sld [smem:[#allocation6 + %s777]]
        %s779 = sadd.s32 %s500, 11
        %s780 = sld [smem:[#allocation6 + %s779]]
        %s781 = sld [smem:[#allocation7 + %s777]]
        %s782 = sld [smem:[#allocation7 + %s779]]
        %s783 = smul.u32 %s778, 16
        %s784 = scalar_lea.vmem [#allocation2], %s783
        %v785 = vld [vmem:[%s784] sm:$0xff]
        %v786 = vld [vmem:[%s784 + $0x8] sm:$0xff]
        %v787 = vstv %s781
        %v788 = vmul.f32 %v787, %v785
        %v789 = vmul.f32 %v787, %v786
        %s790 = smul.u32 %s780, 16
        %s791 = scalar_lea.vmem [#allocation2], %s790
        %v792 = vld [vmem:[%s791] sm:$0xff]
        %v793 = vld [vmem:[%s791 + $0x8] sm:$0xff]
        %v794 = vstv %s782
        %v795 = vmul.f32 %v794, %v792
        %v796 = vmul.f32 %v794, %v793
        %v797 = vadd.f32 %v788, %v795
        %v798 = vadd.f32 %v789, %v796
        %799 = vst [vmem:[#allocation3 + $0x58] sm:$0xff] %v797
        %800 = vst [vmem:[#allocation3 + $0x60] sm:$0xff] %v798
        %s801 = sadd.s32 %s500, 12
        %s802 = sld [smem:[#allocation6 + %s801]]
        %s803 = sadd.s32 %s500, 13
        %s804 = sld [smem:[#allocation6 + %s803]]
        %s805 = sld [smem:[#allocation7 + %s801]]
        %s806 = sld [smem:[#allocation7 + %s803]]
        %s807 = smul.u32 %s802, 16
        %s808 = scalar_lea.vmem [#allocation2], %s807
        %v809 = vld [vmem:[%s808] sm:$0xff]
        %v810 = vld [vmem:[%s808 + $0x8] sm:$0xff]
        %v811 = vstv %s805
        %v812 = vmul.f32 %v811, %v809
        %v813 = vmul.f32 %v811, %v810
        %s814 = smul.u32 %s804, 16
        %s815 = scalar_lea.vmem [#allocation2], %s814
        %v816 = vld [vmem:[%s815] sm:$0xff]
        %v817 = vld [vmem:[%s815 + $0x8] sm:$0xff]
        %v818 = vstv %s806
        %v819 = vmul.f32 %v818, %v816
        %v820 = vmul.f32 %v818, %v817
        %v821 = vadd.f32 %v812, %v819
        %v822 = vadd.f32 %v813, %v820
        %823 = vst [vmem:[#allocation3 + $0x68] sm:$0xff] %v821
        %824 = vst [vmem:[#allocation3 + $0x70] sm:$0xff] %v822
        %s825 = sadd.s32 %s500, 14
        %s826 = sld [smem:[#allocation6 + %s825]]
        %s827 = sadd.s32 %s500, 15
        %s828 = sld [smem:[#allocation6 + %s827]]
        %s829 = sld [smem:[#allocation7 + %s825]]
        %s830 = sld [smem:[#allocation7 + %s827]]
        %s831 = smul.u32 %s826, 16
        %s832 = scalar_lea.vmem [#allocation2], %s831
        %v833 = vld [vmem:[%s832] sm:$0xff]
        %v834 = vld [vmem:[%s832 + $0x8] sm:$0xff]
        %v835 = vstv %s829
        %v836 = vmul.f32 %v835, %v833
        %v837 = vmul.f32 %v835, %v834
        %s838 = smul.u32 %s828, 16
        %s839 = scalar_lea.vmem [#allocation2], %s838
        %v840 = vld [vmem:[%s839] sm:$0xff]
        %v841 = vld [vmem:[%s839 + $0x8] sm:$0xff]
        %v842 = vstv %s830
        %v843 = vmul.f32 %v842, %v840
        %v844 = vmul.f32 %v842, %v841
        %v845 = vadd.f32 %v836, %v843
        %v846 = vadd.f32 %v837, %v844
        %847 = vst [vmem:[#allocation3 + $0x78] sm:$0xff] %v845
        %848 = vst [vmem:[#allocation3 + $0x80] sm:$0xff] %v846
        %s849 = sadd.s32 %s500, 16
        %s850 = sld [smem:[#allocation6 + %s849]]
        %s851 = sadd.s32 %s500, 17
        %s852 = sld [smem:[#allocation6 + %s851]]
        %s853 = sld [smem:[#allocation7 + %s849]]
        %s854 = sld [smem:[#allocation7 + %s851]]
        %s855 = smul.u32 %s850, 16
        %s856 = scalar_lea.vmem [#allocation2], %s855
        %v857 = vld [vmem:[%s856] sm:$0xff]
        %v858 = vld [vmem:[%s856 + $0x8] sm:$0xff]
        %v859 = vstv %s853
        %v860 = vmul.f32 %v859, %v857
        %v861 = vmul.f32 %v859, %v858
        %s862 = smul.u32 %s852, 16
        %s863 = scalar_lea.vmem [#allocation2], %s862
        %v864 = vld [vmem:[%s863] sm:$0xff]
        %v865 = vld [vmem:[%s863 + $0x8] sm:$0xff]
        %v866 = vstv %s854
        %v867 = vmul.f32 %v866, %v864
        %v868 = vmul.f32 %v866, %v865
        %v869 = vadd.f32 %v860, %v867
        %v870 = vadd.f32 %v861, %v868
        %871 = vst [vmem:[#allocation3 + $0x88] sm:$0xff] %v869
        %872 = vst [vmem:[#allocation3 + $0x90] sm:$0xff] %v870
        %s873 = sadd.s32 %s500, 18
        %s874 = sld [smem:[#allocation6 + %s873]]
        %s875 = sadd.s32 %s500, 19
        %s876 = sld [smem:[#allocation6 + %s875]]
        %s877 = sld [smem:[#allocation7 + %s873]]
        %s878 = sld [smem:[#allocation7 + %s875]]
        %s879 = smul.u32 %s874, 16
        %s880 = scalar_lea.vmem [#allocation2], %s879
        %v881 = vld [vmem:[%s880] sm:$0xff]
        %v882 = vld [vmem:[%s880 + $0x8] sm:$0xff]
        %v883 = vstv %s877
        %v884 = vmul.f32 %v883, %v881
        %v885 = vmul.f32 %v883, %v882
        %s886 = smul.u32 %s876, 16
        %s887 = scalar_lea.vmem [#allocation2], %s886
        %v888 = vld [vmem:[%s887] sm:$0xff]
        %v889 = vld [vmem:[%s887 + $0x8] sm:$0xff]
        %v890 = vstv %s878
        %v891 = vmul.f32 %v890, %v888
        %v892 = vmul.f32 %v890, %v889
        %v893 = vadd.f32 %v884, %v891
        %v894 = vadd.f32 %v885, %v892
        %895 = vst [vmem:[#allocation3 + $0x98] sm:$0xff] %v893
        %896 = vst [vmem:[#allocation3 + $0xa0] sm:$0xff] %v894
        %v897 = vlaneseq
        %v898 = vshrl.u32 %v897, 7
        %v899 = vadd.s32 %v898, 8
        %v900 = vadd.s32 %v898, 16
        %v901 = vadd.s32 %v898, 24
        %v902 = vadd.s32 %v898, 32
        %v903 = vadd.s32 %v898, 40
        %v904 = vadd.s32 %v898, 48
        %v905 = vadd.s32 %v898, 56
        %v906 = vadd.s32 %v898, 64
        %v907 = vadd.s32 %v898, 72
        %v908 = vadd.s32 %v898, 80
        %v909 = vadd.s32 %v898, 88
        %v910 = vadd.s32 %v898, 96
        %v911 = vadd.s32 %v898, 104
        %v912 = vadd.s32 %v898, 112
        %v913 = vadd.s32 %v898, 120
        %vm914 = vcmp.lt.s32.totalorder %v898, 0
        %v915 = vsub.s32 0, %v898
        %v916 = vsel %vm914, %v915, %v898
        %v917 = vshrl.u32 %v916, 4
        %v918 = vand.u32 %v916, 15
        %v919 = vsub.s32 0, %v918
        %v920 = vsel %vm914, %v919, %v918
        %vm921 = vcmp.lt.s32.totalorder %v899, 0
        %v922 = vsub.s32 0, %v899
        %v923 = vsel %vm921, %v922, %v899
        %v924 = vshrl.u32 %v923, 4
        %v925 = vand.u32 %v923, 15
        %v926 = vsub.s32 0, %v925
        %v927 = vsel %vm921, %v926, %v925
        %vm928 = vcmp.lt.s32.totalorder %v900, 0
        %v929 = vsub.s32 0, %v900
        %v930 = vsel %vm928, %v929, %v900
        %v931 = vshrl.u32 %v930, 4
        %v932 = vand.u32 %v930, 15
        %v933 = vsub.s32 0, %v932
        %v934 = vsel %vm928, %v933, %v932
        %vm935 = vcmp.lt.s32.totalorder %v901, 0
        %v936 = vsub.s32 0, %v901
        %v937 = vsel %vm935, %v936, %v901
        %v938 = vshrl.u32 %v937, 4
        %v939 = vand.u32 %v937, 15
        %v940 = vsub.s32 0, %v939
        %v941 = vsel %vm935, %v940, %v939
        %vm942 = vcmp.lt.s32.totalorder %v902, 0
        %v943 = vsub.s32 0, %v902
        %v944 = vsel %vm942, %v943, %v902
        %v945 = vshrl.u32 %v944, 4
        %v946 = vand.u32 %v944, 15
        %v947 = vsub.s32 0, %v946
        %v948 = vsel %vm942, %v947, %v946
        %vm949 = vcmp.lt.s32.totalorder %v903, 0
        %v950 = vsub.s32 0, %v903
        %v951 = vsel %vm949, %v950, %v903
        %v952 = vshrl.u32 %v951, 4
        %v953 = vand.u32 %v951, 15
        %v954 = vsub.s32 0, %v953
        %v955 = vsel %vm949, %v954, %v953
        %vm956 = vcmp.lt.s32.totalorder %v904, 0
        %v957 = vsub.s32 0, %v904
        %v958 = vsel %vm956, %v957, %v904
        %v959 = vshrl.u32 %v958, 4
        %v960 = vand.u32 %v958, 15
        %v961 = vsub.s32 0, %v960
        %v962 = vsel %vm956, %v961, %v960
        %vm963 = vcmp.lt.s32.totalorder %v905, 0
        %v964 = vsub.s32 0, %v905
        %v965 = vsel %vm963, %v964, %v905
        %v966 = vshrl.u32 %v965, 4
        %v967 = vand.u32 %v965, 15
        %v968 = vsub.s32 0, %v967
        %v969 = vsel %vm963, %v968, %v967
        %vm970 = vcmp.lt.s32.totalorder %v906, 0
        %v971 = vsub.s32 0, %v906
        %v972 = vsel %vm970, %v971, %v906
        %v973 = vshrl.u32 %v972, 4
        %v974 = vand.u32 %v972, 15
        %v975 = vsub.s32 0, %v974
        %v976 = vsel %vm970, %v975, %v974
        %vm977 = vcmp.lt.s32.totalorder %v907, 0
        %v978 = vsub.s32 0, %v907
        %v979 = vsel %vm977, %v978, %v907
        %v980 = vshrl.u32 %v979, 4
        %v981 = vand.u32 %v979, 15
        %v982 = vsub.s32 0, %v981
        %v983 = vsel %vm977, %v982, %v981
        %vm984 = vcmp.lt.s32.totalorder %v908, 0
        %v985 = vsub.s32 0, %v908
        %v986 = vsel %vm984, %v985, %v908
        %v987 = vshrl.u32 %v986, 4
        %v988 = vand.u32 %v986, 15
        %v989 = vsub.s32 0, %v988
        %v990 = vsel %vm984, %v989, %v988
        %vm991 = vcmp.lt.s32.totalorder %v909, 0
        %v992 = vsub.s32 0, %v909
        %v993 = vsel %vm991, %v992, %v909
        %v994 = vshrl.u32 %v993, 4
        %v995 = vand.u32 %v993, 15
        %v996 = vsub.s32 0, %v995
        %v997 = vsel %vm991, %v996, %v995
        %vm998 = vcmp.lt.s32.totalorder %v910, 0
        %v999 = vsub.s32 0, %v910
        %v1000 = vsel %vm998, %v999, %v910
        %v1001 = vshrl.u32 %v1000, 4
        %v1002 = vand.u32 %v1000, 15
        %v1003 = vsub.s32 0, %v1002
        %v1004 = vsel %vm998, %v1003, %v1002
        %vm1005 = vcmp.lt.s32.totalorder %v911, 0
        %v1006 = vsub.s32 0, %v911
        %v1007 = vsel %vm1005, %v1006, %v911
        %v1008 = vshrl.u32 %v1007, 4
        %v1009 = vand.u32 %v1007, 15
        %v1010 = vsub.s32 0, %v1009
        %v1011 = vsel %vm1005, %v1010, %v1009
        %vm1012 = vcmp.lt.s32.totalorder %v912, 0
        %v1013 = vsub.s32 0, %v912
        %v1014 = vsel %vm1012, %v1013, %v912
        %v1015 = vshrl.u32 %v1014, 4
        %v1016 = vand.u32 %v1014, 15
        %v1017 = vsub.s32 0, %v1016
        %v1018 = vsel %vm1012, %v1017, %v1016
        %vm1019 = vcmp.lt.s32.totalorder %v913, 0
        %v1020 = vsub.s32 0, %v913
        %v1021 = vsel %vm1019, %v1020, %v913
        %v1022 = vshrl.u32 %v1021, 4
        %v1023 = vand.u32 %v1021, 15
        %v1024 = vsub.s32 0, %v1023
        %v1025 = vsel %vm1019, %v1024, %v1023
        %vm1026 = vcmp.ne.s32.totalorder %v920, 0
        %vm1027 = vcmp.ne.s32.totalorder %v927, 0
        %vm1028 = vcmp.ne.s32.totalorder %v934, 0
        %vm1029 = vcmp.ne.s32.totalorder %v941, 0
        %vm1030 = vcmp.ne.s32.totalorder %v948, 0
        %vm1031 = vcmp.ne.s32.totalorder %v955, 0
        %vm1032 = vcmp.ne.s32.totalorder %v962, 0
        %vm1033 = vcmp.ne.s32.totalorder %v969, 0
        %vm1034 = vcmp.ne.s32.totalorder %v976, 0
        %vm1035 = vcmp.ne.s32.totalorder %v983, 0
        %vm1036 = vcmp.ne.s32.totalorder %v990, 0
        %vm1037 = vcmp.ne.s32.totalorder %v997, 0
        %vm1038 = vcmp.ne.s32.totalorder %v1004, 0
        %vm1039 = vcmp.ne.s32.totalorder %v1011, 0
        %vm1040 = vcmp.ne.s32.totalorder %v1018, 0
        %vm1041 = vcmp.ne.s32.totalorder %v1025, 0
        %vm1042 = vcmp.lt.s32.totalorder %v920, 0
        %vm1043 = vcmp.lt.s32.totalorder %v927, 0
        %vm1044 = vcmp.lt.s32.totalorder %v934, 0
        %vm1045 = vcmp.lt.s32.totalorder %v941, 0
        %vm1046 = vcmp.lt.s32.totalorder %v948, 0
        %vm1047 = vcmp.lt.s32.totalorder %v955, 0
        %vm1048 = vcmp.lt.s32.totalorder %v962, 0
        %vm1049 = vcmp.lt.s32.totalorder %v969, 0
        %vm1050 = vcmp.lt.s32.totalorder %v976, 0
        %vm1051 = vcmp.lt.s32.totalorder %v983, 0
        %vm1052 = vcmp.lt.s32.totalorder %v990, 0
        %vm1053 = vcmp.lt.s32.totalorder %v997, 0
        %vm1054 = vcmp.lt.s32.totalorder %v1004, 0
        %vm1055 = vcmp.lt.s32.totalorder %v1011, 0
        %vm1056 = vcmp.lt.s32.totalorder %v1018, 0
        %vm1057 = vcmp.lt.s32.totalorder %v1025, 0
        %vm1058 = vmand %vm1042, %vm1026
        %vm1059 = vmand %vm1043, %vm1027
        %vm1060 = vmand %vm1044, %vm1028
        %vm1061 = vmand %vm1045, %vm1029
        %vm1062 = vmand %vm1046, %vm1030
        %vm1063 = vmand %vm1047, %vm1031
        %vm1064 = vmand %vm1048, %vm1032
        %vm1065 = vmand %vm1049, %vm1033
        %vm1066 = vmand %vm1050, %vm1034
        %vm1067 = vmand %vm1051, %vm1035
        %vm1068 = vmand %vm1052, %vm1036
        %vm1069 = vmand %vm1053, %vm1037
        %vm1070 = vmand %vm1054, %vm1038
        %vm1071 = vmand %vm1055, %vm1039
        %vm1072 = vmand %vm1056, %vm1040
        %vm1073 = vmand %vm1057, %vm1041
        %v1074 = vadd.s32 %v920, 16
        %v1075 = vadd.s32 %v927, 16
        %v1076 = vadd.s32 %v934, 16
        %v1077 = vadd.s32 %v941, 16
        %v1078 = vadd.s32 %v948, 16
        %v1079 = vadd.s32 %v955, 16
        %v1080 = vadd.s32 %v962, 16
        %v1081 = vadd.s32 %v969, 16
        %v1082 = vadd.s32 %v976, 16
        %v1083 = vadd.s32 %v983, 16
        %v1084 = vadd.s32 %v990, 16
        %v1085 = vadd.s32 %v997, 16
        %v1086 = vadd.s32 %v1004, 16
        %v1087 = vadd.s32 %v1011, 16
        %v1088 = vadd.s32 %v1018, 16
        %v1089 = vadd.s32 %v1025, 16
        %v1090 = vsel %vm1058, %v1074, %v920
        %v1091 = vsel %vm1059, %v1075, %v927
        %v1092 = vsel %vm1060, %v1076, %v934
        %v1093 = vsel %vm1061, %v1077, %v941
        %v1094 = vsel %vm1062, %v1078, %v948
        %v1095 = vsel %vm1063, %v1079, %v955
        %v1096 = vsel %vm1064, %v1080, %v962
        %v1097 = vsel %vm1065, %v1081, %v969
        %v1098 = vsel %vm1066, %v1082, %v976
        %v1099 = vsel %vm1067, %v1083, %v983
        %v1100 = vsel %vm1068, %v1084, %v990
        %v1101 = vsel %vm1069, %v1085, %v997
        %v1102 = vsel %vm1070, %v1086, %v1004
        %v1103 = vsel %vm1071, %v1087, %v1011
        %v1104 = vsel %vm1072, %v1088, %v1018
        %v1105 = vsel %vm1073, %v1089, %v1025
        %vm1106 = vcmp.eq.s32.totalorder %v1090, 0
        %vm1107 = vcmp.eq.s32.totalorder %v1091, 0
        %vm1108 = vcmp.eq.s32.totalorder %v1092, 0
        %vm1109 = vcmp.eq.s32.totalorder %v1093, 0
        %vm1110 = vcmp.eq.s32.totalorder %v1094, 0
        %vm1111 = vcmp.eq.s32.totalorder %v1095, 0
        %vm1112 = vcmp.eq.s32.totalorder %v1096, 0
        %vm1113 = vcmp.eq.s32.totalorder %v1097, 0
        %vm1114 = vcmp.eq.s32.totalorder %v1098, 0
        %vm1115 = vcmp.eq.s32.totalorder %v1099, 0
        %vm1116 = vcmp.eq.s32.totalorder %v1100, 0
        %vm1117 = vcmp.eq.s32.totalorder %v1101, 0
        %vm1118 = vcmp.eq.s32.totalorder %v1102, 0
        %vm1119 = vcmp.eq.s32.totalorder %v1103, 0
        %vm1120 = vcmp.eq.s32.totalorder %v1104, 0
        %vm1121 = vcmp.eq.s32.totalorder %v1105, 0
        %vm1122 = vcmp.eq.s32.totalorder %v1090, 15
        %vm1123 = vcmp.eq.s32.totalorder %v1091, 15
        %vm1124 = vcmp.eq.s32.totalorder %v1092, 15
        %vm1125 = vcmp.eq.s32.totalorder %v1093, 15
        %vm1126 = vcmp.eq.s32.totalorder %v1094, 15
        %vm1127 = vcmp.eq.s32.totalorder %v1095, 15
        %vm1128 = vcmp.eq.s32.totalorder %v1096, 15
        %vm1129 = vcmp.eq.s32.totalorder %v1097, 15
        %vm1130 = vcmp.eq.s32.totalorder %v1098, 15
        %vm1131 = vcmp.eq.s32.totalorder %v1099, 15
        %vm1132 = vcmp.eq.s32.totalorder %v1100, 15
        %vm1133 = vcmp.eq.s32.totalorder %v1101, 15
        %vm1134 = vcmp.eq.s32.totalorder %v1102, 15
        %vm1135 = vcmp.eq.s32.totalorder %v1103, 15
        %vm1136 = vcmp.eq.s32.totalorder %v1104, 15
        %vm1137 = vcmp.eq.s32.totalorder %v1105, 15
        %v1138 = vld [vmem:[#allocation3 + $0x7] sm:$0xff]
        %v1139 = vld [vmem:[#allocation3 + $0xf] sm:$0xff]
        %v1140 = vld [vmem:[#allocation3 + $0x17] sm:$0xff]
        %v1141 = vld [vmem:[#allocation3 + $0x1f] sm:$0xff]
        %v1142 = vld [vmem:[#allocation3 + $0x27] sm:$0xff]
        %v1143 = vld [vmem:[#allocation3 + $0x2f] sm:$0xff]
        %v1144 = vld [vmem:[#allocation3 + $0x37] sm:$0xff]
        %v1145 = vld [vmem:[#allocation3 + $0x3f] sm:$0xff]
        %v1146 = vld [vmem:[#allocation3 + $0x47] sm:$0xff]
        %v1147 = vld [vmem:[#allocation3 + $0x4f] sm:$0xff]
        %v1148 = vld [vmem:[#allocation3 + $0x57] sm:$0xff]
        %v1149 = vld [vmem:[#allocation3 + $0x5f] sm:$0xff]
        %v1150 = vld [vmem:[#allocation3 + $0x67] sm:$0xff]
        %v1151 = vld [vmem:[#allocation3 + $0x6f] sm:$0xff]
        %v1152 = vld [vmem:[#allocation3 + $0x77] sm:$0xff]
        %v1153 = vld [vmem:[#allocation3 + $0x7f] sm:$0xff]
        %v1154 = vsel %vm1106, 1, 0
        %v1155 = vsel %vm1107, 1, 0
        %v1156 = vsel %vm1108, 1, 0
        %v1157 = vsel %vm1109, 1, 0
        %v1158 = vsel %vm1110, 1, 0
        %v1159 = vsel %vm1111, 1, 0
        %v1160 = vsel %vm1112, 1, 0
        %v1161 = vsel %vm1113, 1, 0
        %v1162 = vsel %vm1114, 1, 0
        %v1163 = vsel %vm1115, 1, 0
        %v1164 = vsel %vm1116, 1, 0
        %v1165 = vsel %vm1117, 1, 0
        %v1166 = vsel %vm1118, 1, 0
        %v1167 = vsel %vm1119, 1, 0
        %v1168 = vsel %vm1120, 1, 0
        %v1169 = vsel %vm1121, 1, 0
        %vm1170 = vcmp.eq.s32.totalorder %v1154, 1
        %vm1171 = vcmp.eq.s32.totalorder %v1155, 1
        %vm1172 = vcmp.eq.s32.totalorder %v1156, 1
        %vm1173 = vcmp.eq.s32.totalorder %v1157, 1
        %vm1174 = vcmp.eq.s32.totalorder %v1158, 1
        %vm1175 = vcmp.eq.s32.totalorder %v1159, 1
        %vm1176 = vcmp.eq.s32.totalorder %v1160, 1
        %vm1177 = vcmp.eq.s32.totalorder %v1161, 1
        %vm1178 = vcmp.eq.s32.totalorder %v1162, 1
        %vm1179 = vcmp.eq.s32.totalorder %v1163, 1
        %vm1180 = vcmp.eq.s32.totalorder %v1164, 1
        %vm1181 = vcmp.eq.s32.totalorder %v1165, 1
        %vm1182 = vcmp.eq.s32.totalorder %v1166, 1
        %vm1183 = vcmp.eq.s32.totalorder %v1167, 1
        %vm1184 = vcmp.eq.s32.totalorder %v1168, 1
        %vm1185 = vcmp.eq.s32.totalorder %v1169, 1
        %v1186 = vsel %vm1170, 0.0, %v1138
        %v1187 = vsel %vm1171, 0.0, %v1139
        %v1188 = vsel %vm1172, 0.0, %v1140
        %v1189 = vsel %vm1173, 0.0, %v1141
        %v1190 = vsel %vm1174, 0.0, %v1142
        %v1191 = vsel %vm1175, 0.0, %v1143
        %v1192 = vsel %vm1176, 0.0, %v1144
        %v1193 = vsel %vm1177, 0.0, %v1145
        %v1194 = vsel %vm1178, 0.0, %v1146
        %v1195 = vsel %vm1179, 0.0, %v1147
        %v1196 = vsel %vm1180, 0.0, %v1148
        %v1197 = vsel %vm1181, 0.0, %v1149
        %v1198 = vsel %vm1182, 0.0, %v1150
        %v1199 = vsel %vm1183, 0.0, %v1151
        %v1200 = vsel %vm1184, 0.0, %v1152
        %v1201 = vsel %vm1185, 0.0, %v1153
        %v1202 = vpack.c.bf16 %v1186, %v1186
        %v1203 = vpack.c.bf16 %v1187, %v1187
        %v1204 = vpack.c.bf16 %v1188, %v1188
        %v1205 = vpack.c.bf16 %v1189, %v1189
        %v1206 = vpack.c.bf16 %v1190, %v1190
        %v1207 = vpack.c.bf16 %v1191, %v1191
        %v1208 = vpack.c.bf16 %v1192, %v1192
        %v1209 = vpack.c.bf16 %v1193, %v1193
        %v1210 = vpack.c.bf16 %v1194, %v1194
        %v1211 = vpack.c.bf16 %v1195, %v1195
        %v1212 = vpack.c.bf16 %v1196, %v1196
        %v1213 = vpack.c.bf16 %v1197, %v1197
        %v1214 = vpack.c.bf16 %v1198, %v1198
        %v1215 = vpack.c.bf16 %v1199, %v1199
        %v1216 = vpack.c.bf16 %v1200, %v1200
        %v1217 = vpack.c.bf16 %v1201, %v1201
        %1218 = vst [vmem:[#allocation4] sm:$0xf] %v1202
        %1219 = vst [vmem:[#allocation4 + $0x24] sm:$0xf] %v1203
        %1220 = vst [vmem:[#allocation4 + $0x48] sm:$0xf] %v1204
        %1221 = vst [vmem:[#allocation4 + $0x6c] sm:$0xf] %v1205
        %1222 = vst [vmem:[#allocation4 + $0x90] sm:$0xf] %v1206
        %1223 = vst [vmem:[#allocation4 + $0xb4] sm:$0xf] %v1207
        %1224 = vst [vmem:[#allocation4 + $0xd8] sm:$0xf] %v1208
        %1225 = vst [vmem:[#allocation4 + $0xfc] sm:$0xf] %v1209
        %1226 = vst [vmem:[#allocation4 + $0x120] sm:$0xf] %v1210
        %1227 = vst [vmem:[#allocation4 + $0x144] sm:$0xf] %v1211
        %1228 = vst [vmem:[#allocation4 + $0x168] sm:$0xf] %v1212
        %1229 = vst [vmem:[#allocation4 + $0x18c] sm:$0xf] %v1213
        %1230 = vst [vmem:[#allocation4 + $0x1b0] sm:$0xf] %v1214
        %1231 = vst [vmem:[#allocation4 + $0x1d4] sm:$0xf] %v1215
        %1232 = vst [vmem:[#allocation4 + $0x1f8] sm:$0xf] %v1216
        %1233 = vst [vmem:[#allocation4 + $0x21c] sm:$0xf] %v1217
        %v1234 = vld [vmem:[#allocation3 + $0x8] sm:$0xff]
        %v1235 = vld [vmem:[#allocation3 + $0x10] sm:$0xff]
        %v1236 = vld [vmem:[#allocation3 + $0x18] sm:$0xff]
        %v1237 = vld [vmem:[#allocation3 + $0x20] sm:$0xff]
        %v1238 = vld [vmem:[#allocation3 + $0x28] sm:$0xff]
        %v1239 = vld [vmem:[#allocation3 + $0x30] sm:$0xff]
        %v1240 = vld [vmem:[#allocation3 + $0x38] sm:$0xff]
        %v1241 = vld [vmem:[#allocation3 + $0x40] sm:$0xff]
        %v1242 = vld [vmem:[#allocation3 + $0x48] sm:$0xff]
        %v1243 = vld [vmem:[#allocation3 + $0x50] sm:$0xff]
        %v1244 = vld [vmem:[#allocation3 + $0x58] sm:$0xff]
        %v1245 = vld [vmem:[#allocation3 + $0x60] sm:$0xff]
        %v1246 = vld [vmem:[#allocation3 + $0x68] sm:$0xff]
        %v1247 = vld [vmem:[#allocation3 + $0x70] sm:$0xff]
        %v1248 = vld [vmem:[#allocation3 + $0x78] sm:$0xff]
        %v1249 = vld [vmem:[#allocation3 + $0x80] sm:$0xff]
        %v1250 = vpack.c.bf16 %v1234, %v1234
        %v1251 = vpack.c.bf16 %v1235, %v1235
        %v1252 = vpack.c.bf16 %v1236, %v1236
        %v1253 = vpack.c.bf16 %v1237, %v1237
        %v1254 = vpack.c.bf16 %v1238, %v1238
        %v1255 = vpack.c.bf16 %v1239, %v1239
        %v1256 = vpack.c.bf16 %v1240, %v1240
        %v1257 = vpack.c.bf16 %v1241, %v1241
        %v1258 = vpack.c.bf16 %v1242, %v1242
        %v1259 = vpack.c.bf16 %v1243, %v1243
        %v1260 = vpack.c.bf16 %v1244, %v1244
        %v1261 = vpack.c.bf16 %v1245, %v1245
        %v1262 = vpack.c.bf16 %v1246, %v1246
        %v1263 = vpack.c.bf16 %v1247, %v1247
        %v1264 = vpack.c.bf16 %v1248, %v1248
        %v1265 = vpack.c.bf16 %v1249, %v1249
        %1266 = vst [vmem:[#allocation4 + $0x4] sm:$0xf] %v1250
        %1267 = vst [vmem:[#allocation4 + $0x28] sm:$0xf] %v1251
        %1268 = vst [vmem:[#allocation4 + $0x4c] sm:$0xf] %v1252
        %1269 = vst [vmem:[#allocation4 + $0x70] sm:$0xf] %v1253
        %1270 = vst [vmem:[#allocation4 + $0x94] sm:$0xf] %v1254
        %1271 = vst [vmem:[#allocation4 + $0xb8] sm:$0xf] %v1255
        %1272 = vst [vmem:[#allocation4 + $0xdc] sm:$0xf] %v1256
        %1273 = vst [vmem:[#allocation4 + $0x100] sm:$0xf] %v1257
        %1274 = vst [vmem:[#allocation4 + $0x124] sm:$0xf] %v1258
        %1275 = vst [vmem:[#allocation4 + $0x148] sm:$0xf] %v1259
        %1276 = vst [vmem:[#allocation4 + $0x16c] sm:$0xf] %v1260
        %1277 = vst [vmem:[#allocation4 + $0x190] sm:$0xf] %v1261
        %1278 = vst [vmem:[#allocation4 + $0x1b4] sm:$0xf] %v1262
        %1279 = vst [vmem:[#allocation4 + $0x1d8] sm:$0xf] %v1263
        %1280 = vst [vmem:[#allocation4 + $0x1fc] sm:$0xf] %v1264
        %1281 = vst [vmem:[#allocation4 + $0x220] sm:$0xf] %v1265
        %v1282 = vld [vmem:[#allocation3 + $0x9] sm:$0xff]
        %v1283 = vld [vmem:[#allocation3 + $0x11] sm:$0xff]
        %v1284 = vld [vmem:[#allocation3 + $0x19] sm:$0xff]
        %v1285 = vld [vmem:[#allocation3 + $0x21] sm:$0xff]
        %v1286 = vld [vmem:[#allocation3 + $0x29] sm:$0xff]
        %v1287 = vld [vmem:[#allocation3 + $0x31] sm:$0xff]
        %v1288 = vld [vmem:[#allocation3 + $0x39] sm:$0xff]
        %v1289 = vld [vmem:[#allocation3 + $0x41] sm:$0xff]
        %v1290 = vld [vmem:[#allocation3 + $0x49] sm:$0xff]
        %v1291 = vld [vmem:[#allocation3 + $0x51] sm:$0xff]
        %v1292 = vld [vmem:[#allocation3 + $0x59] sm:$0xff]
        %v1293 = vld [vmem:[#allocation3 + $0x61] sm:$0xff]
        %v1294 = vld [vmem:[#allocation3 + $0x69] sm:$0xff]
        %v1295 = vld [vmem:[#allocation3 + $0x71] sm:$0xff]
        %v1296 = vld [vmem:[#allocation3 + $0x79] sm:$0xff]
        %v1297 = vld [vmem:[#allocation3 + $0x81] sm:$0xff]
        %v1298 = vsel %vm1122, 1, 0
        %v1299 = vsel %vm1123, 1, 0
        %v1300 = vsel %vm1124, 1, 0
        %v1301 = vsel %vm1125, 1, 0
        %v1302 = vsel %vm1126, 1, 0
        %v1303 = vsel %vm1127, 1, 0
        %v1304 = vsel %vm1128, 1, 0
        %v1305 = vsel %vm1129, 1, 0
        %v1306 = vsel %vm1130, 1, 0
        %v1307 = vsel %vm1131, 1, 0
        %v1308 = vsel %vm1132, 1, 0
        %v1309 = vsel %vm1133, 1, 0
        %v1310 = vsel %vm1134, 1, 0
        %v1311 = vsel %vm1135, 1, 0
        %v1312 = vsel %vm1136, 1, 0
        %v1313 = vsel %vm1137, 1, 0
        %vm1314 = vcmp.eq.s32.totalorder %v1298, 1
        %vm1315 = vcmp.eq.s32.totalorder %v1299, 1
        %vm1316 = vcmp.eq.s32.totalorder %v1300, 1
        %vm1317 = vcmp.eq.s32.totalorder %v1301, 1
        %vm1318 = vcmp.eq.s32.totalorder %v1302, 1
        %vm1319 = vcmp.eq.s32.totalorder %v1303, 1
        %vm1320 = vcmp.eq.s32.totalorder %v1304, 1
        %vm1321 = vcmp.eq.s32.totalorder %v1305, 1
        %vm1322 = vcmp.eq.s32.totalorder %v1306, 1
        %vm1323 = vcmp.eq.s32.totalorder %v1307, 1
        %vm1324 = vcmp.eq.s32.totalorder %v1308, 1
        %vm1325 = vcmp.eq.s32.totalorder %v1309, 1
        %vm1326 = vcmp.eq.s32.totalorder %v1310, 1
        %vm1327 = vcmp.eq.s32.totalorder %v1311, 1
        %vm1328 = vcmp.eq.s32.totalorder %v1312, 1
        %vm1329 = vcmp.eq.s32.totalorder %v1313, 1
        %v1330 = vsel %vm1314, 0.0, %v1282
        %v1331 = vsel %vm1315, 0.0, %v1283
        %v1332 = vsel %vm1316, 0.0, %v1284
        %v1333 = vsel %vm1317, 0.0, %v1285
        %v1334 = vsel %vm1318, 0.0, %v1286
        %v1335 = vsel %vm1319, 0.0, %v1287
        %v1336 = vsel %vm1320, 0.0, %v1288
        %v1337 = vsel %vm1321, 0.0, %v1289
        %v1338 = vsel %vm1322, 0.0, %v1290
        %v1339 = vsel %vm1323, 0.0, %v1291
        %v1340 = vsel %vm1324, 0.0, %v1292
        %v1341 = vsel %vm1325, 0.0, %v1293
        %v1342 = vsel %vm1326, 0.0, %v1294
        %v1343 = vsel %vm1327, 0.0, %v1295
        %v1344 = vsel %vm1328, 0.0, %v1296
        %v1345 = vsel %vm1329, 0.0, %v1297
        %v1346 = vpack.c.bf16 %v1330, %v1330
        %v1347 = vpack.c.bf16 %v1331, %v1331
        %v1348 = vpack.c.bf16 %v1332, %v1332
        %v1349 = vpack.c.bf16 %v1333, %v1333
        %v1350 = vpack.c.bf16 %v1334, %v1334
        %v1351 = vpack.c.bf16 %v1335, %v1335
        %v1352 = vpack.c.bf16 %v1336, %v1336
        %v1353 = vpack.c.bf16 %v1337, %v1337
        %v1354 = vpack.c.bf16 %v1338, %v1338
        %v1355 = vpack.c.bf16 %v1339, %v1339
        %v1356 = vpack.c.bf16 %v1340, %v1340
        %v1357 = vpack.c.bf16 %v1341, %v1341
        %v1358 = vpack.c.bf16 %v1342, %v1342
        %v1359 = vpack.c.bf16 %v1343, %v1343
        %v1360 = vpack.c.bf16 %v1344, %v1344
        %v1361 = vpack.c.bf16 %v1345, %v1345
        %1362 = vst [vmem:[#allocation4 + $0x8] sm:$0xf] %v1346
        %1363 = vst [vmem:[#allocation4 + $0x2c] sm:$0xf] %v1347
        %1364 = vst [vmem:[#allocation4 + $0x50] sm:$0xf] %v1348
        %1365 = vst [vmem:[#allocation4 + $0x74] sm:$0xf] %v1349
        %1366 = vst [vmem:[#allocation4 + $0x98] sm:$0xf] %v1350
        %1367 = vst [vmem:[#allocation4 + $0xbc] sm:$0xf] %v1351
        %1368 = vst [vmem:[#allocation4 + $0xe0] sm:$0xf] %v1352
        %1369 = vst [vmem:[#allocation4 + $0x104] sm:$0xf] %v1353
        %1370 = vst [vmem:[#allocation4 + $0x128] sm:$0xf] %v1354
        %1371 = vst [vmem:[#allocation4 + $0x14c] sm:$0xf] %v1355
        %1372 = vst [vmem:[#allocation4 + $0x170] sm:$0xf] %v1356
        %1373 = vst [vmem:[#allocation4 + $0x194] sm:$0xf] %v1357
        %1374 = vst [vmem:[#allocation4 + $0x1b8] sm:$0xf] %v1358
        %1375 = vst [vmem:[#allocation4 + $0x1dc] sm:$0xf] %v1359
        %1376 = vst [vmem:[#allocation4 + $0x200] sm:$0xf] %v1360
        %1377 = vst [vmem:[#allocation4 + $0x224] sm:$0xf] %v1361
        %v1378 = vld [vmem:[#allocation3 + $0x17] sm:$0xff]
        %v1379 = vld [vmem:[#allocation3 + $0x1f] sm:$0xff]
        %v1380 = vld [vmem:[#allocation3 + $0x27] sm:$0xff]
        %v1381 = vld [vmem:[#allocation3 + $0x2f] sm:$0xff]
        %v1382 = vld [vmem:[#allocation3 + $0x37] sm:$0xff]
        %v1383 = vld [vmem:[#allocation3 + $0x3f] sm:$0xff]
        %v1384 = vld [vmem:[#allocation3 + $0x47] sm:$0xff]
        %v1385 = vld [vmem:[#allocation3 + $0x4f] sm:$0xff]
        %v1386 = vld [vmem:[#allocation3 + $0x57] sm:$0xff]
        %v1387 = vld [vmem:[#allocation3 + $0x5f] sm:$0xff]
        %v1388 = vld [vmem:[#allocation3 + $0x67] sm:$0xff]
        %v1389 = vld [vmem:[#allocation3 + $0x6f] sm:$0xff]
        %v1390 = vld [vmem:[#allocation3 + $0x77] sm:$0xff]
        %v1391 = vld [vmem:[#allocation3 + $0x7f] sm:$0xff]
        %v1392 = vld [vmem:[#allocation3 + $0x87] sm:$0xff]
        %v1393 = vld [vmem:[#allocation3 + $0x8f] sm:$0xff]
        %v1394 = vsel %vm1170, 0.0, %v1378
        %v1395 = vsel %vm1171, 0.0, %v1379
        %v1396 = vsel %vm1172, 0.0, %v1380
        %v1397 = vsel %vm1173, 0.0, %v1381
        %v1398 = vsel %vm1174, 0.0, %v1382
        %v1399 = vsel %vm1175, 0.0, %v1383
        %v1400 = vsel %vm1176, 0.0, %v1384
        %v1401 = vsel %vm1177, 0.0, %v1385
        %v1402 = vsel %vm1178, 0.0, %v1386
        %v1403 = vsel %vm1179, 0.0, %v1387
        %v1404 = vsel %vm1180, 0.0, %v1388
        %v1405 = vsel %vm1181, 0.0, %v1389
        %v1406 = vsel %vm1182, 0.0, %v1390
        %v1407 = vsel %vm1183, 0.0, %v1391
        %v1408 = vsel %vm1184, 0.0, %v1392
        %v1409 = vsel %vm1185, 0.0, %v1393
        %v1410 = vpack.c.bf16 %v1394, %v1394
        %v1411 = vpack.c.bf16 %v1395, %v1395
        %v1412 = vpack.c.bf16 %v1396, %v1396
        %v1413 = vpack.c.bf16 %v1397, %v1397
        %v1414 = vpack.c.bf16 %v1398, %v1398
        %v1415 = vpack.c.bf16 %v1399, %v1399
        %v1416 = vpack.c.bf16 %v1400, %v1400
        %v1417 = vpack.c.bf16 %v1401, %v1401
        %v1418 = vpack.c.bf16 %v1402, %v1402
        %v1419 = vpack.c.bf16 %v1403, %v1403
        %v1420 = vpack.c.bf16 %v1404, %v1404
        %v1421 = vpack.c.bf16 %v1405, %v1405
        %v1422 = vpack.c.bf16 %v1406, %v1406
        %v1423 = vpack.c.bf16 %v1407, %v1407
        %v1424 = vpack.c.bf16 %v1408, %v1408
        %v1425 = vpack.c.bf16 %v1409, %v1409
        %1426 = vst [vmem:[#allocation4 + $0xc] sm:$0xf] %v1410
        %1427 = vst [vmem:[#allocation4 + $0x30] sm:$0xf] %v1411
        %1428 = vst [vmem:[#allocation4 + $0x54] sm:$0xf] %v1412
        %1429 = vst [vmem:[#allocation4 + $0x78] sm:$0xf] %v1413
        %1430 = vst [vmem:[#allocation4 + $0x9c] sm:$0xf] %v1414
        %1431 = vst [vmem:[#allocation4 + $0xc0] sm:$0xf] %v1415
        %1432 = vst [vmem:[#allocation4 + $0xe4] sm:$0xf] %v1416
        %1433 = vst [vmem:[#allocation4 + $0x108] sm:$0xf] %v1417
        %1434 = vst [vmem:[#allocation4 + $0x12c] sm:$0xf] %v1418
        %1435 = vst [vmem:[#allocation4 + $0x150] sm:$0xf] %v1419
        %1436 = vst [vmem:[#allocation4 + $0x174] sm:$0xf] %v1420
        %1437 = vst [vmem:[#allocation4 + $0x198] sm:$0xf] %v1421
        %1438 = vst [vmem:[#allocation4 + $0x1bc] sm:$0xf] %v1422
        %1439 = vst [vmem:[#allocation4 + $0x1e0] sm:$0xf] %v1423
        %1440 = vst [vmem:[#allocation4 + $0x204] sm:$0xf] %v1424
        %1441 = vst [vmem:[#allocation4 + $0x228] sm:$0xf] %v1425
        %v1442 = vld [vmem:[#allocation3 + $0x18] sm:$0xff]
        %v1443 = vld [vmem:[#allocation3 + $0x20] sm:$0xff]
        %v1444 = vld [vmem:[#allocation3 + $0x28] sm:$0xff]
        %v1445 = vld [vmem:[#allocation3 + $0x30] sm:$0xff]
        %v1446 = vld [vmem:[#allocation3 + $0x38] sm:$0xff]
        %v1447 = vld [vmem:[#allocation3 + $0x40] sm:$0xff]
        %v1448 = vld [vmem:[#allocation3 + $0x48] sm:$0xff]
        %v1449 = vld [vmem:[#allocation3 + $0x50] sm:$0xff]
        %v1450 = vld [vmem:[#allocation3 + $0x58] sm:$0xff]
        %v1451 = vld [vmem:[#allocation3 + $0x60] sm:$0xff]
        %v1452 = vld [vmem:[#allocation3 + $0x68] sm:$0xff]
        %v1453 = vld [vmem:[#allocation3 + $0x70] sm:$0xff]
        %v1454 = vld [vmem:[#allocation3 + $0x78] sm:$0xff]
        %v1455 = vld [vmem:[#allocation3 + $0x80] sm:$0xff]
        %v1456 = vld [vmem:[#allocation3 + $0x88] sm:$0xff]
        %v1457 = vld [vmem:[#allocation3 + $0x90] sm:$0xff]
        %v1458 = vpack.c.bf16 %v1442, %v1442
        %v1459 = vpack.c.bf16 %v1443, %v1443
        %v1460 = vpack.c.bf16 %v1444, %v1444
        %v1461 = vpack.c.bf16 %v1445, %v1445
        %v1462 = vpack.c.bf16 %v1446, %v1446
        %v1463 = vpack.c.bf16 %v1447, %v1447
        %v1464 = vpack.c.bf16 %v1448, %v1448
        %v1465 = vpack.c.bf16 %v1449, %v1449
        %v1466 = vpack.c.bf16 %v1450, %v1450
        %v1467 = vpack.c.bf16 %v1451, %v1451
        %v1468 = vpack.c.bf16 %v1452, %v1452
        %v1469 = vpack.c.bf16 %v1453, %v1453
        %v1470 = vpack.c.bf16 %v1454, %v1454
        %v1471 = vpack.c.bf16 %v1455, %v1455
        %v1472 = vpack.c.bf16 %v1456, %v1456
        %v1473 = vpack.c.bf16 %v1457, %v1457
        %1474 = vst [vmem:[#allocation4 + $0x10] sm:$0xf] %v1458
        %1475 = vst [vmem:[#allocation4 + $0x34] sm:$0xf] %v1459
        %1476 = vst [vmem:[#allocation4 + $0x58] sm:$0xf] %v1460
        %1477 = vst [vmem:[#allocation4 + $0x7c] sm:$0xf] %v1461
        %1478 = vst [vmem:[#allocation4 + $0xa0] sm:$0xf] %v1462
        %1479 = vst [vmem:[#allocation4 + $0xc4] sm:$0xf] %v1463
        %1480 = vst [vmem:[#allocation4 + $0xe8] sm:$0xf] %v1464
        %1481 = vst [vmem:[#allocation4 + $0x10c] sm:$0xf] %v1465
        %1482 = vst [vmem:[#allocation4 + $0x130] sm:$0xf] %v1466
        %1483 = vst [vmem:[#allocation4 + $0x154] sm:$0xf] %v1467
        %1484 = vst [vmem:[#allocation4 + $0x178] sm:$0xf] %v1468
        %1485 = vst [vmem:[#allocation4 + $0x19c] sm:$0xf] %v1469
        %1486 = vst [vmem:[#allocation4 + $0x1c0] sm:$0xf] %v1470
        %1487 = vst [vmem:[#allocation4 + $0x1e4] sm:$0xf] %v1471
        %1488 = vst [vmem:[#allocation4 + $0x208] sm:$0xf] %v1472
        %1489 = vst [vmem:[#allocation4 + $0x22c] sm:$0xf] %v1473
        %v1490 = vld [vmem:[#allocation3 + $0x19] sm:$0xff]
        %v1491 = vld [vmem:[#allocation3 + $0x21] sm:$0xff]
        %v1492 = vld [vmem:[#allocation3 + $0x29] sm:$0xff]
        %v1493 = vld [vmem:[#allocation3 + $0x31] sm:$0xff]
        %v1494 = vld [vmem:[#allocation3 + $0x39] sm:$0xff]
        %v1495 = vld [vmem:[#allocation3 + $0x41] sm:$0xff]
        %v1496 = vld [vmem:[#allocation3 + $0x49] sm:$0xff]
        %v1497 = vld [vmem:[#allocation3 + $0x51] sm:$0xff]
        %v1498 = vld [vmem:[#allocation3 + $0x59] sm:$0xff]
        %v1499 = vld [vmem:[#allocation3 + $0x61] sm:$0xff]
        %v1500 = vld [vmem:[#allocation3 + $0x69] sm:$0xff]
        %v1501 = vld [vmem:[#allocation3 + $0x71] sm:$0xff]
        %v1502 = vld [vmem:[#allocation3 + $0x79] sm:$0xff]
        %v1503 = vld [vmem:[#allocation3 + $0x81] sm:$0xff]
        %v1504 = vld [vmem:[#allocation3 + $0x89] sm:$0xff]
        %v1505 = vld [vmem:[#allocation3 + $0x91] sm:$0xff]
        %v1506 = vsel %vm1314, 0.0, %v1490
        %v1507 = vsel %vm1315, 0.0, %v1491
        %v1508 = vsel %vm1316, 0.0, %v1492
        %v1509 = vsel %vm1317, 0.0, %v1493
        %v1510 = vsel %vm1318, 0.0, %v1494
        %v1511 = vsel %vm1319, 0.0, %v1495
        %v1512 = vsel %vm1320, 0.0, %v1496
        %v1513 = vsel %vm1321, 0.0, %v1497
        %v1514 = vsel %vm1322, 0.0, %v1498
        %v1515 = vsel %vm1323, 0.0, %v1499
        %v1516 = vsel %vm1324, 0.0, %v1500
        %v1517 = vsel %vm1325, 0.0, %v1501
        %v1518 = vsel %vm1326, 0.0, %v1502
        %v1519 = vsel %vm1327, 0.0, %v1503
        %v1520 = vsel %vm1328, 0.0, %v1504
        %v1521 = vsel %vm1329, 0.0, %v1505
        %v1522 = vpack.c.bf16 %v1506, %v1506
        %v1523 = vpack.c.bf16 %v1507, %v1507
        %v1524 = vpack.c.bf16 %v1508, %v1508
        %v1525 = vpack.c.bf16 %v1509, %v1509
        %v1526 = vpack.c.bf16 %v1510, %v1510
        %v1527 = vpack.c.bf16 %v1511, %v1511
        %v1528 = vpack.c.bf16 %v1512, %v1512
        %v1529 = vpack.c.bf16 %v1513, %v1513
        %v1530 = vpack.c.bf16 %v1514, %v1514
        %v1531 = vpack.c.bf16 %v1515, %v1515
        %v1532 = vpack.c.bf16 %v1516, %v1516
        %v1533 = vpack.c.bf16 %v1517, %v1517
        %v1534 = vpack.c.bf16 %v1518, %v1518
        %v1535 = vpack.c.bf16 %v1519, %v1519
        %v1536 = vpack.c.bf16 %v1520, %v1520
        %v1537 = vpack.c.bf16 %v1521, %v1521
        %1538 = vst [vmem:[#allocation4 + $0x14] sm:$0xf] %v1522
        %1539 = vst [vmem:[#allocation4 + $0x38] sm:$0xf] %v1523
        %1540 = vst [vmem:[#allocation4 + $0x5c] sm:$0xf] %v1524
        %1541 = vst [vmem:[#allocation4 + $0x80] sm:$0xf] %v1525
        %1542 = vst [vmem:[#allocation4 + $0xa4] sm:$0xf] %v1526
        %1543 = vst [vmem:[#allocation4 + $0xc8] sm:$0xf] %v1527
        %1544 = vst [vmem:[#allocation4 + $0xec] sm:$0xf] %v1528
        %1545 = vst [vmem:[#allocation4 + $0x110] sm:$0xf] %v1529
        %1546 = vst [vmem:[#allocation4 + $0x134] sm:$0xf] %v1530
        %1547 = vst [vmem:[#allocation4 + $0x158] sm:$0xf] %v1531
        %1548 = vst [vmem:[#allocation4 + $0x17c] sm:$0xf] %v1532
        %1549 = vst [vmem:[#allocation4 + $0x1a0] sm:$0xf] %v1533
        %1550 = vst [vmem:[#allocation4 + $0x1c4] sm:$0xf] %v1534
        %1551 = vst [vmem:[#allocation4 + $0x1e8] sm:$0xf] %v1535
        %1552 = vst [vmem:[#allocation4 + $0x20c] sm:$0xf] %v1536
        %1553 = vst [vmem:[#allocation4 + $0x230] sm:$0xf] %v1537
        %v1554 = vld [vmem:[#allocation3 + $0x27] sm:$0xff]
        %v1555 = vld [vmem:[#allocation3 + $0x2f] sm:$0xff]
        %v1556 = vld [vmem:[#allocation3 + $0x37] sm:$0xff]
        %v1557 = vld [vmem:[#allocation3 + $0x3f] sm:$0xff]
        %v1558 = vld [vmem:[#allocation3 + $0x47] sm:$0xff]
        %v1559 = vld [vmem:[#allocation3 + $0x4f] sm:$0xff]
        %v1560 = vld [vmem:[#allocation3 + $0x57] sm:$0xff]
        %v1561 = vld [vmem:[#allocation3 + $0x5f] sm:$0xff]
        %v1562 = vld [vmem:[#allocation3 + $0x67] sm:$0xff]
        %v1563 = vld [vmem:[#allocation3 + $0x6f] sm:$0xff]
        %v1564 = vld [vmem:[#allocation3 + $0x77] sm:$0xff]
        %v1565 = vld [vmem:[#allocation3 + $0x7f] sm:$0xff]
        %v1566 = vld [vmem:[#allocation3 + $0x87] sm:$0xff]
        %v1567 = vld [vmem:[#allocation3 + $0x8f] sm:$0xff]
        %v1568 = vld [vmem:[#allocation3 + $0x97] sm:$0xff]
        %v1569 = vld [vmem:[#allocation3 + $0x9f] sm:$0xff]
        %v1570 = vsel %vm1170, 0.0, %v1554
        %v1571 = vsel %vm1171, 0.0, %v1555
        %v1572 = vsel %vm1172, 0.0, %v1556
        %v1573 = vsel %vm1173, 0.0, %v1557
        %v1574 = vsel %vm1174, 0.0, %v1558
        %v1575 = vsel %vm1175, 0.0, %v1559
        %v1576 = vsel %vm1176, 0.0, %v1560
        %v1577 = vsel %vm1177, 0.0, %v1561
        %v1578 = vsel %vm1178, 0.0, %v1562
        %v1579 = vsel %vm1179, 0.0, %v1563
        %v1580 = vsel %vm1180, 0.0, %v1564
        %v1581 = vsel %vm1181, 0.0, %v1565
        %v1582 = vsel %vm1182, 0.0, %v1566
        %v1583 = vsel %vm1183, 0.0, %v1567
        %v1584 = vsel %vm1184, 0.0, %v1568
        %v1585 = vsel %vm1185, 0.0, %v1569
        %v1586 = vpack.c.bf16 %v1570, %v1570
        %v1587 = vpack.c.bf16 %v1571, %v1571
        %v1588 = vpack.c.bf16 %v1572, %v1572
        %v1589 = vpack.c.bf16 %v1573, %v1573
        %v1590 = vpack.c.bf16 %v1574, %v1574
        %v1591 = vpack.c.bf16 %v1575, %v1575
        %v1592 = vpack.c.bf16 %v1576, %v1576
        %v1593 = vpack.c.bf16 %v1577, %v1577
        %v1594 = vpack.c.bf16 %v1578, %v1578
        %v1595 = vpack.c.bf16 %v1579, %v1579
        %v1596 = vpack.c.bf16 %v1580, %v1580
        %v1597 = vpack.c.bf16 %v1581, %v1581
        %v1598 = vpack.c.bf16 %v1582, %v1582
        %v1599 = vpack.c.bf16 %v1583, %v1583
        %v1600 = vpack.c.bf16 %v1584, %v1584
        %v1601 = vpack.c.bf16 %v1585, %v1585
        %1602 = vst [vmem:[#allocation4 + $0x18] sm:$0xf] %v1586
        %1603 = vst [vmem:[#allocation4 + $0x3c] sm:$0xf] %v1587
        %1604 = vst [vmem:[#allocation4 + $0x60] sm:$0xf] %v1588
        %1605 = vst [vmem:[#allocation4 + $0x84] sm:$0xf] %v1589
        %1606 = vst [vmem:[#allocation4 + $0xa8] sm:$0xf] %v1590
        %1607 = vst [vmem:[#allocation4 + $0xcc] sm:$0xf] %v1591
        %1608 = vst [vmem:[#allocation4 + $0xf0] sm:$0xf] %v1592
        %1609 = vst [vmem:[#allocation4 + $0x114] sm:$0xf] %v1593
        %1610 = vst [vmem:[#allocation4 + $0x138] sm:$0xf] %v1594
        %1611 = vst [vmem:[#allocation4 + $0x15c] sm:$0xf] %v1595
        %1612 = vst [vmem:[#allocation4 + $0x180] sm:$0xf] %v1596
        %1613 = vst [vmem:[#allocation4 + $0x1a4] sm:$0xf] %v1597
        %1614 = vst [vmem:[#allocation4 + $0x1c8] sm:$0xf] %v1598
        %1615 = vst [vmem:[#allocation4 + $0x1ec] sm:$0xf] %v1599
        %1616 = vst [vmem:[#allocation4 + $0x210] sm:$0xf] %v1600
        %1617 = vst [vmem:[#allocation4 + $0x234] sm:$0xf] %v1601
        %v1618 = vld [vmem:[#allocation3 + $0x28] sm:$0xff]
        %v1619 = vld [vmem:[#allocation3 + $0x30] sm:$0xff]
        %v1620 = vld [vmem:[#allocation3 + $0x38] sm:$0xff]
        %v1621 = vld [vmem:[#allocation3 + $0x40] sm:$0xff]
        %v1622 = vld [vmem:[#allocation3 + $0x48] sm:$0xff]
        %v1623 = vld [vmem:[#allocation3 + $0x50] sm:$0xff]
        %v1624 = vld [vmem:[#allocation3 + $0x58] sm:$0xff]
        %v1625 = vld [vmem:[#allocation3 + $0x60] sm:$0xff]
        %v1626 = vld [vmem:[#allocation3 + $0x68] sm:$0xff]
        %v1627 = vld [vmem:[#allocation3 + $0x70] sm:$0xff]
        %v1628 = vld [vmem:[#allocation3 + $0x78] sm:$0xff]
        %v1629 = vld [vmem:[#allocation3 + $0x80] sm:$0xff]
        %v1630 = vld [vmem:[#allocation3 + $0x88] sm:$0xff]
        %v1631 = vld [vmem:[#allocation3 + $0x90] sm:$0xff]
        %v1632 = vld [vmem:[#allocation3 + $0x98] sm:$0xff]
        %v1633 = vld [vmem:[#allocation3 + $0xa0] sm:$0xff]
        %v1634 = vpack.c.bf16 %v1618, %v1618
        %v1635 = vpack.c.bf16 %v1619, %v1619
        %v1636 = vpack.c.bf16 %v1620, %v1620
        %v1637 = vpack.c.bf16 %v1621, %v1621
        %v1638 = vpack.c.bf16 %v1622, %v1622
        %v1639 = vpack.c.bf16 %v1623, %v1623
        %v1640 = vpack.c.bf16 %v1624, %v1624
        %v1641 = vpack.c.bf16 %v1625, %v1625
        %v1642 = vpack.c.bf16 %v1626, %v1626
        %v1643 = vpack.c.bf16 %v1627, %v1627
        %v1644 = vpack.c.bf16 %v1628, %v1628
        %v1645 = vpack.c.bf16 %v1629, %v1629
        %v1646 = vpack.c.bf16 %v1630, %v1630
        %v1647 = vpack.c.bf16 %v1631, %v1631
        %v1648 = vpack.c.bf16 %v1632, %v1632
        %v1649 = vpack.c.bf16 %v1633, %v1633
        %1650 = vst [vmem:[#allocation4 + $0x1c] sm:$0xf] %v1634
        %1651 = vst [vmem:[#allocation4 + $0x40] sm:$0xf] %v1635
        %1652 = vst [vmem:[#allocation4 + $0x64] sm:$0xf] %v1636
        %1653 = vst [vmem:[#allocation4 + $0x88] sm:$0xf] %v1637
        %1654 = vst [vmem:[#allocation4 + $0xac] sm:$0xf] %v1638
        %1655 = vst [vmem:[#allocation4 + $0xd0] sm:$0xf] %v1639
        %1656 = vst [vmem:[#allocation4 + $0xf4] sm:$0xf] %v1640
        %1657 = vst [vmem:[#allocation4 + $0x118] sm:$0xf] %v1641
        %1658 = vst [vmem:[#allocation4 + $0x13c] sm:$0xf] %v1642
        %1659 = vst [vmem:[#allocation4 + $0x160] sm:$0xf] %v1643
        %1660 = vst [vmem:[#allocation4 + $0x184] sm:$0xf] %v1644
        %1661 = vst [vmem:[#allocation4 + $0x1a8] sm:$0xf] %v1645
        %1662 = vst [vmem:[#allocation4 + $0x1cc] sm:$0xf] %v1646
        %1663 = vst [vmem:[#allocation4 + $0x1f0] sm:$0xf] %v1647
        %1664 = vst [vmem:[#allocation4 + $0x214] sm:$0xf] %v1648
        %1665 = vst [vmem:[#allocation4 + $0x238] sm:$0xf] %v1649
        %v1666 = vld [vmem:[#allocation3 + $0x29] sm:$0xff]
        %v1667 = vld [vmem:[#allocation3 + $0x31] sm:$0xff]
        %v1668 = vld [vmem:[#allocation3 + $0x39] sm:$0xff]
        %v1669 = vld [vmem:[#allocation3 + $0x41] sm:$0xff]
        %v1670 = vld [vmem:[#allocation3 + $0x49] sm:$0xff]
        %v1671 = vld [vmem:[#allocation3 + $0x51] sm:$0xff]
        %v1672 = vld [vmem:[#allocation3 + $0x59] sm:$0xff]
        %v1673 = vld [vmem:[#allocation3 + $0x61] sm:$0xff]
        %v1674 = vld [vmem:[#allocation3 + $0x69] sm:$0xff]
        %v1675 = vld [vmem:[#allocation3 + $0x71] sm:$0xff]
        %v1676 = vld [vmem:[#allocation3 + $0x79] sm:$0xff]
        %v1677 = vld [vmem:[#allocation3 + $0x81] sm:$0xff]
        %v1678 = vld [vmem:[#allocation3 + $0x89] sm:$0xff]
        %v1679 = vld [vmem:[#allocation3 + $0x91] sm:$0xff]
        %v1680 = vld [vmem:[#allocation3 + $0x99] sm:$0xff]
        %v1681 = vld [vmem:[#allocation3 + $0xa1] sm:$0xff]
        %v1682 = vsel %vm1314, 0.0, %v1666
        %v1683 = vsel %vm1315, 0.0, %v1667
        %v1684 = vsel %vm1316, 0.0, %v1668
        %v1685 = vsel %vm1317, 0.0, %v1669
        %v1686 = vsel %vm1318, 0.0, %v1670
        %v1687 = vsel %vm1319, 0.0, %v1671
        %v1688 = vsel %vm1320, 0.0, %v1672
        %v1689 = vsel %vm1321, 0.0, %v1673
        %v1690 = vsel %vm1322, 0.0, %v1674
        %v1691 = vsel %vm1323, 0.0, %v1675
        %v1692 = vsel %vm1324, 0.0, %v1676
        %v1693 = vsel %vm1325, 0.0, %v1677
        %v1694 = vsel %vm1326, 0.0, %v1678
        %v1695 = vsel %vm1327, 0.0, %v1679
        %v1696 = vsel %vm1328, 0.0, %v1680
        %v1697 = vsel %vm1329, 0.0, %v1681
        %v1698 = vpack.c.bf16 %v1682, %v1682
        %v1699 = vpack.c.bf16 %v1683, %v1683
        %v1700 = vpack.c.bf16 %v1684, %v1684
        %v1701 = vpack.c.bf16 %v1685, %v1685
        %v1702 = vpack.c.bf16 %v1686, %v1686
        %v1703 = vpack.c.bf16 %v1687, %v1687
        %v1704 = vpack.c.bf16 %v1688, %v1688
        %v1705 = vpack.c.bf16 %v1689, %v1689
        %v1706 = vpack.c.bf16 %v1690, %v1690
        %v1707 = vpack.c.bf16 %v1691, %v1691
        %v1708 = vpack.c.bf16 %v1692, %v1692
        %v1709 = vpack.c.bf16 %v1693, %v1693
        %v1710 = vpack.c.bf16 %v1694, %v1694
        %v1711 = vpack.c.bf16 %v1695, %v1695
        %v1712 = vpack.c.bf16 %v1696, %v1696
        %v1713 = vpack.c.bf16 %v1697, %v1697
        %1714 = vst [vmem:[#allocation4 + $0x20] sm:$0xf] %v1698
        %1715 = vst [vmem:[#allocation4 + $0x44] sm:$0xf] %v1699
        %1716 = vst [vmem:[#allocation4 + $0x68] sm:$0xf] %v1700
        %1717 = vst [vmem:[#allocation4 + $0x8c] sm:$0xf] %v1701
        %1718 = vst [vmem:[#allocation4 + $0xb0] sm:$0xf] %v1702
        %1719 = vst [vmem:[#allocation4 + $0xd4] sm:$0xf] %v1703
        %1720 = vst [vmem:[#allocation4 + $0xf8] sm:$0xf] %v1704
        %1721 = vst [vmem:[#allocation4 + $0x11c] sm:$0xf] %v1705
        %1722 = vst [vmem:[#allocation4 + $0x140] sm:$0xf] %v1706
        %1723 = vst [vmem:[#allocation4 + $0x164] sm:$0xf] %v1707
        %1724 = vst [vmem:[#allocation4 + $0x188] sm:$0xf] %v1708
        %1725 = vst [vmem:[#allocation4 + $0x1ac] sm:$0xf] %v1709
        %1726 = vst [vmem:[#allocation4 + $0x1d0] sm:$0xf] %v1710
        %1727 = vst [vmem:[#allocation4 + $0x1f4] sm:$0xf] %v1711
        %1728 = vst [vmem:[#allocation4 + $0x218] sm:$0xf] %v1712
        %1729 = vst [vmem:[#allocation4 + $0x23c] sm:$0xf] %v1713
        %v1730 = vld [vmem:[%s442] sm:$0xff]
        %v1731 = vld [vmem:[%s442 + $0x8] sm:$0xff]
        %v1732 = vld [vmem:[%s442 + $0x10] sm:$0xff]
        %v1733 = vld [vmem:[%s442 + $0x18] sm:$0xff]
        %v1734 = vld [vmem:[%s442 + $0x20] sm:$0xff]
        %v1735 = vld [vmem:[%s442 + $0x28] sm:$0xff]
        %v1736 = vld [vmem:[%s442 + $0x30] sm:$0xff]
        %v1737 = vld [vmem:[%s442 + $0x38] sm:$0xff]
        %v1738 = vld [vmem:[%s442 + $0x40] sm:$0xff]
        %v1739 = vld [vmem:[%s442 + $0x48] sm:$0xff]
        %v1740 = vld [vmem:[%s442 + $0x50] sm:$0xff]
        %v1741 = vld [vmem:[%s442 + $0x58] sm:$0xff]
        %v1742 = vld [vmem:[%s442 + $0x60] sm:$0xff]
        %v1743 = vld [vmem:[%s442 + $0x68] sm:$0xff]
        %v1744 = vld [vmem:[%s442 + $0x70] sm:$0xff]
        %v1745 = vld [vmem:[%s442 + $0x78] sm:$0xff]
        %v1746 = vld [vmem:[%s6] sm:$0x1]
        %v1748 = vperm.slane %v1746, 0
        %v1750 = vadd.f32 %v1730, %v1748
        %v1751 = vadd.f32 %v1731, %v1748
        %v1752 = vadd.f32 %v1732, %v1748
        %v1753 = vadd.f32 %v1733, %v1748
        %v1754 = vadd.f32 %v1734, %v1748
        %v1755 = vadd.f32 %v1735, %v1748
        %v1756 = vadd.f32 %v1736, %v1748
        %v1757 = vadd.f32 %v1737, %v1748
        %v1758 = vadd.f32 %v1738, %v1748
        %v1759 = vadd.f32 %v1739, %v1748
        %v1760 = vadd.f32 %v1740, %v1748
        %v1761 = vadd.f32 %v1741, %v1748
        %v1762 = vadd.f32 %v1742, %v1748
        %v1763 = vadd.f32 %v1743, %v1748
        %v1764 = vadd.f32 %v1744, %v1748
        %v1765 = vadd.f32 %v1745, %v1748
        %v1766 = vld [vmem:[#allocation4] sm:$0xff]
        %v1767 = vld [vmem:[#allocation4 + $0x8] sm:$0xff]
        %v1768 = vld [vmem:[#allocation4 + $0x10] sm:$0xff]
        %v1769 = vld [vmem:[#allocation4 + $0x18] sm:$0xff]
        %v1770 = vld [vmem:[#allocation4 + $0x20] sm:$0xf]
        %v1771 = vld [vmem:[#allocation4 + $0x24] sm:$0xff]
        %v1772 = vld [vmem:[#allocation4 + $0x2c] sm:$0xff]
        %v1773 = vld [vmem:[#allocation4 + $0x34] sm:$0xff]
        %v1774 = vld [vmem:[#allocation4 + $0x3c] sm:$0xff]
        %v1775 = vld [vmem:[#allocation4 + $0x44] sm:$0xf]
        %v1776 = vld [vmem:[#allocation4 + $0x48] sm:$0xff]
        %v1777 = vld [vmem:[#allocation4 + $0x50] sm:$0xff]
        %v1778 = vld [vmem:[#allocation4 + $0x58] sm:$0xff]
        %v1779 = vld [vmem:[#allocation4 + $0x60] sm:$0xff]
        %v1780 = vld [vmem:[#allocation4 + $0x68] sm:$0xf]
        %v1781 = vld [vmem:[#allocation4 + $0x6c] sm:$0xff]
        %v1782 = vld [vmem:[#allocation4 + $0x74] sm:$0xff]
        %v1783 = vld [vmem:[#allocation4 + $0x7c] sm:$0xff]
        %v1784 = vld [vmem:[#allocation4 + $0x84] sm:$0xff]
        %v1785 = vld [vmem:[#allocation4 + $0x8c] sm:$0xf]
        %v1786 = vld [vmem:[#allocation4 + $0x90] sm:$0xff]
        %v1787 = vld [vmem:[#allocation4 + $0x98] sm:$0xff]
        %v1788 = vld [vmem:[#allocation4 + $0xa0] sm:$0xff]
        %v1789 = vld [vmem:[#allocation4 + $0xa8] sm:$0xff]
        %v1790 = vld [vmem:[#allocation4 + $0xb0] sm:$0xf]
        %v1791 = vld [vmem:[#allocation4 + $0xb4] sm:$0xff]
        %v1792 = vld [vmem:[#allocation4 + $0xbc] sm:$0xff]
        %v1793 = vld [vmem:[#allocation4 + $0xc4] sm:$0xff]
        %v1794 = vld [vmem:[#allocation4 + $0xcc] sm:$0xff]
        %v1795 = vld [vmem:[#allocation4 + $0xd4] sm:$0xf]
        %v1796 = vld [vmem:[#allocation4 + $0xd8] sm:$0xff]
        %v1797 = vld [vmem:[#allocation4 + $0xe0] sm:$0xff]
        %v1798 = vld [vmem:[#allocation4 + $0xe8] sm:$0xff]
        %v1799 = vld [vmem:[#allocation4 + $0xf0] sm:$0xff]
        %v1800 = vld [vmem:[#allocation4 + $0xf8] sm:$0xf]
        %v1801 = vld [vmem:[#allocation4 + $0xfc] sm:$0xff]
        %v1802 = vld [vmem:[#allocation4 + $0x104] sm:$0xff]
        %v1803 = vld [vmem:[#allocation4 + $0x10c] sm:$0xff]
        %v1804 = vld [vmem:[#allocation4 + $0x114] sm:$0xff]
        %v1805 = vld [vmem:[#allocation4 + $0x11c] sm:$0xf]
        %v1806 = vld [vmem:[#allocation4 + $0x120] sm:$0xff]
        %v1807 = vld [vmem:[#allocation4 + $0x128] sm:$0xff]
        %v1808 = vld [vmem:[#allocation4 + $0x130] sm:$0xff]
        %v1809 = vld [vmem:[#allocation4 + $0x138] sm:$0xff]
        %v1810 = vld [vmem:[#allocation4 + $0x140] sm:$0xf]
        %v1811 = vld [vmem:[#allocation4 + $0x144] sm:$0xff]
        %v1812 = vld [vmem:[#allocation4 + $0x14c] sm:$0xff]
        %v1813 = vld [vmem:[#allocation4 + $0x154] sm:$0xff]
        %v1814 = vld [vmem:[#allocation4 + $0x15c] sm:$0xff]
        %v1815 = vld [vmem:[#allocation4 + $0x164] sm:$0xf]
        %v1816 = vld [vmem:[#allocation4 + $0x168] sm:$0xff]
        %v1817 = vld [vmem:[#allocation4 + $0x170] sm:$0xff]
        %v1818 = vld [vmem:[#allocation4 + $0x178] sm:$0xff]
        %v1819 = vld [vmem:[#allocation4 + $0x180] sm:$0xff]
        %v1820 = vld [vmem:[#allocation4 + $0x188] sm:$0xf]
        %v1821 = vld [vmem:[#allocation4 + $0x18c] sm:$0xff]
        %v1822 = vld [vmem:[#allocation4 + $0x194] sm:$0xff]
        %v1823 = vld [vmem:[#allocation4 + $0x19c] sm:$0xff]
        %v1824 = vld [vmem:[#allocation4 + $0x1a4] sm:$0xff]
        %v1825 = vld [vmem:[#allocation4 + $0x1ac] sm:$0xf]
        %v1826 = vld [vmem:[#allocation4 + $0x1b0] sm:$0xff]
        %v1827 = vld [vmem:[#allocation4 + $0x1b8] sm:$0xff]
        %v1828 = vld [vmem:[#allocation4 + $0x1c0] sm:$0xff]
        %v1829 = vld [vmem:[#allocation4 + $0x1c8] sm:$0xff]
        %v1830 = vld [vmem:[#allocation4 + $0x1d0] sm:$0xf]
        %v1831 = vld [vmem:[#allocation4 + $0x1d4] sm:$0xff]
        %v1832 = vld [vmem:[#allocation4 + $0x1dc] sm:$0xff]
        %v1833 = vld [vmem:[#allocation4 + $0x1e4] sm:$0xff]
        %v1834 = vld [vmem:[#allocation4 + $0x1ec] sm:$0xff]
        %v1835 = vld [vmem:[#allocation4 + $0x1f4] sm:$0xf]
        %v1836 = vld [vmem:[#allocation4 + $0x1f8] sm:$0xff]
        %v1837 = vld [vmem:[#allocation4 + $0x200] sm:$0xff]
        %v1838 = vld [vmem:[#allocation4 + $0x208] sm:$0xff]
        %v1839 = vld [vmem:[#allocation4 + $0x210] sm:$0xff]
        %v1840 = vld [vmem:[#allocation4 + $0x218] sm:$0xf]
        %v1841 = vld [vmem:[#allocation4 + $0x21c] sm:$0xff]
        %v1842 = vld [vmem:[#allocation4 + $0x224] sm:$0xff]
        %v1843 = vld [vmem:[#allocation4 + $0x22c] sm:$0xff]
        %v1844 = vld [vmem:[#allocation4 + $0x234] sm:$0xff]
        %v1845 = vld [vmem:[#allocation4 + $0x23c] sm:$0xf]
        %v1846 = vld [vmem:[#allocation14] sm:$0xf]
        %v1847 = vld [vmem:[#allocation14 + $0x4] sm:$0xf]
        %v1848 = vld [vmem:[#allocation14 + $0x8] sm:$0xf]
        %v1849 = vld [vmem:[#allocation14 + $0xc] sm:$0xf]
        %v1850 = vld [vmem:[#allocation14 + $0x10] sm:$0xf]
        %v1851 = vld [vmem:[#allocation14 + $0x14] sm:$0xf]
        %v1852 = vld [vmem:[#allocation14 + $0x18] sm:$0xf]
        %v1853 = vld [vmem:[#allocation14 + $0x1c] sm:$0xf]
        %v1854 = vld [vmem:[#allocation14 + $0x20] sm:$0xf]
        %v1855 = vld [vmem:[#allocation14 + $0x24] sm:$0xf]
        %v1856 = vld [vmem:[#allocation14 + $0x28] sm:$0xf]
        %v1857 = vld [vmem:[#allocation14 + $0x2c] sm:$0xf]
        %v1858 = vld [vmem:[#allocation14 + $0x30] sm:$0xf]
        %v1859 = vld [vmem:[#allocation14 + $0x34] sm:$0xf]
        %v1860 = vld [vmem:[#allocation14 + $0x38] sm:$0xf]
        %v1861 = vld [vmem:[#allocation14 + $0x3c] sm:$0xf]
        %v1862 = vld [vmem:[#allocation14 + $0x40] sm:$0xf]
        %v1863 = vld [vmem:[#allocation14 + $0x44] sm:$0xf]
        %v1864 = vld [vmem:[#allocation14 + $0x48] sm:$0xf]
        %v1865 = vld [vmem:[#allocation14 + $0x4c] sm:$0xf]
        %v1866 = vld [vmem:[#allocation14 + $0x50] sm:$0xf]
        %v1867 = vld [vmem:[#allocation14 + $0x54] sm:$0xf]
        %v1868 = vld [vmem:[#allocation14 + $0x58] sm:$0xf]
        %v1869 = vld [vmem:[#allocation14 + $0x5c] sm:$0xf]
        %v1870 = vld [vmem:[#allocation14 + $0x60] sm:$0xf]
        %v1871 = vld [vmem:[#allocation14 + $0x64] sm:$0xf]
        %v1872 = vld [vmem:[#allocation14 + $0x68] sm:$0xf]
        %v1873 = vld [vmem:[#allocation14 + $0x6c] sm:$0xf]
        %v1874 = vld [vmem:[#allocation14 + $0x70] sm:$0xf]
        %v1875 = vld [vmem:[#allocation14 + $0x74] sm:$0xf]
        %v1876 = vld [vmem:[#allocation14 + $0x78] sm:$0xf]
        %v1877 = vld [vmem:[#allocation14 + $0x7c] sm:$0xf]
        %v1878 = vld [vmem:[#allocation14 + $0x80] sm:$0xf]
        %v1879 = vld [vmem:[#allocation14 + $0x84] sm:$0xf]
        %v1880 = vld [vmem:[#allocation14 + $0x88] sm:$0xf]
        %v1881 = vld [vmem:[#allocation14 + $0x8c] sm:$0xf]
        %v1882 = vld [vmem:[#allocation14 + $0x90] sm:$0xf]
        %v1883 = vld [vmem:[#allocation14 + $0x94] sm:$0xf]
        %v1884 = vld [vmem:[#allocation14 + $0x98] sm:$0xf]
        %v1885 = vld [vmem:[#allocation14 + $0x9c] sm:$0xf]
        %v1886 = vld [vmem:[#allocation14 + $0xa0] sm:$0xf]
        %v1887 = vld [vmem:[#allocation14 + $0xa4] sm:$0xf]
        %v1888 = vld [vmem:[#allocation14 + $0xa8] sm:$0xf]
        %v1889 = vld [vmem:[#allocation14 + $0xac] sm:$0xf]
        %v1890 = vld [vmem:[#allocation14 + $0xb0] sm:$0xf]
        %v1891 = vld [vmem:[#allocation14 + $0xb4] sm:$0xf]
        %v1892 = vld [vmem:[#allocation14 + $0xb8] sm:$0xf]
        %v1893 = vld [vmem:[#allocation14 + $0xbc] sm:$0xf]
        %v1894 = vld [vmem:[#allocation14 + $0xc0] sm:$0xf]
        %v1895 = vld [vmem:[#allocation14 + $0xc4] sm:$0xf]
        %v1896 = vld [vmem:[#allocation14 + $0xc8] sm:$0xf]
        %v1897 = vld [vmem:[#allocation14 + $0xcc] sm:$0xf]
        %v1898 = vld [vmem:[#allocation14 + $0xd0] sm:$0xf]
        %v1899 = vld [vmem:[#allocation14 + $0xd4] sm:$0xf]
        %v1900 = vld [vmem:[#allocation14 + $0xd8] sm:$0xf]
        %v1901 = vld [vmem:[#allocation14 + $0xdc] sm:$0xf]
        %v1902 = vld [vmem:[#allocation14 + $0xe0] sm:$0xf]
        %v1903 = vld [vmem:[#allocation14 + $0xe4] sm:$0xf]
        %v1904 = vld [vmem:[#allocation14 + $0xe8] sm:$0xf]
        %v1905 = vld [vmem:[#allocation14 + $0xec] sm:$0xf]
        %v1906 = vld [vmem:[#allocation14 + $0xf0] sm:$0xf]
        %v1907 = vld [vmem:[#allocation14 + $0xf4] sm:$0xf]
        %v1908 = vld [vmem:[#allocation14 + $0xf8] sm:$0xf]
        %v1909 = vld [vmem:[#allocation14 + $0xfc] sm:$0xf]
        %v1910 = vld [vmem:[#allocation14 + $0x100] sm:$0xf]
        %v1911 = vld [vmem:[#allocation14 + $0x104] sm:$0xf]
        %v1912 = vld [vmem:[#allocation14 + $0x108] sm:$0xf]
        %v1913 = vld [vmem:[#allocation14 + $0x10c] sm:$0xf]
        %v1914 = vld [vmem:[#allocation14 + $0x110] sm:$0xf]
        %v1915 = vld [vmem:[#allocation14 + $0x114] sm:$0xf]
        %v1916 = vld [vmem:[#allocation14 + $0x118] sm:$0xf]
        %v1917 = vld [vmem:[#allocation14 + $0x11c] sm:$0xf]
        %v1918 = vld [vmem:[#allocation14 + $0x120] sm:$0xf]
        %v1919 = vld [vmem:[#allocation14 + $0x124] sm:$0xf]
        %v1920 = vld [vmem:[#allocation14 + $0x128] sm:$0xf]
        %v1921 = vld [vmem:[#allocation14 + $0x12c] sm:$0xf]
        %v1922 = vld [vmem:[#allocation14 + $0x130] sm:$0xf]
        %v1923 = vld [vmem:[#allocation14 + $0x134] sm:$0xf]
        %v1924 = vld [vmem:[#allocation14 + $0x138] sm:$0xf]
        %v1925 = vld [vmem:[#allocation14 + $0x13c] sm:$0xf]
        %v1926 = vld [vmem:[#allocation14 + $0x140] sm:$0xf]
        %v1927 = vld [vmem:[#allocation14 + $0x144] sm:$0xf]
        %v1928 = vld [vmem:[#allocation14 + $0x148] sm:$0xf]
        %v1929 = vld [vmem:[#allocation14 + $0x14c] sm:$0xf]
        %v1930 = vld [vmem:[#allocation14 + $0x150] sm:$0xf]
        %v1931 = vld [vmem:[#allocation14 + $0x154] sm:$0xf]
        %v1932 = vld [vmem:[#allocation14 + $0x158] sm:$0xf]
        %v1933 = vld [vmem:[#allocation14 + $0x15c] sm:$0xf]
        %v1934 = vld [vmem:[#allocation14 + $0x160] sm:$0xf]
        %v1935 = vld [vmem:[#allocation14 + $0x164] sm:$0xf]
        %v1936 = vld [vmem:[#allocation14 + $0x168] sm:$0xf]
        %v1937 = vld [vmem:[#allocation14 + $0x16c] sm:$0xf]
        %v1938 = vld [vmem:[#allocation14 + $0x170] sm:$0xf]
        %v1939 = vld [vmem:[#allocation14 + $0x174] sm:$0xf]
        %v1940 = vld [vmem:[#allocation14 + $0x178] sm:$0xf]
        %v1941 = vld [vmem:[#allocation14 + $0x17c] sm:$0xf]
        %v1942 = vld [vmem:[#allocation14 + $0x180] sm:$0xf]
        %v1943 = vld [vmem:[#allocation14 + $0x184] sm:$0xf]
        %v1944 = vld [vmem:[#allocation14 + $0x188] sm:$0xf]
        %v1945 = vld [vmem:[#allocation14 + $0x18c] sm:$0xf]
        %v1946 = vld [vmem:[#allocation14 + $0x190] sm:$0xf]
        %v1947 = vld [vmem:[#allocation14 + $0x194] sm:$0xf]
        %v1948 = vld [vmem:[#allocation14 + $0x198] sm:$0xf]
        %v1949 = vld [vmem:[#allocation14 + $0x19c] sm:$0xf]
        %v1950 = vld [vmem:[#allocation14 + $0x1a0] sm:$0xf]
        %v1951 = vld [vmem:[#allocation14 + $0x1a4] sm:$0xf]
        %v1952 = vld [vmem:[#allocation14 + $0x1a8] sm:$0xf]
        %v1953 = vld [vmem:[#allocation14 + $0x1ac] sm:$0xf]
        %v1954 = vld [vmem:[#allocation14 + $0x1b0] sm:$0xf]
        %v1955 = vld [vmem:[#allocation14 + $0x1b4] sm:$0xf]
        %v1956 = vld [vmem:[#allocation14 + $0x1b8] sm:$0xf]
        %v1957 = vld [vmem:[#allocation14 + $0x1bc] sm:$0xf]
        %v1958 = vld [vmem:[#allocation14 + $0x1c0] sm:$0xf]
        %v1959 = vld [vmem:[#allocation14 + $0x1c4] sm:$0xf]
        %v1960 = vld [vmem:[#allocation14 + $0x1c8] sm:$0xf]
        %v1961 = vld [vmem:[#allocation14 + $0x1cc] sm:$0xf]
        %v1962 = vld [vmem:[#allocation14 + $0x1d0] sm:$0xf]
        %v1963 = vld [vmem:[#allocation14 + $0x1d4] sm:$0xf]
        %v1964 = vld [vmem:[#allocation14 + $0x1d8] sm:$0xf]
        %v1965 = vld [vmem:[#allocation14 + $0x1dc] sm:$0xf]
        %v1966 = vld [vmem:[#allocation14 + $0x1e0] sm:$0xf]
        %v1967 = vld [vmem:[#allocation14 + $0x1e4] sm:$0xf]
        %v1968 = vld [vmem:[#allocation14 + $0x1e8] sm:$0xf]
        %v1969 = vld [vmem:[#allocation14 + $0x1ec] sm:$0xf]
        %v1970 = vld [vmem:[#allocation14 + $0x1f0] sm:$0xf]
        %v1971 = vld [vmem:[#allocation14 + $0x1f4] sm:$0xf]
        %v1972 = vld [vmem:[#allocation14 + $0x1f8] sm:$0xf]
        %v1973 = vld [vmem:[#allocation14 + $0x1fc] sm:$0xf]
        %v1974 = vld [vmem:[#allocation14 + $0x200] sm:$0xf]
        %v1975 = vld [vmem:[#allocation14 + $0x204] sm:$0xf]
        %v1976 = vld [vmem:[#allocation14 + $0x208] sm:$0xf]
        %v1977 = vld [vmem:[#allocation14 + $0x20c] sm:$0xf]
        %v1978 = vld [vmem:[#allocation14 + $0x210] sm:$0xf]
        %v1979 = vld [vmem:[#allocation14 + $0x214] sm:$0xf]
        %v1980 = vld [vmem:[#allocation14 + $0x218] sm:$0xf]
        %v1981 = vld [vmem:[#allocation14 + $0x21c] sm:$0xf]
        %v1982 = vld [vmem:[#allocation14 + $0x220] sm:$0xf]
        %v1983 = vld [vmem:[#allocation14 + $0x224] sm:$0xf]
        %v1984 = vld [vmem:[#allocation14 + $0x228] sm:$0xf]
        %v1985 = vld [vmem:[#allocation14 + $0x22c] sm:$0xf]
        %v1986 = vld [vmem:[#allocation14 + $0x230] sm:$0xf]
        %v1987 = vld [vmem:[#allocation14 + $0x234] sm:$0xf]
        %v1988 = vld [vmem:[#allocation14 + $0x238] sm:$0xf]
        %v1989 = vld [vmem:[#allocation14 + $0x23c] sm:$0xf]
        %v2070 = vunpack.c.l.b16 %v1766
        %v2071 = vunpack.c.h.b16 %v1766
        %v2072 = vunpack.c.l.b16 %v1767
        %v2073 = vunpack.c.h.b16 %v1767
        %v2074 = vunpack.c.l.b16 %v1768
        %v2075 = vunpack.c.h.b16 %v1768
        %v2076 = vunpack.c.l.b16 %v1769
        %v2077 = vunpack.c.h.b16 %v1769
        %v2078 = vunpack.c.l.b16 %v1770
        %v2079 = vunpack.c.l.b16 %v1771
        %v2080 = vunpack.c.h.b16 %v1771
        %v2081 = vunpack.c.l.b16 %v1772
        %v2082 = vunpack.c.h.b16 %v1772
        %v2083 = vunpack.c.l.b16 %v1773
        %v2084 = vunpack.c.h.b16 %v1773
        %v2085 = vunpack.c.l.b16 %v1774
        %v2086 = vunpack.c.h.b16 %v1774
        %v2087 = vunpack.c.l.b16 %v1775
        %v2088 = vunpack.c.l.b16 %v1776
        %v2089 = vunpack.c.h.b16 %v1776
        %v2090 = vunpack.c.l.b16 %v1777
        %v2091 = vunpack.c.h.b16 %v1777
        %v2092 = vunpack.c.l.b16 %v1778
        %v2093 = vunpack.c.h.b16 %v1778
        %v2094 = vunpack.c.l.b16 %v1779
        %v2095 = vunpack.c.h.b16 %v1779
        %v2096 = vunpack.c.l.b16 %v1780
        %v2097 = vunpack.c.l.b16 %v1781
        %v2098 = vunpack.c.h.b16 %v1781
        %v2099 = vunpack.c.l.b16 %v1782
        %v2100 = vunpack.c.h.b16 %v1782
        %v2101 = vunpack.c.l.b16 %v1783
        %v2102 = vunpack.c.h.b16 %v1783
        %v2103 = vunpack.c.l.b16 %v1784
        %v2104 = vunpack.c.h.b16 %v1784
        %v2105 = vunpack.c.l.b16 %v1785
        %v2106 = vunpack.c.l.b16 %v1786
        %v2107 = vunpack.c.h.b16 %v1786
        %v2108 = vunpack.c.l.b16 %v1787
        %v2109 = vunpack.c.h.b16 %v1787
        %v2110 = vunpack.c.l.b16 %v1788
        %v2111 = vunpack.c.h.b16 %v1788
        %v2112 = vunpack.c.l.b16 %v1789
        %v2113 = vunpack.c.h.b16 %v1789
        %v2114 = vunpack.c.l.b16 %v1790
        %v2115 = vunpack.c.l.b16 %v1791
        %v2116 = vunpack.c.h.b16 %v1791
        %v2117 = vunpack.c.l.b16 %v1792
        %v2118 = vunpack.c.h.b16 %v1792
        %v2119 = vunpack.c.l.b16 %v1793
        %v2120 = vunpack.c.h.b16 %v1793
        %v2121 = vunpack.c.l.b16 %v1794
        %v2122 = vunpack.c.h.b16 %v1794
        %v2123 = vunpack.c.l.b16 %v1795
        %v2124 = vunpack.c.l.b16 %v1796
        %v2125 = vunpack.c.h.b16 %v1796
        %v2126 = vunpack.c.l.b16 %v1797
        %v2127 = vunpack.c.h.b16 %v1797
        %v2128 = vunpack.c.l.b16 %v1798
        %v2129 = vunpack.c.h.b16 %v1798
        %v2130 = vunpack.c.l.b16 %v1799
        %v2131 = vunpack.c.h.b16 %v1799
        %v2132 = vunpack.c.l.b16 %v1800
        %v2133 = vunpack.c.l.b16 %v1801
        %v2134 = vunpack.c.h.b16 %v1801
        %v2135 = vunpack.c.l.b16 %v1802
        %v2136 = vunpack.c.h.b16 %v1802
        %v2137 = vunpack.c.l.b16 %v1803
        %v2138 = vunpack.c.h.b16 %v1803
        %v2139 = vunpack.c.l.b16 %v1804
        %v2140 = vunpack.c.h.b16 %v1804
        %v2141 = vunpack.c.l.b16 %v1805
        %v2142 = vunpack.c.l.b16 %v1806
        %v2143 = vunpack.c.h.b16 %v1806
        %v2144 = vunpack.c.l.b16 %v1807
        %v2145 = vunpack.c.h.b16 %v1807
        %v2146 = vunpack.c.l.b16 %v1808
        %v2147 = vunpack.c.h.b16 %v1808
        %v2148 = vunpack.c.l.b16 %v1809
        %v2149 = vunpack.c.h.b16 %v1809
        %v2150 = vunpack.c.l.b16 %v1810
        %v2151 = vunpack.c.l.b16 %v1811
        %v2152 = vunpack.c.h.b16 %v1811
        %v2153 = vunpack.c.l.b16 %v1812
        %v2154 = vunpack.c.h.b16 %v1812
        %v2155 = vunpack.c.l.b16 %v1813
        %v2156 = vunpack.c.h.b16 %v1813
        %v2157 = vunpack.c.l.b16 %v1814
        %v2158 = vunpack.c.h.b16 %v1814
        %v2159 = vunpack.c.l.b16 %v1815
        %v2160 = vunpack.c.l.b16 %v1816
        %v2161 = vunpack.c.h.b16 %v1816
        %v2162 = vunpack.c.l.b16 %v1817
        %v2163 = vunpack.c.h.b16 %v1817
        %v2164 = vunpack.c.l.b16 %v1818
        %v2165 = vunpack.c.h.b16 %v1818
        %v2166 = vunpack.c.l.b16 %v1819
        %v2167 = vunpack.c.h.b16 %v1819
        %v2168 = vunpack.c.l.b16 %v1820
        %v2169 = vunpack.c.l.b16 %v1821
        %v2170 = vunpack.c.h.b16 %v1821
        %v2171 = vunpack.c.l.b16 %v1822
        %v2172 = vunpack.c.h.b16 %v1822
        %v2173 = vunpack.c.l.b16 %v1823
        %v2174 = vunpack.c.h.b16 %v1823
        %v2175 = vunpack.c.l.b16 %v1824
        %v2176 = vunpack.c.h.b16 %v1824
        %v2177 = vunpack.c.l.b16 %v1825
        %v2178 = vunpack.c.l.b16 %v1826
        %v2179 = vunpack.c.h.b16 %v1826
        %v2180 = vunpack.c.l.b16 %v1827
        %v2181 = vunpack.c.h.b16 %v1827
        %v2182 = vunpack.c.l.b16 %v1828
        %v2183 = vunpack.c.h.b16 %v1828
        %v2184 = vunpack.c.l.b16 %v1829
        %v2185 = vunpack.c.h.b16 %v1829
        %v2186 = vunpack.c.l.b16 %v1830
        %v2187 = vunpack.c.l.b16 %v1831
        %v2188 = vunpack.c.h.b16 %v1831
        %v2189 = vunpack.c.l.b16 %v1832
        %v2190 = vunpack.c.h.b16 %v1832
        %v2191 = vunpack.c.l.b16 %v1833
        %v2192 = vunpack.c.h.b16 %v1833
        %v2193 = vunpack.c.l.b16 %v1834
        %v2194 = vunpack.c.h.b16 %v1834
        %v2195 = vunpack.c.l.b16 %v1835
        %v2196 = vunpack.c.l.b16 %v1836
        %v2197 = vunpack.c.h.b16 %v1836
        %v2198 = vunpack.c.l.b16 %v1837
        %v2199 = vunpack.c.h.b16 %v1837
        %v2200 = vunpack.c.l.b16 %v1838
        %v2201 = vunpack.c.h.b16 %v1838
        %v2202 = vunpack.c.l.b16 %v1839
        %v2203 = vunpack.c.h.b16 %v1839
        %v2204 = vunpack.c.l.b16 %v1840
        %v2205 = vunpack.c.l.b16 %v1841
        %v2206 = vunpack.c.h.b16 %v1841
        %v2207 = vunpack.c.l.b16 %v1842
        %v2208 = vunpack.c.h.b16 %v1842
        %v2209 = vunpack.c.l.b16 %v1843
        %v2210 = vunpack.c.h.b16 %v1843
        %v2211 = vunpack.c.l.b16 %v1844
        %v2212 = vunpack.c.h.b16 %v1844
        %v2213 = vunpack.c.l.b16 %v1845
        %v2214 = vpack.c.b16 %v2079, %v2070
        %v2215 = vpack.c.b16 %v2080, %v2071
        %v2216 = vpack.c.b16 %v2081, %v2072
        %v2217 = vpack.c.b16 %v2082, %v2073
        %v2218 = vpack.c.b16 %v2083, %v2074
        %v2219 = vpack.c.b16 %v2084, %v2075
        %v2220 = vpack.c.b16 %v2085, %v2076
        %v2221 = vpack.c.b16 %v2086, %v2077
        %v2222 = vpack.c.b16 %v2087, %v2078
        %v2223 = vpack.c.b16 %v2097, %v2088
        %v2224 = vpack.c.b16 %v2098, %v2089
        %v2225 = vpack.c.b16 %v2099, %v2090
        %v2226 = vpack.c.b16 %v2100, %v2091
        %v2227 = vpack.c.b16 %v2101, %v2092
        %v2228 = vpack.c.b16 %v2102, %v2093
        %v2229 = vpack.c.b16 %v2103, %v2094
        %v2230 = vpack.c.b16 %v2104, %v2095
        %v2231 = vpack.c.b16 %v2105, %v2096
        %v2232 = vpack.c.b16 %v2115, %v2106
        %v2233 = vpack.c.b16 %v2116, %v2107
        %v2234 = vpack.c.b16 %v2117, %v2108
        %v2235 = vpack.c.b16 %v2118, %v2109
        %v2236 = vpack.c.b16 %v2119, %v2110
        %v2237 = vpack.c.b16 %v2120, %v2111
        %v2238 = vpack.c.b16 %v2121, %v2112
        %v2239 = vpack.c.b16 %v2122, %v2113
        %v2240 = vpack.c.b16 %v2123, %v2114
        %v2241 = vpack.c.b16 %v2133, %v2124
        %v2242 = vpack.c.b16 %v2134, %v2125
        %v2243 = vpack.c.b16 %v2135, %v2126
        %v2244 = vpack.c.b16 %v2136, %v2127
        %v2245 = vpack.c.b16 %v2137, %v2128
        %v2246 = vpack.c.b16 %v2138, %v2129
        %v2247 = vpack.c.b16 %v2139, %v2130
        %v2248 = vpack.c.b16 %v2140, %v2131
        %v2249 = vpack.c.b16 %v2141, %v2132
        %v2250 = vpack.c.b16 %v2151, %v2142
        %v2251 = vpack.c.b16 %v2152, %v2143
        %v2252 = vpack.c.b16 %v2153, %v2144
        %v2253 = vpack.c.b16 %v2154, %v2145
        %v2254 = vpack.c.b16 %v2155, %v2146
        %v2255 = vpack.c.b16 %v2156, %v2147
        %v2256 = vpack.c.b16 %v2157, %v2148
        %v2257 = vpack.c.b16 %v2158, %v2149
        %v2258 = vpack.c.b16 %v2159, %v2150
        %v2259 = vpack.c.b16 %v2169, %v2160
        %v2260 = vpack.c.b16 %v2170, %v2161
        %v2261 = vpack.c.b16 %v2171, %v2162
        %v2262 = vpack.c.b16 %v2172, %v2163
        %v2263 = vpack.c.b16 %v2173, %v2164
        %v2264 = vpack.c.b16 %v2174, %v2165
        %v2265 = vpack.c.b16 %v2175, %v2166
        %v2266 = vpack.c.b16 %v2176, %v2167
        %v2267 = vpack.c.b16 %v2177, %v2168
        %v2268 = vpack.c.b16 %v2187, %v2178
        %v2269 = vpack.c.b16 %v2188, %v2179
        %v2270 = vpack.c.b16 %v2189, %v2180
        %v2271 = vpack.c.b16 %v2190, %v2181
        %v2272 = vpack.c.b16 %v2191, %v2182
        %v2273 = vpack.c.b16 %v2192, %v2183
        %v2274 = vpack.c.b16 %v2193, %v2184
        %v2275 = vpack.c.b16 %v2194, %v2185
        %v2276 = vpack.c.b16 %v2195, %v2186
        %v2277 = vpack.c.b16 %v2205, %v2196
        %v2278 = vpack.c.b16 %v2206, %v2197
        %v2279 = vpack.c.b16 %v2207, %v2198
        %v2280 = vpack.c.b16 %v2208, %v2199
        %v2281 = vpack.c.b16 %v2209, %v2200
        %v2282 = vpack.c.b16 %v2210, %v2201
        %v2283 = vpack.c.b16 %v2211, %v2202
        %v2284 = vpack.c.b16 %v2212, %v2203
        %v2285 = vpack.c.b16 %v2213, %v2204
        %v2502 = vunpack.c.l.b16 %v1846
        %v2503 = vunpack.c.l.b16 %v1847
        %v2504 = vunpack.c.l.b16 %v1848
        %v2505 = vunpack.c.l.b16 %v1849
        %v2506 = vunpack.c.l.b16 %v1850
        %v2507 = vunpack.c.l.b16 %v1851
        %v2508 = vunpack.c.l.b16 %v1852
        %v2509 = vunpack.c.l.b16 %v1853
        %v2510 = vunpack.c.l.b16 %v1854
        %v2511 = vunpack.c.l.b16 %v1855
        %v2512 = vunpack.c.l.b16 %v1856
        %v2513 = vunpack.c.l.b16 %v1857
        %v2514 = vunpack.c.l.b16 %v1858
        %v2515 = vunpack.c.l.b16 %v1859
        %v2516 = vunpack.c.l.b16 %v1860
        %v2517 = vunpack.c.l.b16 %v1861
        %v2518 = vunpack.c.l.b16 %v1862
        %v2519 = vunpack.c.l.b16 %v1863
        %v2520 = vunpack.c.l.b16 %v1864
        %v2521 = vunpack.c.l.b16 %v1865
        %v2522 = vunpack.c.l.b16 %v1866
        %v2523 = vunpack.c.l.b16 %v1867
        %v2524 = vunpack.c.l.b16 %v1868
        %v2525 = vunpack.c.l.b16 %v1869
        %v2526 = vunpack.c.l.b16 %v1870
        %v2527 = vunpack.c.l.b16 %v1871
        %v2528 = vunpack.c.l.b16 %v1872
        %v2529 = vunpack.c.l.b16 %v1873
        %v2530 = vunpack.c.l.b16 %v1874
        %v2531 = vunpack.c.l.b16 %v1875
        %v2532 = vunpack.c.l.b16 %v1876
        %v2533 = vunpack.c.l.b16 %v1877
        %v2534 = vunpack.c.l.b16 %v1878
        %v2535 = vunpack.c.l.b16 %v1879
        %v2536 = vunpack.c.l.b16 %v1880
        %v2537 = vunpack.c.l.b16 %v1881
        %v2538 = vunpack.c.l.b16 %v1882
        %v2539 = vunpack.c.l.b16 %v1883
        %v2540 = vunpack.c.l.b16 %v1884
        %v2541 = vunpack.c.l.b16 %v1885
        %v2542 = vunpack.c.l.b16 %v1886
        %v2543 = vunpack.c.l.b16 %v1887
        %v2544 = vunpack.c.l.b16 %v1888
        %v2545 = vunpack.c.l.b16 %v1889
        %v2546 = vunpack.c.l.b16 %v1890
        %v2547 = vunpack.c.l.b16 %v1891
        %v2548 = vunpack.c.l.b16 %v1892
        %v2549 = vunpack.c.l.b16 %v1893
        %v2550 = vunpack.c.l.b16 %v1894
        %v2551 = vunpack.c.l.b16 %v1895
        %v2552 = vunpack.c.l.b16 %v1896
        %v2553 = vunpack.c.l.b16 %v1897
        %v2554 = vunpack.c.l.b16 %v1898
        %v2555 = vunpack.c.l.b16 %v1899
        %v2556 = vunpack.c.l.b16 %v1900
        %v2557 = vunpack.c.l.b16 %v1901
        %v2558 = vunpack.c.l.b16 %v1902
        %v2559 = vunpack.c.l.b16 %v1903
        %v2560 = vunpack.c.l.b16 %v1904
        %v2561 = vunpack.c.l.b16 %v1905
        %v2562 = vunpack.c.l.b16 %v1906
        %v2563 = vunpack.c.l.b16 %v1907
        %v2564 = vunpack.c.l.b16 %v1908
        %v2565 = vunpack.c.l.b16 %v1909
        %v2566 = vunpack.c.l.b16 %v1910
        %v2567 = vunpack.c.l.b16 %v1911
        %v2568 = vunpack.c.l.b16 %v1912
        %v2569 = vunpack.c.l.b16 %v1913
        %v2570 = vunpack.c.l.b16 %v1914
        %v2571 = vunpack.c.l.b16 %v1915
        %v2572 = vunpack.c.l.b16 %v1916
        %v2573 = vunpack.c.l.b16 %v1917
        %v2574 = vunpack.c.l.b16 %v1918
        %v2575 = vunpack.c.l.b16 %v1919
        %v2576 = vunpack.c.l.b16 %v1920
        %v2577 = vunpack.c.l.b16 %v1921
        %v2578 = vunpack.c.l.b16 %v1922
        %v2579 = vunpack.c.l.b16 %v1923
        %v2580 = vunpack.c.l.b16 %v1924
        %v2581 = vunpack.c.l.b16 %v1925
        %v2582 = vunpack.c.l.b16 %v1926
        %v2583 = vunpack.c.l.b16 %v1927
        %v2584 = vunpack.c.l.b16 %v1928
        %v2585 = vunpack.c.l.b16 %v1929
        %v2586 = vunpack.c.l.b16 %v1930
        %v2587 = vunpack.c.l.b16 %v1931
        %v2588 = vunpack.c.l.b16 %v1932
        %v2589 = vunpack.c.l.b16 %v1933
        %v2590 = vunpack.c.l.b16 %v1934
        %v2591 = vunpack.c.l.b16 %v1935
        %v2592 = vunpack.c.l.b16 %v1936
        %v2593 = vunpack.c.l.b16 %v1937
        %v2594 = vunpack.c.l.b16 %v1938
        %v2595 = vunpack.c.l.b16 %v1939
        %v2596 = vunpack.c.l.b16 %v1940
        %v2597 = vunpack.c.l.b16 %v1941
        %v2598 = vunpack.c.l.b16 %v1942
        %v2599 = vunpack.c.l.b16 %v1943
        %v2600 = vunpack.c.l.b16 %v1944
        %v2601 = vunpack.c.l.b16 %v1945
        %v2602 = vunpack.c.l.b16 %v1946
        %v2603 = vunpack.c.l.b16 %v1947
        %v2604 = vunpack.c.l.b16 %v1948
        %v2605 = vunpack.c.l.b16 %v1949
        %v2606 = vunpack.c.l.b16 %v1950
        %v2607 = vunpack.c.l.b16 %v1951
        %v2608 = vunpack.c.l.b16 %v1952
        %v2609 = vunpack.c.l.b16 %v1953
        %v2610 = vunpack.c.l.b16 %v1954
        %v2611 = vunpack.c.l.b16 %v1955
        %v2612 = vunpack.c.l.b16 %v1956
        %v2613 = vunpack.c.l.b16 %v1957
        %v2614 = vunpack.c.l.b16 %v1958
        %v2615 = vunpack.c.l.b16 %v1959
        %v2616 = vunpack.c.l.b16 %v1960
        %v2617 = vunpack.c.l.b16 %v1961
        %v2618 = vunpack.c.l.b16 %v1962
        %v2619 = vunpack.c.l.b16 %v1963
        %v2620 = vunpack.c.l.b16 %v1964
        %v2621 = vunpack.c.l.b16 %v1965
        %v2622 = vunpack.c.l.b16 %v1966
        %v2623 = vunpack.c.l.b16 %v1967
        %v2624 = vunpack.c.l.b16 %v1968
        %v2625 = vunpack.c.l.b16 %v1969
        %v2626 = vunpack.c.l.b16 %v1970
        %v2627 = vunpack.c.l.b16 %v1971
        %v2628 = vunpack.c.l.b16 %v1972
        %v2629 = vunpack.c.l.b16 %v1973
        %v2630 = vunpack.c.l.b16 %v1974
        %v2631 = vunpack.c.l.b16 %v1975
        %v2632 = vunpack.c.l.b16 %v1976
        %v2633 = vunpack.c.l.b16 %v1977
        %v2634 = vunpack.c.l.b16 %v1978
        %v2635 = vunpack.c.l.b16 %v1979
        %v2636 = vunpack.c.l.b16 %v1980
        %v2637 = vunpack.c.l.b16 %v1981
        %v2638 = vunpack.c.l.b16 %v1982
        %v2639 = vunpack.c.l.b16 %v1983
        %v2640 = vunpack.c.l.b16 %v1984
        %v2641 = vunpack.c.l.b16 %v1985
        %v2642 = vunpack.c.l.b16 %v1986
        %v2643 = vunpack.c.l.b16 %v1987
        %v2644 = vunpack.c.l.b16 %v1988
        %v2645 = vunpack.c.l.b16 %v1989
        %v2646 = vpack.c.b16 %v2503, %v2502
        %v2647 = vpack.c.b16 %v2505, %v2504
        %v2648 = vpack.c.b16 %v2507, %v2506
        %v2649 = vpack.c.b16 %v2509, %v2508
        %v2650 = vpack.c.b16 %v2511, %v2510
        %v2651 = vpack.c.b16 %v2513, %v2512
        %v2652 = vpack.c.b16 %v2515, %v2514
        %v2653 = vpack.c.b16 %v2517, %v2516
        %v2654 = vpack.c.b16 %v2519, %v2518
        %v2655 = vpack.c.b16 %v2521, %v2520
        %v2656 = vpack.c.b16 %v2523, %v2522
        %v2657 = vpack.c.b16 %v2525, %v2524
        %v2658 = vpack.c.b16 %v2527, %v2526
        %v2659 = vpack.c.b16 %v2529, %v2528
        %v2660 = vpack.c.b16 %v2531, %v2530
        %v2661 = vpack.c.b16 %v2533, %v2532
        %v2662 = vpack.c.b16 %v2535, %v2534
        %v2663 = vpack.c.b16 %v2537, %v2536
        %v2664 = vpack.c.b16 %v2539, %v2538
        %v2665 = vpack.c.b16 %v2541, %v2540
        %v2666 = vpack.c.b16 %v2543, %v2542
        %v2667 = vpack.c.b16 %v2545, %v2544
        %v2668 = vpack.c.b16 %v2547, %v2546
        %v2669 = vpack.c.b16 %v2549, %v2548
        %v2670 = vpack.c.b16 %v2551, %v2550
        %v2671 = vpack.c.b16 %v2553, %v2552
        %v2672 = vpack.c.b16 %v2555, %v2554
        %v2673 = vpack.c.b16 %v2557, %v2556
        %v2674 = vpack.c.b16 %v2559, %v2558
        %v2675 = vpack.c.b16 %v2561, %v2560
        %v2676 = vpack.c.b16 %v2563, %v2562
        %v2677 = vpack.c.b16 %v2565, %v2564
        %v2678 = vpack.c.b16 %v2567, %v2566
        %v2679 = vpack.c.b16 %v2569, %v2568
        %v2680 = vpack.c.b16 %v2571, %v2570
        %v2681 = vpack.c.b16 %v2573, %v2572
        %v2682 = vpack.c.b16 %v2575, %v2574
        %v2683 = vpack.c.b16 %v2577, %v2576
        %v2684 = vpack.c.b16 %v2579, %v2578
        %v2685 = vpack.c.b16 %v2581, %v2580
        %v2686 = vpack.c.b16 %v2583, %v2582
        %v2687 = vpack.c.b16 %v2585, %v2584
        %v2688 = vpack.c.b16 %v2587, %v2586
        %v2689 = vpack.c.b16 %v2589, %v2588
        %v2690 = vpack.c.b16 %v2591, %v2590
        %v2691 = vpack.c.b16 %v2593, %v2592
        %v2692 = vpack.c.b16 %v2595, %v2594
        %v2693 = vpack.c.b16 %v2597, %v2596
        %v2694 = vpack.c.b16 %v2599, %v2598
        %v2695 = vpack.c.b16 %v2601, %v2600
        %v2696 = vpack.c.b16 %v2603, %v2602
        %v2697 = vpack.c.b16 %v2605, %v2604
        %v2698 = vpack.c.b16 %v2607, %v2606
        %v2699 = vpack.c.b16 %v2609, %v2608
        %v2700 = vpack.c.b16 %v2611, %v2610
        %v2701 = vpack.c.b16 %v2613, %v2612
        %v2702 = vpack.c.b16 %v2615, %v2614
        %v2703 = vpack.c.b16 %v2617, %v2616
        %v2704 = vpack.c.b16 %v2619, %v2618
        %v2705 = vpack.c.b16 %v2621, %v2620
        %v2706 = vpack.c.b16 %v2623, %v2622
        %v2707 = vpack.c.b16 %v2625, %v2624
        %v2708 = vpack.c.b16 %v2627, %v2626
        %v2709 = vpack.c.b16 %v2629, %v2628
        %v2710 = vpack.c.b16 %v2631, %v2630
        %v2711 = vpack.c.b16 %v2633, %v2632
        %v2712 = vpack.c.b16 %v2635, %v2634
        %v2713 = vpack.c.b16 %v2637, %v2636
        %v2714 = vpack.c.b16 %v2639, %v2638
        %v2715 = vpack.c.b16 %v2641, %v2640
        %v2716 = vpack.c.b16 %v2643, %v2642
        %v2717 = vpack.c.b16 %v2645, %v2644
        %2790 = vmatpush.bf16.msra.mxu0 %v2653
        %2791 = vmatpush.bf16.msra.mxu0 %v2652
        %2792 = vmatpush.bf16.msra.mxu0 %v2651
        %2793 = vmatpush.bf16.msra.mxu0 %v2650
        %2794 = vmatpush.bf16.msra.mxu0 %v2649
        %2795 = vmatpush.bf16.msra.mxu0 %v2648
        %2796 = vmatpush.bf16.msra.mxu0 %v2647
        %2797 = vmatpush.bf16.msra.mxu0 %v2646
        %2798 = vmatmul.bf16.gmra.mxu0 %v2214
        %v2799 = vpop.f32.mrf.mxu0
        %v2800 = vadd.f32 0.0, %v2799
        %v2801 = vpop.f32.mrf.mxu0
        %v2802 = vadd.f32 0.0, %v2801
        %2803 = vmatmul.bf16.gmra.mxu0 %v2223
        %v2804 = vpop.f32.mrf.mxu0
        %v2805 = vadd.f32 0.0, %v2804
        %v2806 = vpop.f32.mrf.mxu0
        %v2807 = vadd.f32 0.0, %v2806
        %2808 = vmatmul.bf16.gmra.mxu0 %v2232
        %v2809 = vpop.f32.mrf.mxu0
        %v2810 = vadd.f32 0.0, %v2809
        %v2811 = vpop.f32.mrf.mxu0
        %v2812 = vadd.f32 0.0, %v2811
        %2813 = vmatmul.bf16.gmra.mxu0 %v2241
        %v2814 = vpop.f32.mrf.mxu0
        %v2815 = vadd.f32 0.0, %v2814
        %v2816 = vpop.f32.mrf.mxu0
        %v2817 = vadd.f32 0.0, %v2816
        %2818 = vmatmul.bf16.gmra.mxu0 %v2250
        %v2819 = vpop.f32.mrf.mxu0
        %v2820 = vadd.f32 0.0, %v2819
        %v2821 = vpop.f32.mrf.mxu0
        %v2822 = vadd.f32 0.0, %v2821
        %2823 = vmatmul.bf16.gmra.mxu0 %v2259
        %v2824 = vpop.f32.mrf.mxu0
        %v2825 = vadd.f32 0.0, %v2824
        %v2826 = vpop.f32.mrf.mxu0
        %v2827 = vadd.f32 0.0, %v2826
        %2828 = vmatmul.bf16.gmra.mxu0 %v2268
        %v2829 = vpop.f32.mrf.mxu0
        %v2830 = vadd.f32 0.0, %v2829
        %v2831 = vpop.f32.mrf.mxu0
        %v2832 = vadd.f32 0.0, %v2831
        %2833 = vmatmul.bf16.gmra.mxu0 %v2277
        %v2834 = vpop.f32.mrf.mxu0
        %v2835 = vadd.f32 0.0, %v2834
        %v2836 = vpop.f32.mrf.mxu0
        %v2837 = vadd.f32 0.0, %v2836
        %2838 = vdwg.mxu0
        %2839 = vmatpush.bf16.msra.mxu0 %v2661
        %2840 = vmatpush.bf16.msra.mxu0 %v2660
        %2841 = vmatpush.bf16.msra.mxu0 %v2659
        %2842 = vmatpush.bf16.msra.mxu0 %v2658
        %2843 = vmatpush.bf16.msra.mxu0 %v2657
        %2844 = vmatpush.bf16.msra.mxu0 %v2656
        %2845 = vmatpush.bf16.msra.mxu0 %v2655
        %2846 = vmatpush.bf16.msra.mxu0 %v2654
        %2847 = vmatmul.bf16.gmra.mxu0 %v2215
        %v2848 = vpop.f32.mrf.mxu0
        %v2849 = vadd.f32 %v2800, %v2848
        %v2850 = vpop.f32.mrf.mxu0
        %v2851 = vadd.f32 %v2802, %v2850
        %2852 = vmatmul.bf16.gmra.mxu0 %v2224
        %v2853 = vpop.f32.mrf.mxu0
        %v2854 = vadd.f32 %v2805, %v2853
        %v2855 = vpop.f32.mrf.mxu0
        %v2856 = vadd.f32 %v2807, %v2855
        %2857 = vmatmul.bf16.gmra.mxu0 %v2233
        %v2858 = vpop.f32.mrf.mxu0
        %v2859 = vadd.f32 %v2810, %v2858
        %v2860 = vpop.f32.mrf.mxu0
        %v2861 = vadd.f32 %v2812, %v2860
        %2862 = vmatmul.bf16.gmra.mxu0 %v2242
        %v2863 = vpop.f32.mrf.mxu0
        %v2864 = vadd.f32 %v2815, %v2863
        %v2865 = vpop.f32.mrf.mxu0
        %v2866 = vadd.f32 %v2817, %v2865
        %2867 = vmatmul.bf16.gmra.mxu0 %v2251
        %v2868 = vpop.f32.mrf.mxu0
        %v2869 = vadd.f32 %v2820, %v2868
        %v2870 = vpop.f32.mrf.mxu0
        %v2871 = vadd.f32 %v2822, %v2870
        %2872 = vmatmul.bf16.gmra.mxu0 %v2260
        %v2873 = vpop.f32.mrf.mxu0
        %v2874 = vadd.f32 %v2825, %v2873
        %v2875 = vpop.f32.mrf.mxu0
        %v2876 = vadd.f32 %v2827, %v2875
        %2877 = vmatmul.bf16.gmra.mxu0 %v2269
        %v2878 = vpop.f32.mrf.mxu0
        %v2879 = vadd.f32 %v2830, %v2878
        %v2880 = vpop.f32.mrf.mxu0
        %v2881 = vadd.f32 %v2832, %v2880
        %2882 = vmatmul.bf16.gmra.mxu0 %v2278
        %v2883 = vpop.f32.mrf.mxu0
        %v2884 = vadd.f32 %v2835, %v2883
        %v2885 = vpop.f32.mrf.mxu0
        %v2886 = vadd.f32 %v2837, %v2885
        %2887 = vdwg.mxu0
        %2888 = vmatpush.bf16.msra.mxu0 %v2669
        %2889 = vmatpush.bf16.msra.mxu0 %v2668
        %2890 = vmatpush.bf16.msra.mxu0 %v2667
        %2891 = vmatpush.bf16.msra.mxu0 %v2666
        %2892 = vmatpush.bf16.msra.mxu0 %v2665
        %2893 = vmatpush.bf16.msra.mxu0 %v2664
        %2894 = vmatpush.bf16.msra.mxu0 %v2663
        %2895 = vmatpush.bf16.msra.mxu0 %v2662
        %2896 = vmatmul.bf16.gmra.mxu0 %v2216
        %v2897 = vpop.f32.mrf.mxu0
        %v2898 = vadd.f32 %v2849, %v2897
        %v2899 = vpop.f32.mrf.mxu0
        %v2900 = vadd.f32 %v2851, %v2899
        %2901 = vmatmul.bf16.gmra.mxu0 %v2225
        %v2902 = vpop.f32.mrf.mxu0
        %v2903 = vadd.f32 %v2854, %v2902
        %v2904 = vpop.f32.mrf.mxu0
        %v2905 = vadd.f32 %v2856, %v2904
        %2906 = vmatmul.bf16.gmra.mxu0 %v2234
        %v2907 = vpop.f32.mrf.mxu0
        %v2908 = vadd.f32 %v2859, %v2907
        %v2909 = vpop.f32.mrf.mxu0
        %v2910 = vadd.f32 %v2861, %v2909
        %2911 = vmatmul.bf16.gmra.mxu0 %v2243
        %v2912 = vpop.f32.mrf.mxu0
        %v2913 = vadd.f32 %v2864, %v2912
        %v2914 = vpop.f32.mrf.mxu0
        %v2915 = vadd.f32 %v2866, %v2914
        %2916 = vmatmul.bf16.gmra.mxu0 %v2252
        %v2917 = vpop.f32.mrf.mxu0
        %v2918 = vadd.f32 %v2869, %v2917
        %v2919 = vpop.f32.mrf.mxu0
        %v2920 = vadd.f32 %v2871, %v2919
        %2921 = vmatmul.bf16.gmra.mxu0 %v2261
        %v2922 = vpop.f32.mrf.mxu0
        %v2923 = vadd.f32 %v2874, %v2922
        %v2924 = vpop.f32.mrf.mxu0
        %v2925 = vadd.f32 %v2876, %v2924
        %2926 = vmatmul.bf16.gmra.mxu0 %v2270
        %v2927 = vpop.f32.mrf.mxu0
        %v2928 = vadd.f32 %v2879, %v2927
        %v2929 = vpop.f32.mrf.mxu0
        %v2930 = vadd.f32 %v2881, %v2929
        %2931 = vmatmul.bf16.gmra.mxu0 %v2279
        %v2932 = vpop.f32.mrf.mxu0
        %v2933 = vadd.f32 %v2884, %v2932
        %v2934 = vpop.f32.mrf.mxu0
        %v2935 = vadd.f32 %v2886, %v2934
        %2936 = vdwg.mxu0
        %2937 = vmatpush.bf16.msra.mxu0 %v2677
        %2938 = vmatpush.bf16.msra.mxu0 %v2676
        %2939 = vmatpush.bf16.msra.mxu0 %v2675
        %2940 = vmatpush.bf16.msra.mxu0 %v2674
        %2941 = vmatpush.bf16.msra.mxu0 %v2673
        %2942 = vmatpush.bf16.msra.mxu0 %v2672
        %2943 = vmatpush.bf16.msra.mxu0 %v2671
        %2944 = vmatpush.bf16.msra.mxu0 %v2670
        %2945 = vmatmul.bf16.gmra.mxu0 %v2217
        %v2946 = vpop.f32.mrf.mxu0
        %v2947 = vadd.f32 %v2898, %v2946
        %v2948 = vpop.f32.mrf.mxu0
        %v2949 = vadd.f32 %v2900, %v2948
        %2950 = vmatmul.bf16.gmra.mxu0 %v2226
        %v2951 = vpop.f32.mrf.mxu0
        %v2952 = vadd.f32 %v2903, %v2951
        %v2953 = vpop.f32.mrf.mxu0
        %v2954 = vadd.f32 %v2905, %v2953
        %2955 = vmatmul.bf16.gmra.mxu0 %v2235
        %v2956 = vpop.f32.mrf.mxu0
        %v2957 = vadd.f32 %v2908, %v2956
        %v2958 = vpop.f32.mrf.mxu0
        %v2959 = vadd.f32 %v2910, %v2958
        %2960 = vmatmul.bf16.gmra.mxu0 %v2244
        %v2961 = vpop.f32.mrf.mxu0
        %v2962 = vadd.f32 %v2913, %v2961
        %v2963 = vpop.f32.mrf.mxu0
        %v2964 = vadd.f32 %v2915, %v2963
        %2965 = vmatmul.bf16.gmra.mxu0 %v2253
        %v2966 = vpop.f32.mrf.mxu0
        %v2967 = vadd.f32 %v2918, %v2966
        %v2968 = vpop.f32.mrf.mxu0
        %v2969 = vadd.f32 %v2920, %v2968
        %2970 = vmatmul.bf16.gmra.mxu0 %v2262
        %v2971 = vpop.f32.mrf.mxu0
        %v2972 = vadd.f32 %v2923, %v2971
        %v2973 = vpop.f32.mrf.mxu0
        %v2974 = vadd.f32 %v2925, %v2973
        %2975 = vmatmul.bf16.gmra.mxu0 %v2271
        %v2976 = vpop.f32.mrf.mxu0
        %v2977 = vadd.f32 %v2928, %v2976
        %v2978 = vpop.f32.mrf.mxu0
        %v2979 = vadd.f32 %v2930, %v2978
        %2980 = vmatmul.bf16.gmra.mxu0 %v2280
        %v2981 = vpop.f32.mrf.mxu0
        %v2982 = vadd.f32 %v2933, %v2981
        %v2983 = vpop.f32.mrf.mxu0
        %v2984 = vadd.f32 %v2935, %v2983
        %2985 = vdwg.mxu0
        %2986 = vmatpush.bf16.msra.mxu0 %v2685
        %2987 = vmatpush.bf16.msra.mxu0 %v2684
        %2988 = vmatpush.bf16.msra.mxu0 %v2683
        %2989 = vmatpush.bf16.msra.mxu0 %v2682
        %2990 = vmatpush.bf16.msra.mxu0 %v2681
        %2991 = vmatpush.bf16.msra.mxu0 %v2680
        %2992 = vmatpush.bf16.msra.mxu0 %v2679
        %2993 = vmatpush.bf16.msra.mxu0 %v2678
        %2994 = vmatmul.bf16.gmra.mxu0 %v2218
        %v2995 = vpop.f32.mrf.mxu0
        %v2996 = vadd.f32 %v2947, %v2995
        %v2997 = vpop.f32.mrf.mxu0
        %v2998 = vadd.f32 %v2949, %v2997
        %2999 = vmatmul.bf16.gmra.mxu0 %v2227
        %v3000 = vpop.f32.mrf.mxu0
        %v3001 = vadd.f32 %v2952, %v3000
        %v3002 = vpop.f32.mrf.mxu0
        %v3003 = vadd.f32 %v2954, %v3002
        %3004 = vmatmul.bf16.gmra.mxu0 %v2236
        %v3005 = vpop.f32.mrf.mxu0
        %v3006 = vadd.f32 %v2957, %v3005
        %v3007 = vpop.f32.mrf.mxu0
        %v3008 = vadd.f32 %v2959, %v3007
        %3009 = vmatmul.bf16.gmra.mxu0 %v2245
        %v3010 = vpop.f32.mrf.mxu0
        %v3011 = vadd.f32 %v2962, %v3010
        %v3012 = vpop.f32.mrf.mxu0
        %v3013 = vadd.f32 %v2964, %v3012
        %3014 = vmatmul.bf16.gmra.mxu0 %v2254
        %v3015 = vpop.f32.mrf.mxu0
        %v3016 = vadd.f32 %v2967, %v3015
        %v3017 = vpop.f32.mrf.mxu0
        %v3018 = vadd.f32 %v2969, %v3017
        %3019 = vmatmul.bf16.gmra.mxu0 %v2263
        %v3020 = vpop.f32.mrf.mxu0
        %v3021 = vadd.f32 %v2972, %v3020
        %v3022 = vpop.f32.mrf.mxu0
        %v3023 = vadd.f32 %v2974, %v3022
        %3024 = vmatmul.bf16.gmra.mxu0 %v2272
        %v3025 = vpop.f32.mrf.mxu0
        %v3026 = vadd.f32 %v2977, %v3025
        %v3027 = vpop.f32.mrf.mxu0
        %v3028 = vadd.f32 %v2979, %v3027
        %3029 = vmatmul.bf16.gmra.mxu0 %v2281
        %v3030 = vpop.f32.mrf.mxu0
        %v3031 = vadd.f32 %v2982, %v3030
        %v3032 = vpop.f32.mrf.mxu0
        %v3033 = vadd.f32 %v2984, %v3032
        %3034 = vdwg.mxu0
        %3035 = vmatpush.bf16.msra.mxu0 %v2693
        %3036 = vmatpush.bf16.msra.mxu0 %v2692
        %3037 = vmatpush.bf16.msra.mxu0 %v2691
        %3038 = vmatpush.bf16.msra.mxu0 %v2690
        %3039 = vmatpush.bf16.msra.mxu0 %v2689
        %3040 = vmatpush.bf16.msra.mxu0 %v2688
        %3041 = vmatpush.bf16.msra.mxu0 %v2687
        %3042 = vmatpush.bf16.msra.mxu0 %v2686
        %3043 = vmatmul.bf16.gmra.mxu0 %v2219
        %v3044 = vpop.f32.mrf.mxu0
        %v3045 = vadd.f32 %v2996, %v3044
        %v3046 = vpop.f32.mrf.mxu0
        %v3047 = vadd.f32 %v2998, %v3046
        %3048 = vmatmul.bf16.gmra.mxu0 %v2228
        %v3049 = vpop.f32.mrf.mxu0
        %v3050 = vadd.f32 %v3001, %v3049
        %v3051 = vpop.f32.mrf.mxu0
        %v3052 = vadd.f32 %v3003, %v3051
        %3053 = vmatmul.bf16.gmra.mxu0 %v2237
        %v3054 = vpop.f32.mrf.mxu0
        %v3055 = vadd.f32 %v3006, %v3054
        %v3056 = vpop.f32.mrf.mxu0
        %v3057 = vadd.f32 %v3008, %v3056
        %3058 = vmatmul.bf16.gmra.mxu0 %v2246
        %v3059 = vpop.f32.mrf.mxu0
        %v3060 = vadd.f32 %v3011, %v3059
        %v3061 = vpop.f32.mrf.mxu0
        %v3062 = vadd.f32 %v3013, %v3061
        %3063 = vmatmul.bf16.gmra.mxu0 %v2255
        %v3064 = vpop.f32.mrf.mxu0
        %v3065 = vadd.f32 %v3016, %v3064
        %v3066 = vpop.f32.mrf.mxu0
        %v3067 = vadd.f32 %v3018, %v3066
        %3068 = vmatmul.bf16.gmra.mxu0 %v2264
        %v3069 = vpop.f32.mrf.mxu0
        %v3070 = vadd.f32 %v3021, %v3069
        %v3071 = vpop.f32.mrf.mxu0
        %v3072 = vadd.f32 %v3023, %v3071
        %3073 = vmatmul.bf16.gmra.mxu0 %v2273
        %v3074 = vpop.f32.mrf.mxu0
        %v3075 = vadd.f32 %v3026, %v3074
        %v3076 = vpop.f32.mrf.mxu0
        %v3077 = vadd.f32 %v3028, %v3076
        %3078 = vmatmul.bf16.gmra.mxu0 %v2282
        %v3079 = vpop.f32.mrf.mxu0
        %v3080 = vadd.f32 %v3031, %v3079
        %v3081 = vpop.f32.mrf.mxu0
        %v3082 = vadd.f32 %v3033, %v3081
        %3083 = vdwg.mxu0
        %3084 = vmatpush.bf16.msra.mxu0 %v2701
        %3085 = vmatpush.bf16.msra.mxu0 %v2700
        %3086 = vmatpush.bf16.msra.mxu0 %v2699
        %3087 = vmatpush.bf16.msra.mxu0 %v2698
        %3088 = vmatpush.bf16.msra.mxu0 %v2697
        %3089 = vmatpush.bf16.msra.mxu0 %v2696
        %3090 = vmatpush.bf16.msra.mxu0 %v2695
        %3091 = vmatpush.bf16.msra.mxu0 %v2694
        %3092 = vmatmul.bf16.gmra.mxu0 %v2220
        %v3093 = vpop.f32.mrf.mxu0
        %v3094 = vadd.f32 %v3045, %v3093
        %v3095 = vpop.f32.mrf.mxu0
        %v3096 = vadd.f32 %v3047, %v3095
        %3097 = vmatmul.bf16.gmra.mxu0 %v2229
        %v3098 = vpop.f32.mrf.mxu0
        %v3099 = vadd.f32 %v3050, %v3098
        %v3100 = vpop.f32.mrf.mxu0
        %v3101 = vadd.f32 %v3052, %v3100
        %3102 = vmatmul.bf16.gmra.mxu0 %v2238
        %v3103 = vpop.f32.mrf.mxu0
        %v3104 = vadd.f32 %v3055, %v3103
        %v3105 = vpop.f32.mrf.mxu0
        %v3106 = vadd.f32 %v3057, %v3105
        %3107 = vmatmul.bf16.gmra.mxu0 %v2247
        %v3108 = vpop.f32.mrf.mxu0
        %v3109 = vadd.f32 %v3060, %v3108
        %v3110 = vpop.f32.mrf.mxu0
        %v3111 = vadd.f32 %v3062, %v3110
        %3112 = vmatmul.bf16.gmra.mxu0 %v2256
        %v3113 = vpop.f32.mrf.mxu0
        %v3114 = vadd.f32 %v3065, %v3113
        %v3115 = vpop.f32.mrf.mxu0
        %v3116 = vadd.f32 %v3067, %v3115
        %3117 = vmatmul.bf16.gmra.mxu0 %v2265
        %v3118 = vpop.f32.mrf.mxu0
        %v3119 = vadd.f32 %v3070, %v3118
        %v3120 = vpop.f32.mrf.mxu0
        %v3121 = vadd.f32 %v3072, %v3120
        %3122 = vmatmul.bf16.gmra.mxu0 %v2274
        %v3123 = vpop.f32.mrf.mxu0
        %v3124 = vadd.f32 %v3075, %v3123
        %v3125 = vpop.f32.mrf.mxu0
        %v3126 = vadd.f32 %v3077, %v3125
        %3127 = vmatmul.bf16.gmra.mxu0 %v2283
        %v3128 = vpop.f32.mrf.mxu0
        %v3129 = vadd.f32 %v3080, %v3128
        %v3130 = vpop.f32.mrf.mxu0
        %v3131 = vadd.f32 %v3082, %v3130
        %3132 = vdwg.mxu0
        %3133 = vmatpush.bf16.msra.mxu0 %v2709
        %3134 = vmatpush.bf16.msra.mxu0 %v2708
        %3135 = vmatpush.bf16.msra.mxu0 %v2707
        %3136 = vmatpush.bf16.msra.mxu0 %v2706
        %3137 = vmatpush.bf16.msra.mxu0 %v2705
        %3138 = vmatpush.bf16.msra.mxu0 %v2704
        %3139 = vmatpush.bf16.msra.mxu0 %v2703
        %3140 = vmatpush.bf16.msra.mxu0 %v2702
        %3141 = vmatmul.bf16.gmra.mxu0 %v2221
        %v3142 = vpop.f32.mrf.mxu0
        %v3143 = vadd.f32 %v3094, %v3142
        %v3144 = vpop.f32.mrf.mxu0
        %v3145 = vadd.f32 %v3096, %v3144
        %3146 = vmatmul.bf16.gmra.mxu0 %v2230
        %v3147 = vpop.f32.mrf.mxu0
        %v3148 = vadd.f32 %v3099, %v3147
        %v3149 = vpop.f32.mrf.mxu0
        %v3150 = vadd.f32 %v3101, %v3149
        %3151 = vmatmul.bf16.gmra.mxu0 %v2239
        %v3152 = vpop.f32.mrf.mxu0
        %v3153 = vadd.f32 %v3104, %v3152
        %v3154 = vpop.f32.mrf.mxu0
        %v3155 = vadd.f32 %v3106, %v3154
        %3156 = vmatmul.bf16.gmra.mxu0 %v2248
        %v3157 = vpop.f32.mrf.mxu0
        %v3158 = vadd.f32 %v3109, %v3157
        %v3159 = vpop.f32.mrf.mxu0
        %v3160 = vadd.f32 %v3111, %v3159
        %3161 = vmatmul.bf16.gmra.mxu0 %v2257
        %v3162 = vpop.f32.mrf.mxu0
        %v3163 = vadd.f32 %v3114, %v3162
        %v3164 = vpop.f32.mrf.mxu0
        %v3165 = vadd.f32 %v3116, %v3164
        %3166 = vmatmul.bf16.gmra.mxu0 %v2266
        %v3167 = vpop.f32.mrf.mxu0
        %v3168 = vadd.f32 %v3119, %v3167
        %v3169 = vpop.f32.mrf.mxu0
        %v3170 = vadd.f32 %v3121, %v3169
        %3171 = vmatmul.bf16.gmra.mxu0 %v2275
        %v3172 = vpop.f32.mrf.mxu0
        %v3173 = vadd.f32 %v3124, %v3172
        %v3174 = vpop.f32.mrf.mxu0
        %v3175 = vadd.f32 %v3126, %v3174
        %3176 = vmatmul.bf16.gmra.mxu0 %v2284
        %v3177 = vpop.f32.mrf.mxu0
        %v3178 = vadd.f32 %v3129, %v3177
        %v3179 = vpop.f32.mrf.mxu0
        %v3180 = vadd.f32 %v3131, %v3179
        %3181 = vdwg.mxu0
        %3182 = vmatpush.bf16.msra.mxu0 %v2717
        %3183 = vmatpush.bf16.msra.mxu0 %v2716
        %3184 = vmatpush.bf16.msra.mxu0 %v2715
        %3185 = vmatpush.bf16.msra.mxu0 %v2714
        %3186 = vmatpush.bf16.msra.mxu0 %v2713
        %3187 = vmatpush.bf16.msra.mxu0 %v2712
        %3188 = vmatpush.bf16.msra.mxu0 %v2711
        %3189 = vmatpush.bf16.msra.mxu0 %v2710
        %3190 = vmatmul.bf16.gmra.mxu0 %v2222
        %v3191 = vpop.f32.mrf.mxu0
        %v3192 = vadd.f32 %v3143, %v3191
        %v3193 = vpop.f32.mrf.mxu0
        %v3194 = vadd.f32 %v3145, %v3193
        %3195 = vmatmul.bf16.gmra.mxu0 %v2231
        %v3196 = vpop.f32.mrf.mxu0
        %v3197 = vadd.f32 %v3148, %v3196
        %v3198 = vpop.f32.mrf.mxu0
        %v3199 = vadd.f32 %v3150, %v3198
        %3200 = vmatmul.bf16.gmra.mxu0 %v2240
        %v3201 = vpop.f32.mrf.mxu0
        %v3202 = vadd.f32 %v3153, %v3201
        %v3203 = vpop.f32.mrf.mxu0
        %v3204 = vadd.f32 %v3155, %v3203
        %3205 = vmatmul.bf16.gmra.mxu0 %v2249
        %v3206 = vpop.f32.mrf.mxu0
        %v3207 = vadd.f32 %v3158, %v3206
        %v3208 = vpop.f32.mrf.mxu0
        %v3209 = vadd.f32 %v3160, %v3208
        %3210 = vmatmul.bf16.gmra.mxu0 %v2258
        %v3211 = vpop.f32.mrf.mxu0
        %v3212 = vadd.f32 %v3163, %v3211
        %v3213 = vpop.f32.mrf.mxu0
        %v3214 = vadd.f32 %v3165, %v3213
        %3215 = vmatmul.bf16.gmra.mxu0 %v2267
        %v3216 = vpop.f32.mrf.mxu0
        %v3217 = vadd.f32 %v3168, %v3216
        %v3218 = vpop.f32.mrf.mxu0
        %v3219 = vadd.f32 %v3170, %v3218
        %3220 = vmatmul.bf16.gmra.mxu0 %v2276
        %v3221 = vpop.f32.mrf.mxu0
        %v3222 = vadd.f32 %v3173, %v3221
        %v3223 = vpop.f32.mrf.mxu0
        %v3224 = vadd.f32 %v3175, %v3223
        %3225 = vmatmul.bf16.gmra.mxu0 %v2285
        %v3226 = vpop.f32.mrf.mxu0
        %v3227 = vadd.f32 %v3178, %v3226
        %v3228 = vpop.f32.mrf.mxu0
        %v3229 = vadd.f32 %v3180, %v3228
        %3230 = vdwg.mxu0
        %v3231 = vadd.f32 %v1750, %v3192
        %v3232 = vadd.f32 %v1751, %v3194
        %v3233 = vadd.f32 %v1752, %v3197
        %v3234 = vadd.f32 %v1753, %v3199
        %v3235 = vadd.f32 %v1754, %v3202
        %v3236 = vadd.f32 %v1755, %v3204
        %v3237 = vadd.f32 %v1756, %v3207
        %v3238 = vadd.f32 %v1757, %v3209
        %v3239 = vadd.f32 %v1758, %v3212
        %v3240 = vadd.f32 %v1759, %v3214
        %v3241 = vadd.f32 %v1760, %v3217
        %v3242 = vadd.f32 %v1761, %v3219
        %v3243 = vadd.f32 %v1762, %v3222
        %v3244 = vadd.f32 %v1763, %v3224
        %v3245 = vadd.f32 %v1764, %v3227
        %v3246 = vadd.f32 %v1765, %v3229
        %v3247 = vpack.c.bf16 %v3232, %v3231
        %v3248 = vpack.c.bf16 %v3234, %v3233
        %v3249 = vpack.c.bf16 %v3236, %v3235
        %v3250 = vpack.c.bf16 %v3238, %v3237
        %v3251 = vpack.c.bf16 %v3240, %v3239
        %v3252 = vpack.c.bf16 %v3242, %v3241
        %v3253 = vpack.c.bf16 %v3244, %v3243
        %v3254 = vpack.c.bf16 %v3246, %v3245
        %v3255 = vld [vmem:[#allocation15] sm:$0xf]
        %v3256 = vld [vmem:[#allocation15 + $0x4] sm:$0xf]
        %v3257 = vld [vmem:[#allocation15 + $0x8] sm:$0xf]
        %v3258 = vld [vmem:[#allocation15 + $0xc] sm:$0xf]
        %v3259 = vld [vmem:[#allocation15 + $0x10] sm:$0xf]
        %v3260 = vld [vmem:[#allocation15 + $0x14] sm:$0xf]
        %v3261 = vld [vmem:[#allocation15 + $0x18] sm:$0xf]
        %v3262 = vld [vmem:[#allocation15 + $0x1c] sm:$0xf]
        %v3263 = vld [vmem:[#allocation15 + $0x20] sm:$0xf]
        %v3264 = vld [vmem:[#allocation15 + $0x24] sm:$0xf]
        %v3265 = vld [vmem:[#allocation15 + $0x28] sm:$0xf]
        %v3266 = vld [vmem:[#allocation15 + $0x2c] sm:$0xf]
        %v3267 = vld [vmem:[#allocation15 + $0x30] sm:$0xf]
        %v3268 = vld [vmem:[#allocation15 + $0x34] sm:$0xf]
        %v3269 = vld [vmem:[#allocation15 + $0x38] sm:$0xf]
        %v3270 = vld [vmem:[#allocation15 + $0x3c] sm:$0xf]
        %v3271 = vld [vmem:[%s8] sm:$0x1]
        %v3273 = vperm.slane %v3271, 0
        %v3291 = vunpack.c.l.b16 %v3255
        %v3292 = vunpack.c.l.b16 %v3256
        %v3293 = vunpack.c.l.b16 %v3257
        %v3294 = vunpack.c.l.b16 %v3258
        %v3295 = vunpack.c.l.b16 %v3259
        %v3296 = vunpack.c.l.b16 %v3260
        %v3297 = vunpack.c.l.b16 %v3261
        %v3298 = vunpack.c.l.b16 %v3262
        %v3299 = vunpack.c.l.b16 %v3263
        %v3300 = vunpack.c.l.b16 %v3264
        %v3301 = vunpack.c.l.b16 %v3265
        %v3302 = vunpack.c.l.b16 %v3266
        %v3303 = vunpack.c.l.b16 %v3267
        %v3304 = vunpack.c.l.b16 %v3268
        %v3305 = vunpack.c.l.b16 %v3269
        %v3306 = vunpack.c.l.b16 %v3270
        %v3307 = vpack.c.b16 %v3292, %v3291
        %v3308 = vpack.c.b16 %v3294, %v3293
        %v3309 = vpack.c.b16 %v3296, %v3295
        %v3310 = vpack.c.b16 %v3298, %v3297
        %v3311 = vpack.c.b16 %v3300, %v3299
        %v3312 = vpack.c.b16 %v3302, %v3301
        %v3313 = vpack.c.b16 %v3304, %v3303
        %v3314 = vpack.c.b16 %v3306, %v3305
        %3323 = vmatpush.bf16.msra.mxu0 %v3314
        %3324 = vmatpush.bf16.msra.mxu0 %v3313
        %3325 = vmatpush.bf16.msra.mxu0 %v3312
        %3326 = vmatpush.bf16.msra.mxu0 %v3311
        %3327 = vmatpush.bf16.msra.mxu0 %v3310
        %3328 = vmatpush.bf16.msra.mxu0 %v3309
        %3329 = vmatpush.bf16.msra.mxu0 %v3308
        %3330 = vmatpush.bf16.msra.mxu0 %v3307
        %3331 = vmatmul.bf16.gmra.mxu0 %v3247
        %v3332 = vpop.f32.mrf.mxu0
        %v3333 = vadd.f32 %v3273, %v3332
        %v3334 = vpop.f32.mrf.mxu0
        %v3335 = vadd.f32 %v3273, %v3334
        %3336 = vmatmul.bf16.gmra.mxu0 %v3248
        %v3337 = vpop.f32.mrf.mxu0
        %v3338 = vadd.f32 %v3273, %v3337
        %v3339 = vpop.f32.mrf.mxu0
        %v3340 = vadd.f32 %v3273, %v3339
        %3341 = vmatmul.bf16.gmra.mxu0 %v3249
        %v3342 = vpop.f32.mrf.mxu0
        %v3343 = vadd.f32 %v3273, %v3342
        %v3344 = vpop.f32.mrf.mxu0
        %v3345 = vadd.f32 %v3273, %v3344
        %3346 = vmatmul.bf16.gmra.mxu0 %v3250
        %v3347 = vpop.f32.mrf.mxu0
        %v3348 = vadd.f32 %v3273, %v3347
        %v3349 = vpop.f32.mrf.mxu0
        %v3350 = vadd.f32 %v3273, %v3349
        %3351 = vmatmul.bf16.gmra.mxu0 %v3251
        %v3352 = vpop.f32.mrf.mxu0
        %v3353 = vadd.f32 %v3273, %v3352
        %v3354 = vpop.f32.mrf.mxu0
        %v3355 = vadd.f32 %v3273, %v3354
        %3356 = vmatmul.bf16.gmra.mxu0 %v3252
        %v3357 = vpop.f32.mrf.mxu0
        %v3358 = vadd.f32 %v3273, %v3357
        %v3359 = vpop.f32.mrf.mxu0
        %v3360 = vadd.f32 %v3273, %v3359
        %3361 = vmatmul.bf16.gmra.mxu0 %v3253
        %v3362 = vpop.f32.mrf.mxu0
        %v3363 = vadd.f32 %v3273, %v3362
        %v3364 = vpop.f32.mrf.mxu0
        %v3365 = vadd.f32 %v3273, %v3364
        %3366 = vmatmul.bf16.gmra.mxu0 %v3254
        %v3367 = vpop.f32.mrf.mxu0
        %v3368 = vadd.f32 %v3273, %v3367
        %v3369 = vpop.f32.mrf.mxu0
        %v3370 = vadd.f32 %v3273, %v3369
        %3371 = vdwg.mxu0
        %v3372 = vmul.f32 %v3333, 0.5
        %v3373 = vmul.f32 %v3335, 0.5
        %v3374 = vmul.f32 %v3338, 0.5
        %v3375 = vmul.f32 %v3340, 0.5
        %v3376 = vmul.f32 %v3343, 0.5
        %v3377 = vmul.f32 %v3345, 0.5
        %v3378 = vmul.f32 %v3348, 0.5
        %v3379 = vmul.f32 %v3350, 0.5
        %v3380 = vmul.f32 %v3353, 0.5
        %v3381 = vmul.f32 %v3355, 0.5
        %v3382 = vmul.f32 %v3358, 0.5
        %v3383 = vmul.f32 %v3360, 0.5
        %v3384 = vmul.f32 %v3363, 0.5
        %v3385 = vmul.f32 %v3365, 0.5
        %v3386 = vmul.f32 %v3368, 0.5
        %v3387 = vmul.f32 %v3370, 0.5
        %v3388 = vmul.f32 %v3333, 0.70710677
        %v3389 = vmul.f32 %v3335, 0.70710677
        %v3390 = vmul.f32 %v3338, 0.70710677
        %v3391 = vmul.f32 %v3340, 0.70710677
        %v3392 = vmul.f32 %v3343, 0.70710677
        %v3393 = vmul.f32 %v3345, 0.70710677
        %v3394 = vmul.f32 %v3348, 0.70710677
        %v3395 = vmul.f32 %v3350, 0.70710677
        %v3396 = vmul.f32 %v3353, 0.70710677
        %v3397 = vmul.f32 %v3355, 0.70710677
        %v3398 = vmul.f32 %v3358, 0.70710677
        %v3399 = vmul.f32 %v3360, 0.70710677
        %v3400 = vmul.f32 %v3363, 0.70710677
        %v3401 = vmul.f32 %v3365, 0.70710677
        %v3402 = vmul.f32 %v3368, 0.70710677
        %v3403 = vmul.f32 %v3370, 0.70710677
        %vm3404 = vcmp.ge.f32.partialorder %v3388, 0.0
        %vm3405 = vcmp.ge.f32.partialorder %v3389, 0.0
        %vm3406 = vcmp.ge.f32.partialorder %v3390, 0.0
        %vm3407 = vcmp.ge.f32.partialorder %v3391, 0.0
        %vm3408 = vcmp.ge.f32.partialorder %v3392, 0.0
        %vm3409 = vcmp.ge.f32.partialorder %v3393, 0.0
        %vm3410 = vcmp.ge.f32.partialorder %v3394, 0.0
        %vm3411 = vcmp.ge.f32.partialorder %v3395, 0.0
        %vm3412 = vcmp.ge.f32.partialorder %v3396, 0.0
        %vm3413 = vcmp.ge.f32.partialorder %v3397, 0.0
        %vm3414 = vcmp.ge.f32.partialorder %v3398, 0.0
        %vm3415 = vcmp.ge.f32.partialorder %v3399, 0.0
        %vm3416 = vcmp.ge.f32.partialorder %v3400, 0.0
        %vm3417 = vcmp.ge.f32.partialorder %v3401, 0.0
        %vm3418 = vcmp.ge.f32.partialorder %v3402, 0.0
        %vm3419 = vcmp.ge.f32.partialorder %v3403, 0.0
        %v3420 = vsel %vm3404, 1.0, -1.0
        %v3421 = vsel %vm3405, 1.0, -1.0
        %v3422 = vsel %vm3406, 1.0, -1.0
        %v3423 = vsel %vm3407, 1.0, -1.0
        %v3424 = vsel %vm3408, 1.0, -1.0
        %v3425 = vsel %vm3409, 1.0, -1.0
        %v3426 = vsel %vm3410, 1.0, -1.0
        %v3427 = vsel %vm3411, 1.0, -1.0
        %v3428 = vsel %vm3412, 1.0, -1.0
        %v3429 = vsel %vm3413, 1.0, -1.0
        %v3430 = vsel %vm3414, 1.0, -1.0
        %v3431 = vsel %vm3415, 1.0, -1.0
        %v3432 = vsel %vm3416, 1.0, -1.0
        %v3433 = vsel %vm3417, 1.0, -1.0
        %v3434 = vsel %vm3418, 1.0, -1.0
        %v3435 = vsel %vm3419, 1.0, -1.0
        %v3436 = vand.u32 2147483647, %v3388
        %v3437 = vand.u32 2147483647, %v3389
        %v3438 = vand.u32 2147483647, %v3390
        %v3439 = vand.u32 2147483647, %v3391
        %v3440 = vand.u32 2147483647, %v3392
        %v3441 = vand.u32 2147483647, %v3393
        %v3442 = vand.u32 2147483647, %v3394
        %v3443 = vand.u32 2147483647, %v3395
        %v3444 = vand.u32 2147483647, %v3396
        %v3445 = vand.u32 2147483647, %v3397
        %v3446 = vand.u32 2147483647, %v3398
        %v3447 = vand.u32 2147483647, %v3399
        %v3448 = vand.u32 2147483647, %v3400
        %v3449 = vand.u32 2147483647, %v3401
        %v3450 = vand.u32 2147483647, %v3402
        %v3451 = vand.u32 2147483647, %v3403
        %v3452 = vmul.f32 %v3436, 0.3275911
        %v3453 = vmul.f32 %v3437, 0.3275911
        %v3454 = vmul.f32 %v3438, 0.3275911
        %v3455 = vmul.f32 %v3439, 0.3275911
        %v3456 = vmul.f32 %v3440, 0.3275911
        %v3457 = vmul.f32 %v3441, 0.3275911
        %v3458 = vmul.f32 %v3442, 0.3275911
        %v3459 = vmul.f32 %v3443, 0.3275911
        %v3460 = vmul.f32 %v3444, 0.3275911
        %v3461 = vmul.f32 %v3445, 0.3275911
        %v3462 = vmul.f32 %v3446, 0.3275911
        %v3463 = vmul.f32 %v3447, 0.3275911
        %v3464 = vmul.f32 %v3448, 0.3275911
        %v3465 = vmul.f32 %v3449, 0.3275911
        %v3466 = vmul.f32 %v3450, 0.3275911
        %v3467 = vmul.f32 %v3451, 0.3275911
        %v3468 = vadd.f32 %v3452, 1.0
        %v3469 = vadd.f32 %v3453, 1.0
        %v3470 = vadd.f32 %v3454, 1.0
        %v3471 = vadd.f32 %v3455, 1.0
        %v3472 = vadd.f32 %v3456, 1.0
        %v3473 = vadd.f32 %v3457, 1.0
        %v3474 = vadd.f32 %v3458, 1.0
        %v3475 = vadd.f32 %v3459, 1.0
        %v3476 = vadd.f32 %v3460, 1.0
        %v3477 = vadd.f32 %v3461, 1.0
        %v3478 = vadd.f32 %v3462, 1.0
        %v3479 = vadd.f32 %v3463, 1.0
        %v3480 = vadd.f32 %v3464, 1.0
        %v3481 = vadd.f32 %v3465, 1.0
        %v3482 = vadd.f32 %v3466, 1.0
        %v3483 = vadd.f32 %v3467, 1.0
        %v3484 = vrcp.pop %v3468
        %v3485 = vrcp.pop %v3469
        %v3486 = vrcp.pop %v3470
        %v3487 = vrcp.pop %v3471
        %v3488 = vrcp.pop %v3472
        %v3489 = vrcp.pop %v3473
        %v3490 = vrcp.pop %v3474
        %v3491 = vrcp.pop %v3475
        %v3492 = vrcp.pop %v3476
        %v3493 = vrcp.pop %v3477
        %v3494 = vrcp.pop %v3478
        %v3495 = vrcp.pop %v3479
        %v3496 = vrcp.pop %v3480
        %v3497 = vrcp.pop %v3481
        %v3498 = vrcp.pop %v3482
        %v3499 = vrcp.pop %v3483
        %v3500 = vmul.f32 %v3484, 1.0614054
        %v3501 = vmul.f32 %v3485, 1.0614054
        %v3502 = vmul.f32 %v3486, 1.0614054
        %v3503 = vmul.f32 %v3487, 1.0614054
        %v3504 = vmul.f32 %v3488, 1.0614054
        %v3505 = vmul.f32 %v3489, 1.0614054
        %v3506 = vmul.f32 %v3490, 1.0614054
        %v3507 = vmul.f32 %v3491, 1.0614054
        %v3508 = vmul.f32 %v3492, 1.0614054
        %v3509 = vmul.f32 %v3493, 1.0614054
        %v3510 = vmul.f32 %v3494, 1.0614054
        %v3511 = vmul.f32 %v3495, 1.0614054
        %v3512 = vmul.f32 %v3496, 1.0614054
        %v3513 = vmul.f32 %v3497, 1.0614054
        %v3514 = vmul.f32 %v3498, 1.0614054
        %v3515 = vmul.f32 %v3499, 1.0614054
        %v3516 = vadd.f32 %v3500, -1.4531521
        %v3517 = vadd.f32 %v3501, -1.4531521
        %v3518 = vadd.f32 %v3502, -1.4531521
        %v3519 = vadd.f32 %v3503, -1.4531521
        %v3520 = vadd.f32 %v3504, -1.4531521
        %v3521 = vadd.f32 %v3505, -1.4531521
        %v3522 = vadd.f32 %v3506, -1.4531521
        %v3523 = vadd.f32 %v3507, -1.4531521
        %v3524 = vadd.f32 %v3508, -1.4531521
        %v3525 = vadd.f32 %v3509, -1.4531521
        %v3526 = vadd.f32 %v3510, -1.4531521
        %v3527 = vadd.f32 %v3511, -1.4531521
        %v3528 = vadd.f32 %v3512, -1.4531521
        %v3529 = vadd.f32 %v3513, -1.4531521
        %v3530 = vadd.f32 %v3514, -1.4531521
        %v3531 = vadd.f32 %v3515, -1.4531521
        %v3532 = vmul.f32 %v3516, %v3484
        %v3533 = vmul.f32 %v3517, %v3485
        %v3534 = vmul.f32 %v3518, %v3486
        %v3535 = vmul.f32 %v3519, %v3487
        %v3536 = vmul.f32 %v3520, %v3488
        %v3537 = vmul.f32 %v3521, %v3489
        %v3538 = vmul.f32 %v3522, %v3490
        %v3539 = vmul.f32 %v3523, %v3491
        %v3540 = vmul.f32 %v3524, %v3492
        %v3541 = vmul.f32 %v3525, %v3493
        %v3542 = vmul.f32 %v3526, %v3494
        %v3543 = vmul.f32 %v3527, %v3495
        %v3544 = vmul.f32 %v3528, %v3496
        %v3545 = vmul.f32 %v3529, %v3497
        %v3546 = vmul.f32 %v3530, %v3498
        %v3547 = vmul.f32 %v3531, %v3499
        %v3548 = vadd.f32 %v3532, 1.4214138
        %v3549 = vadd.f32 %v3533, 1.4214138
        %v3550 = vadd.f32 %v3534, 1.4214138
        %v3551 = vadd.f32 %v3535, 1.4214138
        %v3552 = vadd.f32 %v3536, 1.4214138
        %v3553 = vadd.f32 %v3537, 1.4214138
        %v3554 = vadd.f32 %v3538, 1.4214138
        %v3555 = vadd.f32 %v3539, 1.4214138
        %v3556 = vadd.f32 %v3540, 1.4214138
        %v3557 = vadd.f32 %v3541, 1.4214138
        %v3558 = vadd.f32 %v3542, 1.4214138
        %v3559 = vadd.f32 %v3543, 1.4214138
        %v3560 = vadd.f32 %v3544, 1.4214138
        %v3561 = vadd.f32 %v3545, 1.4214138
        %v3562 = vadd.f32 %v3546, 1.4214138
        %v3563 = vadd.f32 %v3547, 1.4214138
        %v3564 = vmul.f32 %v3548, %v3484
        %v3565 = vmul.f32 %v3549, %v3485
        %v3566 = vmul.f32 %v3550, %v3486
        %v3567 = vmul.f32 %v3551, %v3487
        %v3568 = vmul.f32 %v3552, %v3488
        %v3569 = vmul.f32 %v3553, %v3489
        %v3570 = vmul.f32 %v3554, %v3490
        %v3571 = vmul.f32 %v3555, %v3491
        %v3572 = vmul.f32 %v3556, %v3492
        %v3573 = vmul.f32 %v3557, %v3493
        %v3574 = vmul.f32 %v3558, %v3494
        %v3575 = vmul.f32 %v3559, %v3495
        %v3576 = vmul.f32 %v3560, %v3496
        %v3577 = vmul.f32 %v3561, %v3497
        %v3578 = vmul.f32 %v3562, %v3498
        %v3579 = vmul.f32 %v3563, %v3499
        %v3580 = vadd.f32 %v3564, -0.28449672
        %v3581 = vadd.f32 %v3565, -0.28449672
        %v3582 = vadd.f32 %v3566, -0.28449672
        %v3583 = vadd.f32 %v3567, -0.28449672
        %v3584 = vadd.f32 %v3568, -0.28449672
        %v3585 = vadd.f32 %v3569, -0.28449672
        %v3586 = vadd.f32 %v3570, -0.28449672
        %v3587 = vadd.f32 %v3571, -0.28449672
        %v3588 = vadd.f32 %v3572, -0.28449672
        %v3589 = vadd.f32 %v3573, -0.28449672
        %v3590 = vadd.f32 %v3574, -0.28449672
        %v3591 = vadd.f32 %v3575, -0.28449672
        %v3592 = vadd.f32 %v3576, -0.28449672
        %v3593 = vadd.f32 %v3577, -0.28449672
        %v3594 = vadd.f32 %v3578, -0.28449672
        %v3595 = vadd.f32 %v3579, -0.28449672
        %v3596 = vmul.f32 %v3580, %v3484
        %v3597 = vmul.f32 %v3581, %v3485
        %v3598 = vmul.f32 %v3582, %v3486
        %v3599 = vmul.f32 %v3583, %v3487
        %v3600 = vmul.f32 %v3584, %v3488
        %v3601 = vmul.f32 %v3585, %v3489
        %v3602 = vmul.f32 %v3586, %v3490
        %v3603 = vmul.f32 %v3587, %v3491
        %v3604 = vmul.f32 %v3588, %v3492
        %v3605 = vmul.f32 %v3589, %v3493
        %v3606 = vmul.f32 %v3590, %v3494
        %v3607 = vmul.f32 %v3591, %v3495
        %v3608 = vmul.f32 %v3592, %v3496
        %v3609 = vmul.f32 %v3593, %v3497
        %v3610 = vmul.f32 %v3594, %v3498
        %v3611 = vmul.f32 %v3595, %v3499
        %v3612 = vadd.f32 %v3596, 0.2548296
        %v3613 = vadd.f32 %v3597, 0.2548296
        %v3614 = vadd.f32 %v3598, 0.2548296
        %v3615 = vadd.f32 %v3599, 0.2548296
        %v3616 = vadd.f32 %v3600, 0.2548296
        %v3617 = vadd.f32 %v3601, 0.2548296
        %v3618 = vadd.f32 %v3602, 0.2548296
        %v3619 = vadd.f32 %v3603, 0.2548296
        %v3620 = vadd.f32 %v3604, 0.2548296
        %v3621 = vadd.f32 %v3605, 0.2548296
        %v3622 = vadd.f32 %v3606, 0.2548296
        %v3623 = vadd.f32 %v3607, 0.2548296
        %v3624 = vadd.f32 %v3608, 0.2548296
        %v3625 = vadd.f32 %v3609, 0.2548296
        %v3626 = vadd.f32 %v3610, 0.2548296
        %v3627 = vadd.f32 %v3611, 0.2548296
        %v3628 = vmul.f32 %v3612, %v3484
        %v3629 = vmul.f32 %v3613, %v3485
        %v3630 = vmul.f32 %v3614, %v3486
        %v3631 = vmul.f32 %v3615, %v3487
        %v3632 = vmul.f32 %v3616, %v3488
        %v3633 = vmul.f32 %v3617, %v3489
        %v3634 = vmul.f32 %v3618, %v3490
        %v3635 = vmul.f32 %v3619, %v3491
        %v3636 = vmul.f32 %v3620, %v3492
        %v3637 = vmul.f32 %v3621, %v3493
        %v3638 = vmul.f32 %v3622, %v3494
        %v3639 = vmul.f32 %v3623, %v3495
        %v3640 = vmul.f32 %v3624, %v3496
        %v3641 = vmul.f32 %v3625, %v3497
        %v3642 = vmul.f32 %v3626, %v3498
        %v3643 = vmul.f32 %v3627, %v3499
        %v3644 = vsub.f32 0.0, %v3436
        %v3645 = vsub.f32 0.0, %v3437
        %v3646 = vsub.f32 0.0, %v3438
        %v3647 = vsub.f32 0.0, %v3439
        %v3648 = vsub.f32 0.0, %v3440
        %v3649 = vsub.f32 0.0, %v3441
        %v3650 = vsub.f32 0.0, %v3442
        %v3651 = vsub.f32 0.0, %v3443
        %v3652 = vsub.f32 0.0, %v3444
        %v3653 = vsub.f32 0.0, %v3445
        %v3654 = vsub.f32 0.0, %v3446
        %v3655 = vsub.f32 0.0, %v3447
        %v3656 = vsub.f32 0.0, %v3448
        %v3657 = vsub.f32 0.0, %v3449
        %v3658 = vsub.f32 0.0, %v3450
        %v3659 = vsub.f32 0.0, %v3451
        %v3660 = vmul.f32 %v3644, %v3436
        %v3661 = vmul.f32 %v3645, %v3437
        %v3662 = vmul.f32 %v3646, %v3438
        %v3663 = vmul.f32 %v3647, %v3439
        %v3664 = vmul.f32 %v3648, %v3440
        %v3665 = vmul.f32 %v3649, %v3441
        %v3666 = vmul.f32 %v3650, %v3442
        %v3667 = vmul.f32 %v3651, %v3443
        %v3668 = vmul.f32 %v3652, %v3444
        %v3669 = vmul.f32 %v3653, %v3445
        %v3670 = vmul.f32 %v3654, %v3446
        %v3671 = vmul.f32 %v3655, %v3447
        %v3672 = vmul.f32 %v3656, %v3448
        %v3673 = vmul.f32 %v3657, %v3449
        %v3674 = vmul.f32 %v3658, %v3450
        %v3675 = vmul.f32 %v3659, %v3451
        %v3676 = vmul.f32 %v3660, 1.442695
        %v3677 = vpow.pop %v3676
        %v3678 = vmul.f32 %v3661, 1.442695
        %v3679 = vpow.pop %v3678
        %v3680 = vmul.f32 %v3662, 1.442695
        %v3681 = vpow.pop %v3680
        %v3682 = vmul.f32 %v3663, 1.442695
        %v3683 = vpow.pop %v3682
        %v3684 = vmul.f32 %v3664, 1.442695
        %v3685 = vpow.pop %v3684
        %v3686 = vmul.f32 %v3665, 1.442695
        %v3687 = vpow.pop %v3686
        %v3688 = vmul.f32 %v3666, 1.442695
        %v3689 = vpow.pop %v3688
        %v3690 = vmul.f32 %v3667, 1.442695
        %v3691 = vpow.pop %v3690
        %v3692 = vmul.f32 %v3668, 1.442695
        %v3693 = vpow.pop %v3692
        %v3694 = vmul.f32 %v3669, 1.442695
        %v3695 = vpow.pop %v3694
        %v3696 = vmul.f32 %v3670, 1.442695
        %v3697 = vpow.pop %v3696
        %v3698 = vmul.f32 %v3671, 1.442695
        %v3699 = vpow.pop %v3698
        %v3700 = vmul.f32 %v3672, 1.442695
        %v3701 = vpow.pop %v3700
        %v3702 = vmul.f32 %v3673, 1.442695
        %v3703 = vpow.pop %v3702
        %v3704 = vmul.f32 %v3674, 1.442695
        %v3705 = vpow.pop %v3704
        %v3706 = vmul.f32 %v3675, 1.442695
        %v3707 = vpow.pop %v3706
        %v3708 = vmul.f32 %v3628, %v3677
        %v3709 = vmul.f32 %v3629, %v3679
        %v3710 = vmul.f32 %v3630, %v3681
        %v3711 = vmul.f32 %v3631, %v3683
        %v3712 = vmul.f32 %v3632, %v3685
        %v3713 = vmul.f32 %v3633, %v3687
        %v3714 = vmul.f32 %v3634, %v3689
        %v3715 = vmul.f32 %v3635, %v3691
        %v3716 = vmul.f32 %v3636, %v3693
        %v3717 = vmul.f32 %v3637, %v3695
        %v3718 = vmul.f32 %v3638, %v3697
        %v3719 = vmul.f32 %v3639, %v3699
        %v3720 = vmul.f32 %v3640, %v3701
        %v3721 = vmul.f32 %v3641, %v3703
        %v3722 = vmul.f32 %v3642, %v3705
        %v3723 = vmul.f32 %v3643, %v3707
        %v3724 = vsub.f32 1.0, %v3708
        %v3725 = vsub.f32 1.0, %v3709
        %v3726 = vsub.f32 1.0, %v3710
        %v3727 = vsub.f32 1.0, %v3711
        %v3728 = vsub.f32 1.0, %v3712
        %v3729 = vsub.f32 1.0, %v3713
        %v3730 = vsub.f32 1.0, %v3714
        %v3731 = vsub.f32 1.0, %v3715
        %v3732 = vsub.f32 1.0, %v3716
        %v3733 = vsub.f32 1.0, %v3717
        %v3734 = vsub.f32 1.0, %v3718
        %v3735 = vsub.f32 1.0, %v3719
        %v3736 = vsub.f32 1.0, %v3720
        %v3737 = vsub.f32 1.0, %v3721
        %v3738 = vsub.f32 1.0, %v3722
        %v3739 = vsub.f32 1.0, %v3723
        %v3740 = vmul.f32 %v3420, %v3724
        %v3741 = vmul.f32 %v3421, %v3725
        %v3742 = vmul.f32 %v3422, %v3726
        %v3743 = vmul.f32 %v3423, %v3727
        %v3744 = vmul.f32 %v3424, %v3728
        %v3745 = vmul.f32 %v3425, %v3729
        %v3746 = vmul.f32 %v3426, %v3730
        %v3747 = vmul.f32 %v3427, %v3731
        %v3748 = vmul.f32 %v3428, %v3732
        %v3749 = vmul.f32 %v3429, %v3733
        %v3750 = vmul.f32 %v3430, %v3734
        %v3751 = vmul.f32 %v3431, %v3735
        %v3752 = vmul.f32 %v3432, %v3736
        %v3753 = vmul.f32 %v3433, %v3737
        %v3754 = vmul.f32 %v3434, %v3738
        %v3755 = vmul.f32 %v3435, %v3739
        %v3756 = vadd.f32 %v3740, 1.0
        %v3757 = vadd.f32 %v3741, 1.0
        %v3758 = vadd.f32 %v3742, 1.0
        %v3759 = vadd.f32 %v3743, 1.0
        %v3760 = vadd.f32 %v3744, 1.0
        %v3761 = vadd.f32 %v3745, 1.0
        %v3762 = vadd.f32 %v3746, 1.0
        %v3763 = vadd.f32 %v3747, 1.0
        %v3764 = vadd.f32 %v3748, 1.0
        %v3765 = vadd.f32 %v3749, 1.0
        %v3766 = vadd.f32 %v3750, 1.0
        %v3767 = vadd.f32 %v3751, 1.0
        %v3768 = vadd.f32 %v3752, 1.0
        %v3769 = vadd.f32 %v3753, 1.0
        %v3770 = vadd.f32 %v3754, 1.0
        %v3771 = vadd.f32 %v3755, 1.0
        %v3772 = vmul.f32 %v3372, %v3756
        %v3773 = vmul.f32 %v3373, %v3757
        %v3774 = vmul.f32 %v3374, %v3758
        %v3775 = vmul.f32 %v3375, %v3759
        %v3776 = vmul.f32 %v3376, %v3760
        %v3777 = vmul.f32 %v3377, %v3761
        %v3778 = vmul.f32 %v3378, %v3762
        %v3779 = vmul.f32 %v3379, %v3763
        %v3780 = vmul.f32 %v3380, %v3764
        %v3781 = vmul.f32 %v3381, %v3765
        %v3782 = vmul.f32 %v3382, %v3766
        %v3783 = vmul.f32 %v3383, %v3767
        %v3784 = vmul.f32 %v3384, %v3768
        %v3785 = vmul.f32 %v3385, %v3769
        %v3786 = vmul.f32 %v3386, %v3770
        %v3787 = vmul.f32 %v3387, %v3771
        %3788 = vadd.xlane.f32.xlu0 %v3772
        %v3789 = vpop.xlane.xlu0 %3788
        %3790 = vadd.xlane.f32.xlu0 %v3773
        %v3791 = vpop.xlane.xlu0 %3790
        %3792 = vadd.xlane.f32.xlu0 %v3774
        %v3793 = vpop.xlane.xlu0 %3792
        %3794 = vadd.xlane.f32.xlu0 %v3775
        %v3795 = vpop.xlane.xlu0 %3794
        %3796 = vadd.xlane.f32.xlu0 %v3776
        %v3797 = vpop.xlane.xlu0 %3796
        %3798 = vadd.xlane.f32.xlu0 %v3777
        %v3799 = vpop.xlane.xlu0 %3798
        %3800 = vadd.xlane.f32.xlu0 %v3778
        %v3801 = vpop.xlane.xlu0 %3800
        %3802 = vadd.xlane.f32.xlu0 %v3779
        %v3803 = vpop.xlane.xlu0 %3802
        %3804 = vadd.xlane.f32.xlu0 %v3780
        %v3805 = vpop.xlane.xlu0 %3804
        %3806 = vadd.xlane.f32.xlu0 %v3781
        %v3807 = vpop.xlane.xlu0 %3806
        %3808 = vadd.xlane.f32.xlu0 %v3782
        %v3809 = vpop.xlane.xlu0 %3808
        %3810 = vadd.xlane.f32.xlu0 %v3783
        %v3811 = vpop.xlane.xlu0 %3810
        %3812 = vadd.xlane.f32.xlu0 %v3784
        %v3813 = vpop.xlane.xlu0 %3812
        %3814 = vadd.xlane.f32.xlu0 %v3785
        %v3815 = vpop.xlane.xlu0 %3814
        %3816 = vadd.xlane.f32.xlu0 %v3786
        %v3817 = vpop.xlane.xlu0 %3816
        %3818 = vadd.xlane.f32.xlu0 %v3787
        %v3819 = vpop.xlane.xlu0 %3818
        %v3820 = vrcp.pop 128.0
        %v3821 = vmul.f32 128.0, %v3820
        %v3822 = vsub.f32 1.0, %v3821
        %v3823 = vmul.f32 %v3820, %v3822
        %v3824 = vadd.f32 %v3820, %v3823
        %vm3825 = vweird.f32 %v3820
        %v3826 = vsel %vm3825, %v3820, %v3824
        %v3827 = vmul.f32 %v3789, %v3826
        %v3828 = vmul.f32 %v3791, %v3826
        %v3829 = vmul.f32 %v3793, %v3826
        %v3830 = vmul.f32 %v3795, %v3826
        %v3831 = vmul.f32 %v3797, %v3826
        %v3832 = vmul.f32 %v3799, %v3826
        %v3833 = vmul.f32 %v3801, %v3826
        %v3834 = vmul.f32 %v3803, %v3826
        %v3835 = vmul.f32 %v3805, %v3826
        %v3836 = vmul.f32 %v3807, %v3826
        %v3837 = vmul.f32 %v3809, %v3826
        %v3838 = vmul.f32 %v3811, %v3826
        %v3839 = vmul.f32 %v3813, %v3826
        %v3840 = vmul.f32 %v3815, %v3826
        %v3841 = vmul.f32 %v3817, %v3826
        %v3842 = vmul.f32 %v3819, %v3826
        %v3843 = vsub.f32 %v3772, %v3827
        %v3844 = vsub.f32 %v3773, %v3828
        %v3845 = vsub.f32 %v3774, %v3829
        %v3846 = vsub.f32 %v3775, %v3830
        %v3847 = vsub.f32 %v3776, %v3831
        %v3848 = vsub.f32 %v3777, %v3832
        %v3849 = vsub.f32 %v3778, %v3833
        %v3850 = vsub.f32 %v3779, %v3834
        %v3851 = vsub.f32 %v3780, %v3835
        %v3852 = vsub.f32 %v3781, %v3836
        %v3853 = vsub.f32 %v3782, %v3837
        %v3854 = vsub.f32 %v3783, %v3838
        %v3855 = vsub.f32 %v3784, %v3839
        %v3856 = vsub.f32 %v3785, %v3840
        %v3857 = vsub.f32 %v3786, %v3841
        %v3858 = vsub.f32 %v3787, %v3842
        %v3859 = vmul.f32 %v3843, %v3843
        %v3860 = vmul.f32 %v3844, %v3844
        %v3861 = vmul.f32 %v3845, %v3845
        %v3862 = vmul.f32 %v3846, %v3846
        %v3863 = vmul.f32 %v3847, %v3847
        %v3864 = vmul.f32 %v3848, %v3848
        %v3865 = vmul.f32 %v3849, %v3849
        %v3866 = vmul.f32 %v3850, %v3850
        %v3867 = vmul.f32 %v3851, %v3851
        %v3868 = vmul.f32 %v3852, %v3852
        %v3869 = vmul.f32 %v3853, %v3853
        %v3870 = vmul.f32 %v3854, %v3854
        %v3871 = vmul.f32 %v3855, %v3855
        %v3872 = vmul.f32 %v3856, %v3856
        %v3873 = vmul.f32 %v3857, %v3857
        %v3874 = vmul.f32 %v3858, %v3858
        %3875 = vadd.xlane.f32.xlu0 %v3859
        %v3876 = vpop.xlane.xlu0 %3875
        %3877 = vadd.xlane.f32.xlu0 %v3860
        %v3878 = vpop.xlane.xlu0 %3877
        %3879 = vadd.xlane.f32.xlu0 %v3861
        %v3880 = vpop.xlane.xlu0 %3879
        %3881 = vadd.xlane.f32.xlu0 %v3862
        %v3882 = vpop.xlane.xlu0 %3881
        %3883 = vadd.xlane.f32.xlu0 %v3863
        %v3884 = vpop.xlane.xlu0 %3883
        %3885 = vadd.xlane.f32.xlu0 %v3864
        %v3886 = vpop.xlane.xlu0 %3885
        %3887 = vadd.xlane.f32.xlu0 %v3865
        %v3888 = vpop.xlane.xlu0 %3887
        %3889 = vadd.xlane.f32.xlu0 %v3866
        %v3890 = vpop.xlane.xlu0 %3889
        %3891 = vadd.xlane.f32.xlu0 %v3867
        %v3892 = vpop.xlane.xlu0 %3891
        %3893 = vadd.xlane.f32.xlu0 %v3868
        %v3894 = vpop.xlane.xlu0 %3893
        %3895 = vadd.xlane.f32.xlu0 %v3869
        %v3896 = vpop.xlane.xlu0 %3895
        %3897 = vadd.xlane.f32.xlu0 %v3870
        %v3898 = vpop.xlane.xlu0 %3897
        %3899 = vadd.xlane.f32.xlu0 %v3871
        %v3900 = vpop.xlane.xlu0 %3899
        %3901 = vadd.xlane.f32.xlu0 %v3872
        %v3902 = vpop.xlane.xlu0 %3901
        %3903 = vadd.xlane.f32.xlu0 %v3873
        %v3904 = vpop.xlane.xlu0 %3903
        %3905 = vadd.xlane.f32.xlu0 %v3874
        %v3906 = vpop.xlane.xlu0 %3905
        %v3907 = vmul.f32 %v3876, %v3826
        %v3908 = vmul.f32 %v3878, %v3826
        %v3909 = vmul.f32 %v3880, %v3826
        %v3910 = vmul.f32 %v3882, %v3826
        %v3911 = vmul.f32 %v3884, %v3826
        %v3912 = vmul.f32 %v3886, %v3826
        %v3913 = vmul.f32 %v3888, %v3826
        %v3914 = vmul.f32 %v3890, %v3826
        %v3915 = vmul.f32 %v3892, %v3826
        %v3916 = vmul.f32 %v3894, %v3826
        %v3917 = vmul.f32 %v3896, %v3826
        %v3918 = vmul.f32 %v3898, %v3826
        %v3919 = vmul.f32 %v3900, %v3826
        %v3920 = vmul.f32 %v3902, %v3826
        %v3921 = vmul.f32 %v3904, %v3826
        %v3922 = vmul.f32 %v3906, %v3826
        %v3923 = vadd.f32 %v3907, 1e-06
        %v3924 = vadd.f32 %v3908, 1e-06
        %v3925 = vadd.f32 %v3909, 1e-06
        %v3926 = vadd.f32 %v3910, 1e-06
        %v3927 = vadd.f32 %v3911, 1e-06
        %v3928 = vadd.f32 %v3912, 1e-06
        %v3929 = vadd.f32 %v3913, 1e-06
        %v3930 = vadd.f32 %v3914, 1e-06
        %v3931 = vadd.f32 %v3915, 1e-06
        %v3932 = vadd.f32 %v3916, 1e-06
        %v3933 = vadd.f32 %v3917, 1e-06
        %v3934 = vadd.f32 %v3918, 1e-06
        %v3935 = vadd.f32 %v3919, 1e-06
        %v3936 = vadd.f32 %v3920, 1e-06
        %v3937 = vadd.f32 %v3921, 1e-06
        %v3938 = vadd.f32 %v3922, 1e-06
        %v3939 = vrsqrt.pop %v3923
        %v3940 = vmul.f32 %v3939, %v3923
        %v3941 = vmul.f32 %v3940, %v3939
        %v3942 = vmul.f32 0.5, %v3941
        %v3943 = vsub.f32 1.5, %v3942
        %v3944 = vmul.f32 %v3939, %v3943
        %vm3945 = vweird.f32 %v3923
        %vm3946 = vweird.f32 %v3939
        %vm3947 = vmor %vm3945, %vm3946
        %v3948 = vsel %vm3947, %v3939, %v3944
        %v3949 = vrsqrt.pop %v3924
        %v3950 = vmul.f32 %v3949, %v3924
        %v3951 = vmul.f32 %v3950, %v3949
        %v3952 = vmul.f32 0.5, %v3951
        %v3953 = vsub.f32 1.5, %v3952
        %v3954 = vmul.f32 %v3949, %v3953
        %vm3955 = vweird.f32 %v3924
        %vm3956 = vweird.f32 %v3949
        %vm3957 = vmor %vm3955, %vm3956
        %v3958 = vsel %vm3957, %v3949, %v3954
        %v3959 = vrsqrt.pop %v3925
        %v3960 = vmul.f32 %v3959, %v3925
        %v3961 = vmul.f32 %v3960, %v3959
        %v3962 = vmul.f32 0.5, %v3961
        %v3963 = vsub.f32 1.5, %v3962
        %v3964 = vmul.f32 %v3959, %v3963
        %vm3965 = vweird.f32 %v3925
        %vm3966 = vweird.f32 %v3959
        %vm3967 = vmor %vm3965, %vm3966
        %v3968 = vsel %vm3967, %v3959, %v3964
        %v3969 = vrsqrt.pop %v3926
        %v3970 = vmul.f32 %v3969, %v3926
        %v3971 = vmul.f32 %v3970, %v3969
        %v3972 = vmul.f32 0.5, %v3971
        %v3973 = vsub.f32 1.5, %v3972
        %v3974 = vmul.f32 %v3969, %v3973
        %vm3975 = vweird.f32 %v3926
        %vm3976 = vweird.f32 %v3969
        %vm3977 = vmor %vm3975, %vm3976
        %v3978 = vsel %vm3977, %v3969, %v3974
        %v3979 = vrsqrt.pop %v3927
        %v3980 = vmul.f32 %v3979, %v3927
        %v3981 = vmul.f32 %v3980, %v3979
        %v3982 = vmul.f32 0.5, %v3981
        %v3983 = vsub.f32 1.5, %v3982
        %v3984 = vmul.f32 %v3979, %v3983
        %vm3985 = vweird.f32 %v3927
        %vm3986 = vweird.f32 %v3979
        %vm3987 = vmor %vm3985, %vm3986
        %v3988 = vsel %vm3987, %v3979, %v3984
        %v3989 = vrsqrt.pop %v3928
        %v3990 = vmul.f32 %v3989, %v3928
        %v3991 = vmul.f32 %v3990, %v3989
        %v3992 = vmul.f32 0.5, %v3991
        %v3993 = vsub.f32 1.5, %v3992
        %v3994 = vmul.f32 %v3989, %v3993
        %vm3995 = vweird.f32 %v3928
        %vm3996 = vweird.f32 %v3989
        %vm3997 = vmor %vm3995, %vm3996
        %v3998 = vsel %vm3997, %v3989, %v3994
        %v3999 = vrsqrt.pop %v3929
        %v4000 = vmul.f32 %v3999, %v3929
        %v4001 = vmul.f32 %v4000, %v3999
        %v4002 = vmul.f32 0.5, %v4001
        %v4003 = vsub.f32 1.5, %v4002
        %v4004 = vmul.f32 %v3999, %v4003
        %vm4005 = vweird.f32 %v3929
        %vm4006 = vweird.f32 %v3999
        %vm4007 = vmor %vm4005, %vm4006
        %v4008 = vsel %vm4007, %v3999, %v4004
        %v4009 = vrsqrt.pop %v3930
        %v4010 = vmul.f32 %v4009, %v3930
        %v4011 = vmul.f32 %v4010, %v4009
        %v4012 = vmul.f32 0.5, %v4011
        %v4013 = vsub.f32 1.5, %v4012
        %v4014 = vmul.f32 %v4009, %v4013
        %vm4015 = vweird.f32 %v3930
        %vm4016 = vweird.f32 %v4009
        %vm4017 = vmor %vm4015, %vm4016
        %v4018 = vsel %vm4017, %v4009, %v4014
        %v4019 = vrsqrt.pop %v3931
        %v4020 = vmul.f32 %v4019, %v3931
        %v4021 = vmul.f32 %v4020, %v4019
        %v4022 = vmul.f32 0.5, %v4021
        %v4023 = vsub.f32 1.5, %v4022
        %v4024 = vmul.f32 %v4019, %v4023
        %vm4025 = vweird.f32 %v3931
        %vm4026 = vweird.f32 %v4019
        %vm4027 = vmor %vm4025, %vm4026
        %v4028 = vsel %vm4027, %v4019, %v4024
        %v4029 = vrsqrt.pop %v3932
        %v4030 = vmul.f32 %v4029, %v3932
        %v4031 = vmul.f32 %v4030, %v4029
        %v4032 = vmul.f32 0.5, %v4031
        %v4033 = vsub.f32 1.5, %v4032
        %v4034 = vmul.f32 %v4029, %v4033
        %vm4035 = vweird.f32 %v3932
        %vm4036 = vweird.f32 %v4029
        %vm4037 = vmor %vm4035, %vm4036
        %v4038 = vsel %vm4037, %v4029, %v4034
        %v4039 = vrsqrt.pop %v3933
        %v4040 = vmul.f32 %v4039, %v3933
        %v4041 = vmul.f32 %v4040, %v4039
        %v4042 = vmul.f32 0.5, %v4041
        %v4043 = vsub.f32 1.5, %v4042
        %v4044 = vmul.f32 %v4039, %v4043
        %vm4045 = vweird.f32 %v3933
        %vm4046 = vweird.f32 %v4039
        %vm4047 = vmor %vm4045, %vm4046
        %v4048 = vsel %vm4047, %v4039, %v4044
        %v4049 = vrsqrt.pop %v3934
        %v4050 = vmul.f32 %v4049, %v3934
        %v4051 = vmul.f32 %v4050, %v4049
        %v4052 = vmul.f32 0.5, %v4051
        %v4053 = vsub.f32 1.5, %v4052
        %v4054 = vmul.f32 %v4049, %v4053
        %vm4055 = vweird.f32 %v3934
        %vm4056 = vweird.f32 %v4049
        %vm4057 = vmor %vm4055, %vm4056
        %v4058 = vsel %vm4057, %v4049, %v4054
        %v4059 = vrsqrt.pop %v3935
        %v4060 = vmul.f32 %v4059, %v3935
        %v4061 = vmul.f32 %v4060, %v4059
        %v4062 = vmul.f32 0.5, %v4061
        %v4063 = vsub.f32 1.5, %v4062
        %v4064 = vmul.f32 %v4059, %v4063
        %vm4065 = vweird.f32 %v3935
        %vm4066 = vweird.f32 %v4059
        %vm4067 = vmor %vm4065, %vm4066
        %v4068 = vsel %vm4067, %v4059, %v4064
        %v4069 = vrsqrt.pop %v3936
        %v4070 = vmul.f32 %v4069, %v3936
        %v4071 = vmul.f32 %v4070, %v4069
        %v4072 = vmul.f32 0.5, %v4071
        %v4073 = vsub.f32 1.5, %v4072
        %v4074 = vmul.f32 %v4069, %v4073
        %vm4075 = vweird.f32 %v3936
        %vm4076 = vweird.f32 %v4069
        %vm4077 = vmor %vm4075, %vm4076
        %v4078 = vsel %vm4077, %v4069, %v4074
        %v4079 = vrsqrt.pop %v3937
        %v4080 = vmul.f32 %v4079, %v3937
        %v4081 = vmul.f32 %v4080, %v4079
        %v4082 = vmul.f32 0.5, %v4081
        %v4083 = vsub.f32 1.5, %v4082
        %v4084 = vmul.f32 %v4079, %v4083
        %vm4085 = vweird.f32 %v3937
        %vm4086 = vweird.f32 %v4079
        %vm4087 = vmor %vm4085, %vm4086
        %v4088 = vsel %vm4087, %v4079, %v4084
        %v4089 = vrsqrt.pop %v3938
        %v4090 = vmul.f32 %v4089, %v3938
        %v4091 = vmul.f32 %v4090, %v4089
        %v4092 = vmul.f32 0.5, %v4091
        %v4093 = vsub.f32 1.5, %v4092
        %v4094 = vmul.f32 %v4089, %v4093
        %vm4095 = vweird.f32 %v3938
        %vm4096 = vweird.f32 %v4089
        %vm4097 = vmor %vm4095, %vm4096
        %v4098 = vsel %vm4097, %v4089, %v4094
        %v4099 = vmul.f32 %v3843, %v3948
        %v4100 = vmul.f32 %v3844, %v3958
        %v4101 = vmul.f32 %v3845, %v3968
        %v4102 = vmul.f32 %v3846, %v3978
        %v4103 = vmul.f32 %v3847, %v3988
        %v4104 = vmul.f32 %v3848, %v3998
        %v4105 = vmul.f32 %v3849, %v4008
        %v4106 = vmul.f32 %v3850, %v4018
        %v4107 = vmul.f32 %v3851, %v4028
        %v4108 = vmul.f32 %v3852, %v4038
        %v4109 = vmul.f32 %v3853, %v4048
        %v4110 = vmul.f32 %v3854, %v4058
        %v4111 = vmul.f32 %v3855, %v4068
        %v4112 = vmul.f32 %v3856, %v4078
        %v4113 = vmul.f32 %v3857, %v4088
        %v4114 = vmul.f32 %v3858, %v4098
        %v4115 = vld [vmem:[%s9] sm:$0x1]
        %v4117 = vperm.slane %v4115, 0
        %v4119 = vmul.f32 %v4099, %v4117
        %v4120 = vmul.f32 %v4100, %v4117
        %v4121 = vmul.f32 %v4101, %v4117
        %v4122 = vmul.f32 %v4102, %v4117
        %v4123 = vmul.f32 %v4103, %v4117
        %v4124 = vmul.f32 %v4104, %v4117
        %v4125 = vmul.f32 %v4105, %v4117
        %v4126 = vmul.f32 %v4106, %v4117
        %v4127 = vmul.f32 %v4107, %v4117
        %v4128 = vmul.f32 %v4108, %v4117
        %v4129 = vmul.f32 %v4109, %v4117
        %v4130 = vmul.f32 %v4110, %v4117
        %v4131 = vmul.f32 %v4111, %v4117
        %v4132 = vmul.f32 %v4112, %v4117
        %v4133 = vmul.f32 %v4113, %v4117
        %v4134 = vmul.f32 %v4114, %v4117
        %v4135 = vld [vmem:[%s10] sm:$0x1]
        %v4137 = vperm.slane %v4135, 0
        %v4139 = vadd.f32 %v4119, %v4137
        %v4140 = vadd.f32 %v4120, %v4137
        %v4141 = vadd.f32 %v4121, %v4137
        %v4142 = vadd.f32 %v4122, %v4137
        %v4143 = vadd.f32 %v4123, %v4137
        %v4144 = vadd.f32 %v4124, %v4137
        %v4145 = vadd.f32 %v4125, %v4137
        %v4146 = vadd.f32 %v4126, %v4137
        %v4147 = vadd.f32 %v4127, %v4137
        %v4148 = vadd.f32 %v4128, %v4137
        %v4149 = vadd.f32 %v4129, %v4137
        %v4150 = vadd.f32 %v4130, %v4137
        %v4151 = vadd.f32 %v4131, %v4137
        %v4152 = vadd.f32 %v4132, %v4137
        %v4153 = vadd.f32 %v4133, %v4137
        %v4154 = vadd.f32 %v4134, %v4137
        %4155 = vst [vmem:[%s495] sm:$0xff] %v4139
        %4156 = vst [vmem:[%s495 + $0x8] sm:$0xff] %v4140
        %4157 = vst [vmem:[%s495 + $0x10] sm:$0xff] %v4141
        %4158 = vst [vmem:[%s495 + $0x18] sm:$0xff] %v4142
        %4159 = vst [vmem:[%s495 + $0x20] sm:$0xff] %v4143
        %4160 = vst [vmem:[%s495 + $0x28] sm:$0xff] %v4144
        %4161 = vst [vmem:[%s495 + $0x30] sm:$0xff] %v4145
        %4162 = vst [vmem:[%s495 + $0x38] sm:$0xff] %v4146
        %4163 = vst [vmem:[%s495 + $0x40] sm:$0xff] %v4147
        %4164 = vst [vmem:[%s495 + $0x48] sm:$0xff] %v4148
        %4165 = vst [vmem:[%s495 + $0x50] sm:$0xff] %v4149
        %4166 = vst [vmem:[%s495 + $0x58] sm:$0xff] %v4150
        %4167 = vst [vmem:[%s495 + $0x60] sm:$0xff] %v4151
        %4168 = vst [vmem:[%s495 + $0x68] sm:$0xff] %v4152
        %4169 = vst [vmem:[%s495 + $0x70] sm:$0xff] %v4153
        %4170 = vst [vmem:[%s495 + $0x78] sm:$0xff] %v4154
        %s4171 = sand.u32 %s285, 1
        %s4172 = scalar_lea.sflag [#allocation9], %s4171
        %s4173 = sand.u32 %s285, 1
        %s4174 = smul.addr %s4173, 128
        %s4175 = scalar_lea.vmem [#allocation17], %s4174
        // Predicated region
        $region81: #{tpu_custom_call.1} parent=59 // pred_check
          %p4176 = pneg %p295
        $region82: #{tpu_custom_call.1} parent=59 // pred_check_branch
          %4178 = sbr.rel (%p4176) target = $region84
        $region83: #{tpu_custom_call.1} parent=59 // pred_region
          %s4179 = smul.u32 16, %s46
          %4181 = vsyncadd %s4172, 0
          %s4182 = smul.addr %s45, 32
          %s4183 = sadd.s32 %s4179, %s4182
          %s4184 = smul.addr %s4183, 8
          %s4185 = scalar_lea.hbm %s11, %s4184
          %s4186 = sshll.u32 %s4175, 4
          %s4187 = int_to_ptr.vmem [resolvable:$true] %s4186
          %s4188 = sshll.u32 %s4185, 4
          %s4189 = int_to_ptr.hbm [resolvable:$true] %s4188
          %4194 = dma.vmem_to_hbm [thread:$0]  %s4187, 2048, %s4189, %s4172, 128, 128, 8
        $region84: #{tpu_custom_call.1} parent=59 // pred_fallthru
          _
      $region60: #{tpu_custom_call.1} parent=5 // pred_fallthru
        _
      %p4195 = scmp.le.s32.totalorder 2, %s36
      // Predicated region
      $region85: #{tpu_custom_call.1} parent=5 // pred_check
        %p4196 = pneg %p4195
      $region86: #{tpu_custom_call.1} parent=5 // pred_check_branch
        %4198 = sbr.rel (%p4196) target = $region88
      $region87: #{tpu_custom_call.1} parent=5 // pred_region
        %s4199 = ssub.s32 %s36, 2
        // Predicated region
        $region89: #{tpu_custom_call.1} parent=87 // pred_check
          %p4200 = pneg %p301
        $region90: #{tpu_custom_call.1} parent=87 // pred_check_branch
          %4202 = sbr.rel (%p4200) target = $region92
        $region91: #{tpu_custom_call.1} parent=87 // pred_region
          %s4203 = sand.u32 %s286, 1
          %s4204 = scalar_lea.sflag [#allocation9], %s4203
          %s4205 = sand.u32 %s286, 1
          %s4206 = smul.addr %s4205, 128
          %s4207 = scalar_lea.vmem [#allocation17], %s4206
          %4209 = dma.done %s4204, 2048
        $region92: #{tpu_custom_call.1} parent=87 // pred_fallthru
          _
      $region88: #{tpu_custom_call.1} parent=5 // pred_fallthru
        _
    $region6: #{tpu_custom_call.1} parent=1 // loop_footer
      %s40 = sadd.s32 1, %s36
    $region7: #{tpu_custom_call.1} parent=1 // loop_footer_branch
      %35 = sbr.rel target = $region3
    $region8: #{tpu_custom_call.1} parent=1 // loop_exit
      _
    %4210 = vsyncpa [#allocation8], 1
    %s4211 = scalar_lea.sflag [#allocation8], 1
    %4212 = vsyncpa %s4211, 1
    %4213 = vsyncpa [#allocation13], 1
    %s4214 = scalar_lea.sflag [#allocation13], 1
    %4215 = vsyncpa %s4214, 1
    %4216 = vsyncpa [#allocation16], 1
    %4217 = vsyncpa [#allocation9], 1
    %s4218 = scalar_lea.sflag [#allocation9], 1
    %4219 = vsyncpa %s4218, 1
    %4220 = vsyncpa [#allocation10], 1
    %s4221 = scalar_lea.sflag [#allocation10], 1
    %4222 = vsyncpa %s4221, 1

</llo_original>
